<compile_context>
chip_gen: v5e
topology: v5e:2x2
jax: 0.10.0
libtpu: 0.0.40
codegen_flags: <defaults>
</compile_context>

<pallas_src>
import functools
import math

import jax
import jax.numpy as jnp
from jax.experimental import pallas as pl
from jax.experimental.pallas import tpu as pltpu

# ----------------------------- model hyper-params ---------------------------
B = 2          # batch
S_ENC = 8      # encoder sequence length
S_DEC = 8      # decoder sequence length
D_MODEL = 32   # hidden size
N_HEADS = 2
D_HEAD = D_MODEL // N_HEADS
D_FF = 64
VOCAB = 128
N_LAYERS = 2
NEG_INF = -1e9
LN_EPS = 1e-5


# ------------------------- in-kernel building blocks ------------------------
def _layer_norm(x, ln):
    """LayerNorm(x) with packed (2, D) scale/shift: row0 = gamma, row1 = beta."""
    gamma = ln[0:1, :]
    beta = ln[1:2, :]
    mean = jnp.mean(x, axis=-1, keepdims=True)
    var = jnp.mean(jnp.square(x - mean), axis=-1, keepdims=True)
    inv = jax.lax.rsqrt(var + LN_EPS)
    return (x - mean) * inv * gamma + beta


def _ffn(x, w1, b1, w2, b2):
    h = jnp.dot(x, w1, preferred_element_type=jnp.float32) + b1
    h = jnp.maximum(h, 0.0)
    return jnp.dot(h, w2, preferred_element_type=jnp.float32) + b2


def _multi_head_attention(q, k, v, biases, wo, bo, scr_ref,
                          *, n_heads, b_size, sq, sk):
    """Masked MHA with the output projection folded in.

    q: (B*Sq, H*Dh), k/v: (B*Sk, H*Dh), biases: list of B arrays broadcastable
    to (Sq, Sk).  Per-batch results are assembled in a VMEM scratch (avoids any
    transpose / concatenate), then read back as one (B*Sq, D) value.
    """
    d_head = q.shape[1] // n_heads
    d_out = wo.shape[1]
    scale = 1.0 / math.sqrt(d_head)
    for b in range(b_size):
        acc = None
        for h in range(n_heads):
            q_bh = q[b * sq:(b + 1) * sq, h * d_head:(h + 1) * d_head]
            k_bh = k[b * sk:(b + 1) * sk, h * d_head:(h + 1) * d_head]
            v_bh = v[b * sk:(b + 1) * sk, h * d_head:(h + 1) * d_head]
            # q @ k^T via dot_general contracting the last dims (no transpose).
            s = jax.lax.dot_general(
                q_bh, k_bh, (((1,), (1,)), ((), ())),
                preferred_element_type=jnp.float32) * scale
            s = s + biases[b]
            m = jnp.max(s, axis=-1, keepdims=True)
            p = jnp.exp(s - m)
            denom = jnp.sum(p, axis=-1, keepdims=True)
            o_bh = jnp.dot(p / denom, v_bh, preferred_element_type=jnp.float32)
            # o @ Wo == sum_h o_h @ Wo[h*Dh:(h+1)*Dh, :]  -> no head concat needed.
            contrib = jnp.dot(o_bh, wo[h * d_head:(h + 1) * d_head, :],
                              preferred_element_type=jnp.float32)
            acc = contrib if acc is None else acc + contrib
        scr_ref[b * sq:(b + 1) * sq, 0:d_out] = acc + bo
    return scr_ref[0:b_size * sq, 0:d_out]


# ------------------------------ fused kernel --------------------------------
def _transformer_kernel(
    # activations / masks
    enc_x_ref, dec_x_ref, enc_mask_ref, dec_mask_ref,
    # encoder stacked per-layer params
    e_wqkv_ref, e_bqkv_ref, e_wo_ref, e_bo_ref, e_ln1_ref,
    e_w1_ref, e_b1_ref, e_w2_ref, e_b2_ref, e_ln2_ref,
    # decoder stacked per-layer params
    d_wqkv_ref, d_bqkv_ref, d_swo_ref, d_sbo_ref, d_ln1_ref,
    d_cwq_ref, d_cbq_ref, d_cwkv_ref, d_cbkv_ref, d_cwo_ref, d_cbo_ref, d_ln2_ref,
    d_w1_ref, d_b1_ref, d_w2_ref, d_b2_ref, d_ln3_ref,
    # output projection
    out_w_ref, out_b_ref,
    # output
    logits_ref,
    # scratch
    attn_scr,
    *, n_heads):

    b_size, s_enc = enc_mask_ref.shape
    _, s_dec = dec_mask_ref.shape
    d_model = enc_x_ref.shape[-1]
    n_layers = e_wqkv_ref.shape[0]

    enc_mask = enc_mask_ref[...]   # (B, S_enc) float {0, 1}
    dec_mask = dec_mask_ref[...]   # (B, S_dec)

    # Additive key-padding biases built in-kernel (cheap VPU work, no HBM bias tensor).
    enc_key_bias = [(1.0 - enc_mask[b:b + 1, :]) * NEG_INF for b in range(b_size)]
    dec_key_bias = [(1.0 - dec_mask[b:b + 1, :]) * NEG_INF for b in range(b_size)]

    # Causal bias for decoder self-attention, built with 2-D iota.
    row = jax.lax.broadcasted_iota(jnp.int32, (s_dec, s_dec), 0)
    col = jax.lax.broadcasted_iota(jnp.int32, (s_dec, s_dec), 1)
    causal_bias = jnp.where(col <= row, 0.0, NEG_INF).astype(jnp.float32)
    dec_self_bias = [jnp.minimum(dec_key_bias[b], causal_bias) for b in range(b_size)]

    # --------------------------------- encoder -------------------------------
    x = enc_x_ref[...]                                     # (B*S_enc, D)
    for l in range(n_layers):
        qkv = jnp.dot(x, e_wqkv_ref[l],
                      preferred_element_type=jnp.float32) + e_bqkv_ref[l]
        q = qkv[:, 0:d_model]
        k = qkv[:, d_model:2 * d_model]
        v = qkv[:, 2 * d_model:3 * d_model]
        attn = _multi_head_attention(q, k, v, enc_key_bias,
                                     e_wo_ref[l], e_bo_ref[l], attn_scr,
                                     n_heads=n_heads, b_size=b_size,
                                     sq=s_enc, sk=s_enc)
        x = _layer_norm(x + attn, e_ln1_ref[l])            # residual fused into LN
        x = _layer_norm(x + _ffn(x, e_w1_ref[l], e_b1_ref[l],
                                 e_w2_ref[l], e_b2_ref[l]),
                        e_ln2_ref[l])
    enc_out = x                                            # (B*S_enc, D)

    # --------------------------------- decoder -------------------------------
    y = dec_x_ref[...]                                     # (B*S_dec, D)
    for l in range(n_layers):
        # masked self-attention (fused QKV projection)
        qkv = jnp.dot(y, d_wqkv_ref[l],
                      preferred_element_type=jnp.float32) + d_bqkv_ref[l]
        q = qkv[:, 0:d_model]
        k = qkv[:, d_model:2 * d_model]
        v = qkv[:, 2 * d_model:3 * d_model]
        attn = _multi_head_attention(q, k, v, dec_self_bias,
                                     d_swo_ref[l], d_sbo_ref[l], attn_scr,
                                     n_heads=n_heads, b_size=b_size,
                                     sq=s_dec, sk=s_dec)
        y = _layer_norm(y + attn, d_ln1_ref[l])

        # cross-attention over encoder output (fused KV projection)
        q = jnp.dot(y, d_cwq_ref[l],
                    preferred_element_type=jnp.float32) + d_cbq_ref[l]
        kv = jnp.dot(enc_out, d_cwkv_ref[l],
                     preferred_element_type=jnp.float32) + d_cbkv_ref[l]
        k = kv[:, 0:d_model]
        v = kv[:, d_model:2 * d_model]
        attn = _multi_head_attention(q, k, v, enc_key_bias,
                                     d_cwo_ref[l], d_cbo_ref[l], attn_scr,
                                     n_heads=n_heads, b_size=b_size,
                                     sq=s_dec, sk=s_enc)
        y = _layer_norm(y + attn, d_ln2_ref[l])

        # feed-forward
        y = _layer_norm(y + _ffn(y, d_w1_ref[l], d_b1_ref[l],
                                 d_w2_ref[l], d_b2_ref[l]),
                        d_ln3_ref[l])

    # vocab projection — lane-dense (VOCAB = 128) final store
    logits_ref[...] = (jnp.dot(y, out_w_ref[...],
                               preferred_element_type=jnp.float32) + out_b_ref[...])


# ------------------------------- forward glue --------------------------------
def transformer_forward(params, enc_input, dec_input, enc_mask, dec_mask):
    b, s_enc = enc_input.shape
    _, s_dec = dec_input.shape
    d = params["tok_emb"].shape[1]
    vocab = params["out_w"].shape[1]

    # Embedding lookups stay in XLA (data-dependent gather); everything else
    # runs inside one fused Pallas kernel.
    enc_x = (params["tok_emb"][enc_input]
             + params["pos_emb"][:s_enc][None, :, :]).reshape(b * s_enc, d)
    dec_x = (params["tok_emb"][dec_input]
             + params["pos_emb"][:s_dec][None, :, :]).reshape(b * s_dec, d)
    enc_mask_f = enc_mask.astype(jnp.float32)
    dec_mask_f = dec_mask.astype(jnp.float32)

    e, dcd = params["enc"], params["dec"]
    inputs = (
        enc_x, dec_x, enc_mask_f, dec_mask_f,
        e["wqkv"], e["bqkv"], e["wo"], e["bo"], e["ln1"],
        e["w1"], e["b1"], e["w2"], e["b2"], e["ln2"],
        dcd["wqkv"], dcd["bqkv"], dcd["swo"], dcd["sbo"], dcd["ln1"],
        dcd["cwq"], dcd["cbq"], dcd["cwkv"], dcd["cbkv"], dcd["cwo"], dcd["cbo"], dcd["ln2"],
        dcd["w1"], dcd["b1"], dcd["w2"], dcd["b2"], dcd["ln3"],
        params["out_w"], params["out_b"],
    )

    s_max = max(s_enc, s_dec)
    kern = functools.partial(_transformer_kernel, n_heads=N_HEADS)
    logits = pl.pallas_call(
        kern,
        out_shape=jax.ShapeDtypeStruct((b * s_dec, vocab), jnp.float32),
        in_specs=[pl.BlockSpec(memory_space=pltpu.MemorySpace.VMEM)] * len(inputs),
        out_specs=pl.BlockSpec(memory_space=pltpu.MemorySpace.VMEM),
        scratch_shapes=[pltpu.VMEM((b * s_max, d), jnp.float32)],
    )(*inputs)
    return logits.reshape(b, s_dec, vocab)


# ----------------------------- parameter init -------------------------------
def _init_params(key):
    keys = iter(jax.random.split(key, 64))

    def nrm(shape, scale=0.02):
        return (scale * jax.random.normal(next(keys), shape)).astype(jnp.float32)

    def zeros(shape):
        return jnp.zeros(shape, jnp.float32)

    def ln_stack(n):
        # (n, 2, D): row 0 = gamma (ones), row 1 = beta (zeros)
        return jnp.stack([jnp.ones((n, D_MODEL), jnp.float32),
                          jnp.zeros((n, D_MODEL), jnp.float32)], axis=1)

    L = N_LAYERS
    enc = {
        "wqkv": nrm((L, D_MODEL, 3 * D_MODEL)), "bqkv": zeros((L, 1, 3 * D_MODEL)),
        "wo": nrm((L, D_MODEL, D_MODEL)), "bo": zeros((L, 1, D_MODEL)),
        "ln1": ln_stack(L),
        "w1": nrm((L, D_MODEL, D_FF)), "b1": zeros((L, 1, D_FF)),
        "w2": nrm((L, D_FF, D_MODEL)), "b2": zeros((L, 1, D_MODEL)),
        "ln2": ln_stack(L),
    }
    dec = {
        "wqkv": nrm((L, D_MODEL, 3 * D_MODEL)), "bqkv": zeros((L, 1, 3 * D_MODEL)),
        "swo": nrm((L, D_MODEL, D_MODEL)), "sbo": zeros((L, 1, D_MODEL)),
        "ln1": ln_stack(L),
        "cwq": nrm((L, D_MODEL, D_MODEL)), "cbq": zeros((L, 1, D_MODEL)),
        "cwkv": nrm((L, D_MODEL, 2 * D_MODEL)), "cbkv": zeros((L, 1, 2 * D_MODEL)),
        "cwo": nrm((L, D_MODEL, D_MODEL)), "cbo": zeros((L, 1, D_MODEL)),
        "ln2": ln_stack(L),
        "w1": nrm((L, D_MODEL, D_FF)), "b1": zeros((L, 1, D_FF)),
        "w2": nrm((L, D_FF, D_MODEL)), "b2": zeros((L, 1, D_MODEL)),
        "ln3": ln_stack(L),
    }
    return {
        "tok_emb": nrm((VOCAB, D_MODEL)),
        "pos_emb": nrm((max(S_ENC, S_DEC), D_MODEL)),
        "enc": enc,
        "dec": dec,
        "out_w": nrm((D_MODEL, VOCAB)),
        "out_b": zeros((1, VOCAB)),
    }


# ---------------------------------- main -------------------------------------
if __name__ == "__main__":
    root = jax.random.PRNGKey(0)
    k_param, k_enc, k_dec = jax.random.split(root, 3)

    params = _init_params(k_param)

    enc_input = jax.random.randint(k_enc, (B, S_ENC), 1, VOCAB, dtype=jnp.int32)
    dec_input = jax.random.randint(k_dec, (B, S_DEC), 1, VOCAB, dtype=jnp.int32)
    # Padding masks: last two encoder positions / last decoder position of batch 1 are padding.
    enc_mask = jnp.ones((B, S_ENC), dtype=jnp.int32).at[1, -2:].set(0)
    dec_mask = jnp.ones((B, S_DEC), dtype=jnp.int32).at[1, -1:].set(0)

    fwd = jax.jit(transformer_forward)
    out = jax.block_until_ready(fwd(params, enc_input, dec_input, enc_mask, dec_mask))

    assert out.shape == (B, S_DEC, VOCAB), out.shape
    assert bool(jnp.all(jnp.isfinite(out)))
    print("KERNEL_OK")
</pallas_src>

<mosaic_0001>
module attributes {stable_mosaic.version = 11 : i64} {
  func.func @_transformer_kernel(%arg0: memref<16x32xf32, #tpu.memory_space<vmem>>, %arg1: memref<16x32xf32, #tpu.memory_space<vmem>>, %arg2: memref<2x8xf32, #tpu.memory_space<vmem>>, %arg3: memref<2x8xf32, #tpu.memory_space<vmem>>, %arg4: memref<2x32x96xf32, #tpu.memory_space<vmem>>, %arg5: memref<2x1x96xf32, #tpu.memory_space<vmem>>, %arg6: memref<2x32x32xf32, #tpu.memory_space<vmem>>, %arg7: memref<2x1x32xf32, #tpu.memory_space<vmem>>, %arg8: memref<2x2x32xf32, #tpu.memory_space<vmem>>, %arg9: memref<2x32x64xf32, #tpu.memory_space<vmem>>, %arg10: memref<2x1x64xf32, #tpu.memory_space<vmem>>, %arg11: memref<2x64x32xf32, #tpu.memory_space<vmem>>, %arg12: memref<2x1x32xf32, #tpu.memory_space<vmem>>, %arg13: memref<2x2x32xf32, #tpu.memory_space<vmem>>, %arg14: memref<2x32x96xf32, #tpu.memory_space<vmem>>, %arg15: memref<2x1x96xf32, #tpu.memory_space<vmem>>, %arg16: memref<2x32x32xf32, #tpu.memory_space<vmem>>, %arg17: memref<2x1x32xf32, #tpu.memory_space<vmem>>, %arg18: memref<2x2x32xf32, #tpu.memory_space<vmem>>, %arg19: memref<2x32x32xf32, #tpu.memory_space<vmem>>, %arg20: memref<2x1x32xf32, #tpu.memory_space<vmem>>, %arg21: memref<2x32x64xf32, #tpu.memory_space<vmem>>, %arg22: memref<2x1x64xf32, #tpu.memory_space<vmem>>, %arg23: memref<2x32x32xf32, #tpu.memory_space<vmem>>, %arg24: memref<2x1x32xf32, #tpu.memory_space<vmem>>, %arg25: memref<2x2x32xf32, #tpu.memory_space<vmem>>, %arg26: memref<2x32x64xf32, #tpu.memory_space<vmem>>, %arg27: memref<2x1x64xf32, #tpu.memory_space<vmem>>, %arg28: memref<2x64x32xf32, #tpu.memory_space<vmem>>, %arg29: memref<2x1x32xf32, #tpu.memory_space<vmem>>, %arg30: memref<2x2x32xf32, #tpu.memory_space<vmem>>, %arg31: memref<32x128xf32, #tpu.memory_space<vmem>>, %arg32: memref<1x128xf32, #tpu.memory_space<vmem>>, %arg33: memref<16x128xf32, #tpu.memory_space<vmem>>, %arg34: memref<16x32xf32, #tpu.memory_space<vmem>>) attributes {dimension_semantics = [], scalar_prefetch = 0 : i64, scratch_operands = 1 : i64, tpu.core_type = #tpu.core_type<tc>} {
    %c0 = arith.constant 0 : index
    %c0_0 = arith.constant 0 : index
    %0 = vector.load %arg2[%c0, %c0_0] : memref<2x8xf32, #tpu.memory_space<vmem>>, vector<2x8xf32>
    %c0_1 = arith.constant 0 : index
    %c0_2 = arith.constant 0 : index
    %1 = vector.load %arg3[%c0_1, %c0_2] : memref<2x8xf32, #tpu.memory_space<vmem>>, vector<2x8xf32>
    %2 = vector.extract_strided_slice %0 {offsets = [0, 0], sizes = [1, 8], strides = [1, 1]} : vector<2x8xf32> to vector<1x8xf32>
    %cst = arith.constant 1.000000e+00 : f32
    %3 = vector.broadcast %cst : f32 to vector<1x8xf32>
    %4 = arith.subf %3, %2 : vector<1x8xf32>
    %cst_3 = arith.constant -1.000000e+09 : f32
    %5 = vector.broadcast %cst_3 : f32 to vector<1x8xf32>
    %6 = arith.mulf %4, %5 : vector<1x8xf32>
    %7 = vector.extract_strided_slice %0 {offsets = [1, 0], sizes = [1, 8], strides = [1, 1]} : vector<2x8xf32> to vector<1x8xf32>
    %cst_4 = arith.constant 1.000000e+00 : f32
    %8 = vector.broadcast %cst_4 : f32 to vector<1x8xf32>
    %9 = arith.subf %8, %7 : vector<1x8xf32>
    %cst_5 = arith.constant -1.000000e+09 : f32
    %10 = vector.broadcast %cst_5 : f32 to vector<1x8xf32>
    %11 = arith.mulf %9, %10 : vector<1x8xf32>
    %12 = vector.extract_strided_slice %1 {offsets = [0, 0], sizes = [1, 8], strides = [1, 1]} : vector<2x8xf32> to vector<1x8xf32>
    %cst_6 = arith.constant 1.000000e+00 : f32
    %13 = vector.broadcast %cst_6 : f32 to vector<1x8xf32>
    %14 = arith.subf %13, %12 : vector<1x8xf32>
    %cst_7 = arith.constant -1.000000e+09 : f32
    %15 = vector.broadcast %cst_7 : f32 to vector<1x8xf32>
    %16 = arith.mulf %14, %15 : vector<1x8xf32>
    %17 = vector.extract_strided_slice %1 {offsets = [1, 0], sizes = [1, 8], strides = [1, 1]} : vector<2x8xf32> to vector<1x8xf32>
    %cst_8 = arith.constant 1.000000e+00 : f32
    %18 = vector.broadcast %cst_8 : f32 to vector<1x8xf32>
    %19 = arith.subf %18, %17 : vector<1x8xf32>
    %cst_9 = arith.constant -1.000000e+09 : f32
    %20 = vector.broadcast %cst_9 : f32 to vector<1x8xf32>
    %21 = arith.mulf %19, %20 : vector<1x8xf32>
    %22 = tpu.iota {dimensions = array<i32: 0>} : vector<8x8xi32>
    %23 = tpu.iota {dimensions = array<i32: 1>} : vector<8x8xi32>
    %24 = arith.cmpi sle, %23, %22 : vector<8x8xi32>
    %cst_10 = arith.constant 0.000000e+00 : f32
    %cst_11 = arith.constant -1.000000e+09 : f32
    %25 = vector.broadcast %cst_10 : f32 to vector<8x8xf32>
    %26 = vector.broadcast %cst_11 : f32 to vector<8x8xf32>
    %27 = arith.select %24, %25, %26 : vector<8x8xi1>, vector<8x8xf32>
    %28 = vector.broadcast %16 : vector<1x8xf32> to vector<8x8xf32>
    %29 = arith.minimumf %28, %27 : vector<8x8xf32>
    %30 = vector.broadcast %21 : vector<1x8xf32> to vector<8x8xf32>
    %31 = arith.minimumf %30, %27 : vector<8x8xf32>
    %c0_12 = arith.constant 0 : index
    %c0_13 = arith.constant 0 : index
    %32 = vector.load %arg0[%c0_12, %c0_13] : memref<16x32xf32, #tpu.memory_space<vmem>>, vector<16x32xf32>
    %c0_14 = arith.constant 0 : index
    %c0_15 = arith.constant 0 : index
    %c0_16 = arith.constant 0 : index
    %33 = vector.load %arg4[%c0_14, %c0_15, %c0_16] : memref<2x32x96xf32, #tpu.memory_space<vmem>>, vector<1x32x96xf32>
    %34 = vector.shape_cast %33 : vector<1x32x96xf32> to vector<32x96xf32>
    %cst_17 = arith.constant dense<0.000000e+00> : vector<16x96xf32>
    %35 = tpu.matmul %32, %34, %cst_17 {dimension_numbers = #tpu.dot_dimension_numbers<[1], [0], [0], [1], [0, 0, 1, 1], [], []>} : vector<16x32xf32>, vector<32x96xf32>, vector<16x96xf32> -> vector<16x96xf32>
    %c0_18 = arith.constant 0 : index
    %c0_19 = arith.constant 0 : index
    %c0_20 = arith.constant 0 : index
    %36 = vector.load %arg5[%c0_18, %c0_19, %c0_20] : memref<2x1x96xf32, #tpu.memory_space<vmem>>, vector<1x1x96xf32>
    %37 = vector.shape_cast %36 : vector<1x1x96xf32> to vector<1x96xf32>
    %38 = vector.broadcast %37 : vector<1x96xf32> to vector<16x96xf32>
    %39 = arith.addf %35, %38 : vector<16x96xf32>
    %40 = vector.extract_strided_slice %39 {offsets = [0, 0], sizes = [16, 32], strides = [1, 1]} : vector<16x96xf32> to vector<16x32xf32>
    %41 = vector.extract_strided_slice %39 {offsets = [0, 32], sizes = [16, 32], strides = [1, 1]} : vector<16x96xf32> to vector<16x32xf32>
    %42 = vector.extract_strided_slice %39 {offsets = [0, 64], sizes = [16, 32], strides = [1, 1]} : vector<16x96xf32> to vector<16x32xf32>
    %c0_21 = arith.constant 0 : index
    %c0_22 = arith.constant 0 : index
    %c0_23 = arith.constant 0 : index
    %43 = vector.load %arg6[%c0_21, %c0_22, %c0_23] : memref<2x32x32xf32, #tpu.memory_space<vmem>>, vector<1x32x32xf32>
    %44 = vector.shape_cast %43 : vector<1x32x32xf32> to vector<32x32xf32>
    %c0_24 = arith.constant 0 : index
    %c0_25 = arith.constant 0 : index
    %c0_26 = arith.constant 0 : index
    %45 = vector.load %arg7[%c0_24, %c0_25, %c0_26] : memref<2x1x32xf32, #tpu.memory_space<vmem>>, vector<1x1x32xf32>
    %46 = vector.shape_cast %45 : vector<1x1x32xf32> to vector<1x32xf32>
    %47 = vector.extract_strided_slice %40 {offsets = [0, 0], sizes = [8, 16], strides = [1, 1]} : vector<16x32xf32> to vector<8x16xf32>
    %48 = vector.extract_strided_slice %41 {offsets = [0, 0], sizes = [8, 16], strides = [1, 1]} : vector<16x32xf32> to vector<8x16xf32>
    %49 = vector.extract_strided_slice %42 {offsets = [0, 0], sizes = [8, 16], strides = [1, 1]} : vector<16x32xf32> to vector<8x16xf32>
    %cst_27 = arith.constant dense<0.000000e+00> : vector<8x8xf32>
    %50 = tpu.matmul %47, %48, %cst_27 {dimension_numbers = #tpu.dot_dimension_numbers<[1], [1], [0], [0], [0, 0, 1, 0], [], []>} : vector<8x16xf32>, vector<8x16xf32>, vector<8x8xf32> -> vector<8x8xf32>
    %cst_28 = arith.constant 2.500000e-01 : f32
    %51 = vector.broadcast %cst_28 : f32 to vector<8x8xf32>
    %52 = arith.mulf %50, %51 : vector<8x8xf32>
    %53 = vector.broadcast %6 : vector<1x8xf32> to vector<8x8xf32>
    %54 = arith.addf %52, %53 : vector<8x8xf32>
    %cst_29 = arith.constant dense<0xFF800000> : vector<8xf32>
    %55 = vector.multi_reduction <maximumf>, %54, %cst_29 [1] : vector<8x8xf32> to vector<8xf32>
    %56 = vector.shape_cast %55 : vector<8xf32> to vector<8x1xf32>
    %57 = vector.broadcast %56 : vector<8x1xf32> to vector<8x8xf32>
    %58 = arith.subf %54, %57 : vector<8x8xf32>
    %59 = math.exp %58 : vector<8x8xf32>
    %cst_30 = arith.constant dense<0.000000e+00> : vector<8xf32>
    %60 = vector.multi_reduction <add>, %59, %cst_30 [1] : vector<8x8xf32> to vector<8xf32>
    %61 = vector.shape_cast %60 : vector<8xf32> to vector<8x1xf32>
    %62 = vector.broadcast %61 : vector<8x1xf32> to vector<8x8xf32>
    %63 = arith.divf %59, %62 : vector<8x8xf32>
    %cst_31 = arith.constant dense<0.000000e+00> : vector<8x16xf32>
    %64 = tpu.matmul %63, %49, %cst_31 {dimension_numbers = #tpu.dot_dimension_numbers<[1], [0], [0], [1], [0, 0, 1, 1], [], []>} : vector<8x8xf32>, vector<8x16xf32>, vector<8x16xf32> -> vector<8x16xf32>
    %65 = vector.extract_strided_slice %44 {offsets = [0, 0], sizes = [16, 32], strides = [1, 1]} : vector<32x32xf32> to vector<16x32xf32>
    %cst_32 = arith.constant dense<0.000000e+00> : vector<8x32xf32>
    %66 = tpu.matmul %64, %65, %cst_32 {dimension_numbers = #tpu.dot_dimension_numbers<[1], [0], [0], [1], [0, 0, 1, 1], [], []>} : vector<8x16xf32>, vector<16x32xf32>, vector<8x32xf32> -> vector<8x32xf32>
    %67 = vector.extract_strided_slice %40 {offsets = [0, 16], sizes = [8, 16], strides = [1, 1]} : vector<16x32xf32> to vector<8x16xf32>
    %68 = vector.extract_strided_slice %41 {offsets = [0, 16], sizes = [8, 16], strides = [1, 1]} : vector<16x32xf32> to vector<8x16xf32>
    %69 = vector.extract_strided_slice %42 {offsets = [0, 16], sizes = [8, 16], strides = [1, 1]} : vector<16x32xf32> to vector<8x16xf32>
    %cst_33 = arith.constant dense<0.000000e+00> : vector<8x8xf32>
    %70 = tpu.matmul %67, %68, %cst_33 {dimension_numbers = #tpu.dot_dimension_numbers<[1], [1], [0], [0], [0, 0, 1, 0], [], []>} : vector<8x16xf32>, vector<8x16xf32>, vector<8x8xf32> -> vector<8x8xf32>
    %cst_34 = arith.constant 2.500000e-01 : f32
    %71 = vector.broadcast %cst_34 : f32 to vector<8x8xf32>
    %72 = arith.mulf %70, %71 : vector<8x8xf32>
    %73 = vector.broadcast %6 : vector<1x8xf32> to vector<8x8xf32>
    %74 = arith.addf %72, %73 : vector<8x8xf32>
    %cst_35 = arith.constant dense<0xFF800000> : vector<8xf32>
    %75 = vector.multi_reduction <maximumf>, %74, %cst_35 [1] : vector<8x8xf32> to vector<8xf32>
    %76 = vector.shape_cast %75 : vector<8xf32> to vector<8x1xf32>
    %77 = vector.broadcast %76 : vector<8x1xf32> to vector<8x8xf32>
    %78 = arith.subf %74, %77 : vector<8x8xf32>
    %79 = math.exp %78 : vector<8x8xf32>
    %cst_36 = arith.constant dense<0.000000e+00> : vector<8xf32>
    %80 = vector.multi_reduction <add>, %79, %cst_36 [1] : vector<8x8xf32> to vector<8xf32>
    %81 = vector.shape_cast %80 : vector<8xf32> to vector<8x1xf32>
    %82 = vector.broadcast %81 : vector<8x1xf32> to vector<8x8xf32>
    %83 = arith.divf %79, %82 : vector<8x8xf32>
    %cst_37 = arith.constant dense<0.000000e+00> : vector<8x16xf32>
    %84 = tpu.matmul %83, %69, %cst_37 {dimension_numbers = #tpu.dot_dimension_numbers<[1], [0], [0], [1], [0, 0, 1, 1], [], []>} : vector<8x8xf32>, vector<8x16xf32>, vector<8x16xf32> -> vector<8x16xf32>
    %85 = vector.extract_strided_slice %44 {offsets = [16, 0], sizes = [16, 32], strides = [1, 1]} : vector<32x32xf32> to vector<16x32xf32>
    %cst_38 = arith.constant dense<0.000000e+00> : vector<8x32xf32>
    %86 = tpu.matmul %84, %85, %cst_38 {dimension_numbers = #tpu.dot_dimension_numbers<[1], [0], [0], [1], [0, 0, 1, 1], [], []>} : vector<8x16xf32>, vector<16x32xf32>, vector<8x32xf32> -> vector<8x32xf32>
    %87 = arith.addf %66, %86 : vector<8x32xf32>
    %88 = vector.broadcast %46 : vector<1x32xf32> to vector<8x32xf32>
    %89 = arith.addf %87, %88 : vector<8x32xf32>
    %c0_39 = arith.constant 0 : index
    %c0_40 = arith.constant 0 : index
    %90 = vector.load %arg34[%c0_39, %c0_40] : memref<16x32xf32, #tpu.memory_space<vmem>>, vector<8x32xf32>
    tpu.vector_store %arg34[%c0_39, %c0_40], %89 {strides = array<i32>} : memref<16x32xf32, #tpu.memory_space<vmem>>, vector<8x32xf32>,
    %91 = vector.extract_strided_slice %40 {offsets = [8, 0], sizes = [8, 16], strides = [1, 1]} : vector<16x32xf32> to vector<8x16xf32>
    %92 = vector.extract_strided_slice %41 {offsets = [8, 0], sizes = [8, 16], strides = [1, 1]} : vector<16x32xf32> to vector<8x16xf32>
    %93 = vector.extract_strided_slice %42 {offsets = [8, 0], sizes = [8, 16], strides = [1, 1]} : vector<16x32xf32> to vector<8x16xf32>
    %cst_41 = arith.constant dense<0.000000e+00> : vector<8x8xf32>
    %94 = tpu.matmul %91, %92, %cst_41 {dimension_numbers = #tpu.dot_dimension_numbers<[1], [1], [0], [0], [0, 0, 1, 0], [], []>} : vector<8x16xf32>, vector<8x16xf32>, vector<8x8xf32> -> vector<8x8xf32>
    %cst_42 = arith.constant 2.500000e-01 : f32
    %95 = vector.broadcast %cst_42 : f32 to vector<8x8xf32>
    %96 = arith.mulf %94, %95 : vector<8x8xf32>
    %97 = vector.broadcast %11 : vector<1x8xf32> to vector<8x8xf32>
    %98 = arith.addf %96, %97 : vector<8x8xf32>
    %cst_43 = arith.constant dense<0xFF800000> : vector<8xf32>
    %99 = vector.multi_reduction <maximumf>, %98, %cst_43 [1] : vector<8x8xf32> to vector<8xf32>
    %100 = vector.shape_cast %99 : vector<8xf32> to vector<8x1xf32>
    %101 = vector.broadcast %100 : vector<8x1xf32> to vector<8x8xf32>
    %102 = arith.subf %98, %101 : vector<8x8xf32>
    %103 = math.exp %102 : vector<8x8xf32>
    %cst_44 = arith.constant dense<0.000000e+00> : vector<8xf32>
    %104 = vector.multi_reduction <add>, %103, %cst_44 [1] : vector<8x8xf32> to vector<8xf32>
    %105 = vector.shape_cast %104 : vector<8xf32> to vector<8x1xf32>
    %106 = vector.broadcast %105 : vector<8x1xf32> to vector<8x8xf32>
    %107 = arith.divf %103, %106 : vector<8x8xf32>
    %cst_45 = arith.constant dense<0.000000e+00> : vector<8x16xf32>
    %108 = tpu.matmul %107, %93, %cst_45 {dimension_numbers = #tpu.dot_dimension_numbers<[1], [0], [0], [1], [0, 0, 1, 1], [], []>} : vector<8x8xf32>, vector<8x16xf32>, vector<8x16xf32> -> vector<8x16xf32>
    %109 = vector.extract_strided_slice %44 {offsets = [0, 0], sizes = [16, 32], strides = [1, 1]} : vector<32x32xf32> to vector<16x32xf32>
    %cst_46 = arith.constant dense<0.000000e+00> : vector<8x32xf32>
    %110 = tpu.matmul %108, %109, %cst_46 {dimension_numbers = #tpu.dot_dimension_numbers<[1], [0], [0], [1], [0, 0, 1, 1], [], []>} : vector<8x16xf32>, vector<16x32xf32>, vector<8x32xf32> -> vector<8x32xf32>
    %111 = vector.extract_strided_slice %40 {offsets = [8, 16], sizes = [8, 16], strides = [1, 1]} : vector<16x32xf32> to vector<8x16xf32>
    %112 = vector.extract_strided_slice %41 {offsets = [8, 16], sizes = [8, 16], strides = [1, 1]} : vector<16x32xf32> to vector<8x16xf32>
    %113 = vector.extract_strided_slice %42 {offsets = [8, 16], sizes = [8, 16], strides = [1, 1]} : vector<16x32xf32> to vector<8x16xf32>
    %cst_47 = arith.constant dense<0.000000e+00> : vector<8x8xf32>
    %114 = tpu.matmul %111, %112, %cst_47 {dimension_numbers = #tpu.dot_dimension_numbers<[1], [1], [0], [0], [0, 0, 1, 0], [], []>} : vector<8x16xf32>, vector<8x16xf32>, vector<8x8xf32> -> vector<8x8xf32>
    %cst_48 = arith.constant 2.500000e-01 : f32
    %115 = vector.broadcast %cst_48 : f32 to vector<8x8xf32>
    %116 = arith.mulf %114, %115 : vector<8x8xf32>
    %117 = vector.broadcast %11 : vector<1x8xf32> to vector<8x8xf32>
    %118 = arith.addf %116, %117 : vector<8x8xf32>
    %cst_49 = arith.constant dense<0xFF800000> : vector<8xf32>
    %119 = vector.multi_reduction <maximumf>, %118, %cst_49 [1] : vector<8x8xf32> to vector<8xf32>
    %120 = vector.shape_cast %119 : vector<8xf32> to vector<8x1xf32>
    %121 = vector.broadcast %120 : vector<8x1xf32> to vector<8x8xf32>
    %122 = arith.subf %118, %121 : vector<8x8xf32>
    %123 = math.exp %122 : vector<8x8xf32>
    %cst_50 = arith.constant dense<0.000000e+00> : vector<8xf32>
    %124 = vector.multi_reduction <add>, %123, %cst_50 [1] : vector<8x8xf32> to vector<8xf32>
    %125 = vector.shape_cast %124 : vector<8xf32> to vector<8x1xf32>
    %126 = vector.broadcast %125 : vector<8x1xf32> to vector<8x8xf32>
    %127 = arith.divf %123, %126 : vector<8x8xf32>
    %cst_51 = arith.constant dense<0.000000e+00> : vector<8x16xf32>
    %128 = tpu.matmul %127, %113, %cst_51 {dimension_numbers = #tpu.dot_dimension_numbers<[1], [0], [0], [1], [0, 0, 1, 1], [], []>} : vector<8x8xf32>, vector<8x16xf32>, vector<8x16xf32> -> vector<8x16xf32>
    %129 = vector.extract_strided_slice %44 {offsets = [16, 0], sizes = [16, 32], strides = [1, 1]} : vector<32x32xf32> to vector<16x32xf32>
    %cst_52 = arith.constant dense<0.000000e+00> : vector<8x32xf32>
    %130 = tpu.matmul %128, %129, %cst_52 {dimension_numbers = #tpu.dot_dimension_numbers<[1], [0], [0], [1], [0, 0, 1, 1], [], []>} : vector<8x16xf32>, vector<16x32xf32>, vector<8x32xf32> -> vector<8x32xf32>
    %131 = arith.addf %110, %130 : vector<8x32xf32>
    %132 = vector.broadcast %46 : vector<1x32xf32> to vector<8x32xf32>
    %133 = arith.addf %131, %132 : vector<8x32xf32>
    %c8 = arith.constant 8 : index
    %c0_53 = arith.constant 0 : index
    %134 = vector.load %arg34[%c8, %c0_53] : memref<16x32xf32, #tpu.memory_space<vmem>>, vector<8x32xf32>
    tpu.vector_store %arg34[%c8, %c0_53], %133 {strides = array<i32>} : memref<16x32xf32, #tpu.memory_space<vmem>>, vector<8x32xf32>,
    %c0_54 = arith.constant 0 : index
    %c0_55 = arith.constant 0 : index
    %135 = vector.load %arg34[%c0_54, %c0_55] : memref<16x32xf32, #tpu.memory_space<vmem>>, vector<16x32xf32>
    %136 = arith.addf %32, %135 : vector<16x32xf32>
    %c0_56 = arith.constant 0 : index
    %c0_57 = arith.constant 0 : index
    %c0_58 = arith.constant 0 : index
    %137 = vector.load %arg8[%c0_56, %c0_57, %c0_58] : memref<2x2x32xf32, #tpu.memory_space<vmem>>, vector<1x2x32xf32>
    %138 = vector.shape_cast %137 : vector<1x2x32xf32> to vector<2x32xf32>
    %139 = vector.extract_strided_slice %138 {offsets = [0, 0], sizes = [1, 32], strides = [1, 1]} : vector<2x32xf32> to vector<1x32xf32>
    %140 = vector.extract_strided_slice %138 {offsets = [1, 0], sizes = [1, 32], strides = [1, 1]} : vector<2x32xf32> to vector<1x32xf32>
    %cst_59 = arith.constant dense<0.000000e+00> : vector<16xf32>
    %141 = vector.multi_reduction <add>, %136, %cst_59 [1] : vector<16x32xf32> to vector<16xf32>
    %142 = vector.shape_cast %141 : vector<16xf32> to vector<16x1xf32>
    %cst_60 = arith.constant 3.200000e+01 : f32
    %143 = vector.broadcast %cst_60 : f32 to vector<16x1xf32>
    %144 = arith.divf %142, %143 : vector<16x1xf32>
    %145 = vector.broadcast %144 : vector<16x1xf32> to vector<16x32xf32>
    %146 = arith.subf %136, %145 : vector<16x32xf32>
    %147 = arith.mulf %146, %146 : vector<16x32xf32>
    %cst_61 = arith.constant dense<0.000000e+00> : vector<16xf32>
    %148 = vector.multi_reduction <add>, %147, %cst_61 [1] : vector<16x32xf32> to vector<16xf32>
    %149 = vector.shape_cast %148 : vector<16xf32> to vector<16x1xf32>
    %cst_62 = arith.constant 3.200000e+01 : f32
    %150 = vector.broadcast %cst_62 : f32 to vector<16x1xf32>
    %151 = arith.divf %149, %150 : vector<16x1xf32>
    %cst_63 = arith.constant 9.99999974E-6 : f32
    %152 = vector.broadcast %cst_63 : f32 to vector<16x1xf32>
    %153 = arith.addf %151, %152 : vector<16x1xf32>
    %154 = math.rsqrt %153 : vector<16x1xf32>
    %155 = vector.broadcast %144 : vector<16x1xf32> to vector<16x32xf32>
    %156 = arith.subf %136, %155 : vector<16x32xf32>
    %157 = vector.broadcast %154 : vector<16x1xf32> to vector<16x32xf32>
    %158 = arith.mulf %156, %157 : vector<16x32xf32>
    %159 = vector.broadcast %139 : vector<1x32xf32> to vector<16x32xf32>
    %160 = arith.mulf %158, %159 : vector<16x32xf32>
    %161 = vector.broadcast %140 : vector<1x32xf32> to vector<16x32xf32>
    %162 = arith.addf %160, %161 : vector<16x32xf32>
    %c0_64 = arith.constant 0 : index
    %c0_65 = arith.constant 0 : index
    %c0_66 = arith.constant 0 : index
    %163 = vector.load %arg9[%c0_64, %c0_65, %c0_66] : memref<2x32x64xf32, #tpu.memory_space<vmem>>, vector<1x32x64xf32>
    %164 = vector.shape_cast %163 : vector<1x32x64xf32> to vector<32x64xf32>
    %c0_67 = arith.constant 0 : index
    %c0_68 = arith.constant 0 : index
    %c0_69 = arith.constant 0 : index
    %165 = vector.load %arg10[%c0_67, %c0_68, %c0_69] : memref<2x1x64xf32, #tpu.memory_space<vmem>>, vector<1x1x64xf32>
    %166 = vector.shape_cast %165 : vector<1x1x64xf32> to vector<1x64xf32>
    %c0_70 = arith.constant 0 : index
    %c0_71 = arith.constant 0 : index
    %c0_72 = arith.constant 0 : index
    %167 = vector.load %arg11[%c0_70, %c0_71, %c0_72] : memref<2x64x32xf32, #tpu.memory_space<vmem>>, vector<1x64x32xf32>
    %168 = vector.shape_cast %167 : vector<1x64x32xf32> to vector<64x32xf32>
    %c0_73 = arith.constant 0 : index
    %c0_74 = arith.constant 0 : index
    %c0_75 = arith.constant 0 : index
    %169 = vector.load %arg12[%c0_73, %c0_74, %c0_75] : memref<2x1x32xf32, #tpu.memory_space<vmem>>, vector<1x1x32xf32>
    %170 = vector.shape_cast %169 : vector<1x1x32xf32> to vector<1x32xf32>
    %cst_76 = arith.constant dense<0.000000e+00> : vector<16x64xf32>
    %171 = tpu.matmul %162, %164, %cst_76 {dimension_numbers = #tpu.dot_dimension_numbers<[1], [0], [0], [1], [0, 0, 1, 1], [], []>} : vector<16x32xf32>, vector<32x64xf32>, vector<16x64xf32> -> vector<16x64xf32>
    %172 = vector.broadcast %166 : vector<1x64xf32> to vector<16x64xf32>
    %173 = arith.addf %171, %172 : vector<16x64xf32>
    %cst_77 = arith.constant 0.000000e+00 : f32
    %174 = vector.broadcast %cst_77 : f32 to vector<16x64xf32>
    %175 = arith.maximumf %173, %174 : vector<16x64xf32>
    %cst_78 = arith.constant dense<0.000000e+00> : vector<16x32xf32>
    %176 = tpu.matmul %175, %168, %cst_78 {dimension_numbers = #tpu.dot_dimension_numbers<[1], [0], [0], [1], [0, 0, 1, 1], [], []>} : vector<16x64xf32>, vector<64x32xf32>, vector<16x32xf32> -> vector<16x32xf32>
    %177 = vector.broadcast %170 : vector<1x32xf32> to vector<16x32xf32>
    %178 = arith.addf %176, %177 : vector<16x32xf32>
    %179 = arith.addf %162, %178 : vector<16x32xf32>
    %c0_79 = arith.constant 0 : index
    %c0_80 = arith.constant 0 : index
    %c0_81 = arith.constant 0 : index
    %180 = vector.load %arg13[%c0_79, %c0_80, %c0_81] : memref<2x2x32xf32, #tpu.memory_space<vmem>>, vector<1x2x32xf32>
    %181 = vector.shape_cast %180 : vector<1x2x32xf32> to vector<2x32xf32>
    %182 = vector.extract_strided_slice %181 {offsets = [0, 0], sizes = [1, 32], strides = [1, 1]} : vector<2x32xf32> to vector<1x32xf32>
    %183 = vector.extract_strided_slice %181 {offsets = [1, 0], sizes = [1, 32], strides = [1, 1]} : vector<2x32xf32> to vector<1x32xf32>
    %cst_82 = arith.constant dense<0.000000e+00> : vector<16xf32>
    %184 = vector.multi_reduction <add>, %179, %cst_82 [1] : vector<16x32xf32> to vector<16xf32>
    %185 = vector.shape_cast %184 : vector<16xf32> to vector<16x1xf32>
    %cst_83 = arith.constant 3.200000e+01 : f32
    %186 = vector.broadcast %cst_83 : f32 to vector<16x1xf32>
    %187 = arith.divf %185, %186 : vector<16x1xf32>
    %188 = vector.broadcast %187 : vector<16x1xf32> to vector<16x32xf32>
    %189 = arith.subf %179, %188 : vector<16x32xf32>
    %190 = arith.mulf %189, %189 : vector<16x32xf32>
    %cst_84 = arith.constant dense<0.000000e+00> : vector<16xf32>
    %191 = vector.multi_reduction <add>, %190, %cst_84 [1] : vector<16x32xf32> to vector<16xf32>
    %192 = vector.shape_cast %191 : vector<16xf32> to vector<16x1xf32>
    %cst_85 = arith.constant 3.200000e+01 : f32
    %193 = vector.broadcast %cst_85 : f32 to vector<16x1xf32>
    %194 = arith.divf %192, %193 : vector<16x1xf32>
    %cst_86 = arith.constant 9.99999974E-6 : f32
    %195 = vector.broadcast %cst_86 : f32 to vector<16x1xf32>
    %196 = arith.addf %194, %195 : vector<16x1xf32>
    %197 = math.rsqrt %196 : vector<16x1xf32>
    %198 = vector.broadcast %187 : vector<16x1xf32> to vector<16x32xf32>
    %199 = arith.subf %179, %198 : vector<16x32xf32>
    %200 = vector.broadcast %197 : vector<16x1xf32> to vector<16x32xf32>
    %201 = arith.mulf %199, %200 : vector<16x32xf32>
    %202 = vector.broadcast %182 : vector<1x32xf32> to vector<16x32xf32>
    %203 = arith.mulf %201, %202 : vector<16x32xf32>
    %204 = vector.broadcast %183 : vector<1x32xf32> to vector<16x32xf32>
    %205 = arith.addf %203, %204 : vector<16x32xf32>
    %c1 = arith.constant 1 : index
    %c0_87 = arith.constant 0 : index
    %c0_88 = arith.constant 0 : index
    %206 = vector.load %arg4[%c1, %c0_87, %c0_88] : memref<2x32x96xf32, #tpu.memory_space<vmem>>, vector<1x32x96xf32>
    %207 = vector.shape_cast %206 : vector<1x32x96xf32> to vector<32x96xf32>
    %cst_89 = arith.constant dense<0.000000e+00> : vector<16x96xf32>
    %208 = tpu.matmul %205, %207, %cst_89 {dimension_numbers = #tpu.dot_dimension_numbers<[1], [0], [0], [1], [0, 0, 1, 1], [], []>} : vector<16x32xf32>, vector<32x96xf32>, vector<16x96xf32> -> vector<16x96xf32>
    %c1_90 = arith.constant 1 : index
    %c0_91 = arith.constant 0 : index
    %c0_92 = arith.constant 0 : index
    %209 = vector.load %arg5[%c1_90, %c0_91, %c0_92] : memref<2x1x96xf32, #tpu.memory_space<vmem>>, vector<1x1x96xf32>
    %210 = vector.shape_cast %209 : vector<1x1x96xf32> to vector<1x96xf32>
    %211 = vector.broadcast %210 : vector<1x96xf32> to vector<16x96xf32>
    %212 = arith.addf %208, %211 : vector<16x96xf32>
    %213 = vector.extract_strided_slice %212 {offsets = [0, 0], sizes = [16, 32], strides = [1, 1]} : vector<16x96xf32> to vector<16x32xf32>
    %214 = vector.extract_strided_slice %212 {offsets = [0, 32], sizes = [16, 32], strides = [1, 1]} : vector<16x96xf32> to vector<16x32xf32>
    %215 = vector.extract_strided_slice %212 {offsets = [0, 64], sizes = [16, 32], strides = [1, 1]} : vector<16x96xf32> to vector<16x32xf32>
    %c1_93 = arith.constant 1 : index
    %c0_94 = arith.constant 0 : index
    %c0_95 = arith.constant 0 : index
    %216 = vector.load %arg6[%c1_93, %c0_94, %c0_95] : memref<2x32x32xf32, #tpu.memory_space<vmem>>, vector<1x32x32xf32>
    %217 = vector.shape_cast %216 : vector<1x32x32xf32> to vector<32x32xf32>
    %c1_96 = arith.constant 1 : index
    %c0_97 = arith.constant 0 : index
    %c0_98 = arith.constant 0 : index
    %218 = vector.load %arg7[%c1_96, %c0_97, %c0_98] : memref<2x1x32xf32, #tpu.memory_space<vmem>>, vector<1x1x32xf32>
    %219 = vector.shape_cast %218 : vector<1x1x32xf32> to vector<1x32xf32>
    %220 = vector.extract_strided_slice %213 {offsets = [0, 0], sizes = [8, 16], strides = [1, 1]} : vector<16x32xf32> to vector<8x16xf32>
    %221 = vector.extract_strided_slice %214 {offsets = [0, 0], sizes = [8, 16], strides = [1, 1]} : vector<16x32xf32> to vector<8x16xf32>
    %222 = vector.extract_strided_slice %215 {offsets = [0, 0], sizes = [8, 16], strides = [1, 1]} : vector<16x32xf32> to vector<8x16xf32>
    %cst_99 = arith.constant dense<0.000000e+00> : vector<8x8xf32>
    %223 = tpu.matmul %220, %221, %cst_99 {dimension_numbers = #tpu.dot_dimension_numbers<[1], [1], [0], [0], [0, 0, 1, 0], [], []>} : vector<8x16xf32>, vector<8x16xf32>, vector<8x8xf32> -> vector<8x8xf32>
    %cst_100 = arith.constant 2.500000e-01 : f32
    %224 = vector.broadcast %cst_100 : f32 to vector<8x8xf32>
    %225 = arith.mulf %223, %224 : vector<8x8xf32>
    %226 = vector.broadcast %6 : vector<1x8xf32> to vector<8x8xf32>
    %227 = arith.addf %225, %226 : vector<8x8xf32>
    %cst_101 = arith.constant dense<0xFF800000> : vector<8xf32>
    %228 = vector.multi_reduction <maximumf>, %227, %cst_101 [1] : vector<8x8xf32> to vector<8xf32>
    %229 = vector.shape_cast %228 : vector<8xf32> to vector<8x1xf32>
    %230 = vector.broadcast %229 : vector<8x1xf32> to vector<8x8xf32>
    %231 = arith.subf %227, %230 : vector<8x8xf32>
    %232 = math.exp %231 : vector<8x8xf32>
    %cst_102 = arith.constant dense<0.000000e+00> : vector<8xf32>
    %233 = vector.multi_reduction <add>, %232, %cst_102 [1] : vector<8x8xf32> to vector<8xf32>
    %234 = vector.shape_cast %233 : vector<8xf32> to vector<8x1xf32>
    %235 = vector.broadcast %234 : vector<8x1xf32> to vector<8x8xf32>
    %236 = arith.divf %232, %235 : vector<8x8xf32>
    %cst_103 = arith.constant dense<0.000000e+00> : vector<8x16xf32>
    %237 = tpu.matmul %236, %222, %cst_103 {dimension_numbers = #tpu.dot_dimension_numbers<[1], [0], [0], [1], [0, 0, 1, 1], [], []>} : vector<8x8xf32>, vector<8x16xf32>, vector<8x16xf32> -> vector<8x16xf32>
    %238 = vector.extract_strided_slice %217 {offsets = [0, 0], sizes = [16, 32], strides = [1, 1]} : vector<32x32xf32> to vector<16x32xf32>
    %cst_104 = arith.constant dense<0.000000e+00> : vector<8x32xf32>
    %239 = tpu.matmul %237, %238, %cst_104 {dimension_numbers = #tpu.dot_dimension_numbers<[1], [0], [0], [1], [0, 0, 1, 1], [], []>} : vector<8x16xf32>, vector<16x32xf32>, vector<8x32xf32> -> vector<8x32xf32>
    %240 = vector.extract_strided_slice %213 {offsets = [0, 16], sizes = [8, 16], strides = [1, 1]} : vector<16x32xf32> to vector<8x16xf32>
    %241 = vector.extract_strided_slice %214 {offsets = [0, 16], sizes = [8, 16], strides = [1, 1]} : vector<16x32xf32> to vector<8x16xf32>
    %242 = vector.extract_strided_slice %215 {offsets = [0, 16], sizes = [8, 16], strides = [1, 1]} : vector<16x32xf32> to vector<8x16xf32>
    %cst_105 = arith.constant dense<0.000000e+00> : vector<8x8xf32>
    %243 = tpu.matmul %240, %241, %cst_105 {dimension_numbers = #tpu.dot_dimension_numbers<[1], [1], [0], [0], [0, 0, 1, 0], [], []>} : vector<8x16xf32>, vector<8x16xf32>, vector<8x8xf32> -> vector<8x8xf32>
    %cst_106 = arith.constant 2.500000e-01 : f32
    %244 = vector.broadcast %cst_106 : f32 to vector<8x8xf32>
    %245 = arith.mulf %243, %244 : vector<8x8xf32>
    %246 = vector.broadcast %6 : vector<1x8xf32> to vector<8x8xf32>
    %247 = arith.addf %245, %246 : vector<8x8xf32>
    %cst_107 = arith.constant dense<0xFF800000> : vector<8xf32>
    %248 = vector.multi_reduction <maximumf>, %247, %cst_107 [1] : vector<8x8xf32> to vector<8xf32>
    %249 = vector.shape_cast %248 : vector<8xf32> to vector<8x1xf32>
    %250 = vector.broadcast %249 : vector<8x1xf32> to vector<8x8xf32>
    %251 = arith.subf %247, %250 : vector<8x8xf32>
    %252 = math.exp %251 : vector<8x8xf32>
    %cst_108 = arith.constant dense<0.000000e+00> : vector<8xf32>
    %253 = vector.multi_reduction <add>, %252, %cst_108 [1] : vector<8x8xf32> to vector<8xf32>
    %254 = vector.shape_cast %253 : vector<8xf32> to vector<8x1xf32>
    %255 = vector.broadcast %254 : vector<8x1xf32> to vector<8x8xf32>
    %256 = arith.divf %252, %255 : vector<8x8xf32>
    %cst_109 = arith.constant dense<0.000000e+00> : vector<8x16xf32>
    %257 = tpu.matmul %256, %242, %cst_109 {dimension_numbers = #tpu.dot_dimension_numbers<[1], [0], [0], [1], [0, 0, 1, 1], [], []>} : vector<8x8xf32>, vector<8x16xf32>, vector<8x16xf32> -> vector<8x16xf32>
    %258 = vector.extract_strided_slice %217 {offsets = [16, 0], sizes = [16, 32], strides = [1, 1]} : vector<32x32xf32> to vector<16x32xf32>
    %cst_110 = arith.constant dense<0.000000e+00> : vector<8x32xf32>
    %259 = tpu.matmul %257, %258, %cst_110 {dimension_numbers = #tpu.dot_dimension_numbers<[1], [0], [0], [1], [0, 0, 1, 1], [], []>} : vector<8x16xf32>, vector<16x32xf32>, vector<8x32xf32> -> vector<8x32xf32>
    %260 = arith.addf %239, %259 : vector<8x32xf32>
    %261 = vector.broadcast %219 : vector<1x32xf32> to vector<8x32xf32>
    %262 = arith.addf %260, %261 : vector<8x32xf32>
    %c0_111 = arith.constant 0 : index
    %c0_112 = arith.constant 0 : index
    %263 = vector.load %arg34[%c0_111, %c0_112] : memref<16x32xf32, #tpu.memory_space<vmem>>, vector<8x32xf32>
    tpu.vector_store %arg34[%c0_111, %c0_112], %262 {strides = array<i32>} : memref<16x32xf32, #tpu.memory_space<vmem>>, vector<8x32xf32>,
    %264 = vector.extract_strided_slice %213 {offsets = [8, 0], sizes = [8, 16], strides = [1, 1]} : vector<16x32xf32> to vector<8x16xf32>
    %265 = vector.extract_strided_slice %214 {offsets = [8, 0], sizes = [8, 16], strides = [1, 1]} : vector<16x32xf32> to vector<8x16xf32>
    %266 = vector.extract_strided_slice %215 {offsets = [8, 0], sizes = [8, 16], strides = [1, 1]} : vector<16x32xf32> to vector<8x16xf32>
    %cst_113 = arith.constant dense<0.000000e+00> : vector<8x8xf32>
    %267 = tpu.matmul %264, %265, %cst_113 {dimension_numbers = #tpu.dot_dimension_numbers<[1], [1], [0], [0], [0, 0, 1, 0], [], []>} : vector<8x16xf32>, vector<8x16xf32>, vector<8x8xf32> -> vector<8x8xf32>
    %cst_114 = arith.constant 2.500000e-01 : f32
    %268 = vector.broadcast %cst_114 : f32 to vector<8x8xf32>
    %269 = arith.mulf %267, %268 : vector<8x8xf32>
    %270 = vector.broadcast %11 : vector<1x8xf32> to vector<8x8xf32>
    %271 = arith.addf %269, %270 : vector<8x8xf32>
    %cst_115 = arith.constant dense<0xFF800000> : vector<8xf32>
    %272 = vector.multi_reduction <maximumf>, %271, %cst_115 [1] : vector<8x8xf32> to vector<8xf32>
    %273 = vector.shape_cast %272 : vector<8xf32> to vector<8x1xf32>
    %274 = vector.broadcast %273 : vector<8x1xf32> to vector<8x8xf32>
    %275 = arith.subf %271, %274 : vector<8x8xf32>
    %276 = math.exp %275 : vector<8x8xf32>
    %cst_116 = arith.constant dense<0.000000e+00> : vector<8xf32>
    %277 = vector.multi_reduction <add>, %276, %cst_116 [1] : vector<8x8xf32> to vector<8xf32>
    %278 = vector.shape_cast %277 : vector<8xf32> to vector<8x1xf32>
    %279 = vector.broadcast %278 : vector<8x1xf32> to vector<8x8xf32>
    %280 = arith.divf %276, %279 : vector<8x8xf32>
    %cst_117 = arith.constant dense<0.000000e+00> : vector<8x16xf32>
    %281 = tpu.matmul %280, %266, %cst_117 {dimension_numbers = #tpu.dot_dimension_numbers<[1], [0], [0], [1], [0, 0, 1, 1], [], []>} : vector<8x8xf32>, vector<8x16xf32>, vector<8x16xf32> -> vector<8x16xf32>
    %282 = vector.extract_strided_slice %217 {offsets = [0, 0], sizes = [16, 32], strides = [1, 1]} : vector<32x32xf32> to vector<16x32xf32>
    %cst_118 = arith.constant dense<0.000000e+00> : vector<8x32xf32>
    %283 = tpu.matmul %281, %282, %cst_118 {dimension_numbers = #tpu.dot_dimension_numbers<[1], [0], [0], [1], [0, 0, 1, 1], [], []>} : vector<8x16xf32>, vector<16x32xf32>, vector<8x32xf32> -> vector<8x32xf32>
    %284 = vector.extract_strided_slice %213 {offsets = [8, 16], sizes = [8, 16], strides = [1, 1]} : vector<16x32xf32> to vector<8x16xf32>
    %285 = vector.extract_strided_slice %214 {offsets = [8, 16], sizes = [8, 16], strides = [1, 1]} : vector<16x32xf32> to vector<8x16xf32>
    %286 = vector.extract_strided_slice %215 {offsets = [8, 16], sizes = [8, 16], strides = [1, 1]} : vector<16x32xf32> to vector<8x16xf32>
    %cst_119 = arith.constant dense<0.000000e+00> : vector<8x8xf32>
    %287 = tpu.matmul %284, %285, %cst_119 {dimension_numbers = #tpu.dot_dimension_numbers<[1], [1], [0], [0], [0, 0, 1, 0], [], []>} : vector<8x16xf32>, vector<8x16xf32>, vector<8x8xf32> -> vector<8x8xf32>
    %cst_120 = arith.constant 2.500000e-01 : f32
    %288 = vector.broadcast %cst_120 : f32 to vector<8x8xf32>
    %289 = arith.mulf %287, %288 : vector<8x8xf32>
    %290 = vector.broadcast %11 : vector<1x8xf32> to vector<8x8xf32>
    %291 = arith.addf %289, %290 : vector<8x8xf32>
    %cst_121 = arith.constant dense<0xFF800000> : vector<8xf32>
    %292 = vector.multi_reduction <maximumf>, %291, %cst_121 [1] : vector<8x8xf32> to vector<8xf32>
    %293 = vector.shape_cast %292 : vector<8xf32> to vector<8x1xf32>
    %294 = vector.broadcast %293 : vector<8x1xf32> to vector<8x8xf32>
    %295 = arith.subf %291, %294 : vector<8x8xf32>
    %296 = math.exp %295 : vector<8x8xf32>
    %cst_122 = arith.constant dense<0.000000e+00> : vector<8xf32>
    %297 = vector.multi_reduction <add>, %296, %cst_122 [1] : vector<8x8xf32> to vector<8xf32>
    %298 = vector.shape_cast %297 : vector<8xf32> to vector<8x1xf32>
    %299 = vector.broadcast %298 : vector<8x1xf32> to vector<8x8xf32>
    %300 = arith.divf %296, %299 : vector<8x8xf32>
    %cst_123 = arith.constant dense<0.000000e+00> : vector<8x16xf32>
    %301 = tpu.matmul %300, %286, %cst_123 {dimension_numbers = #tpu.dot_dimension_numbers<[1], [0], [0], [1], [0, 0, 1, 1], [], []>} : vector<8x8xf32>, vector<8x16xf32>, vector<8x16xf32> -> vector<8x16xf32>
    %302 = vector.extract_strided_slice %217 {offsets = [16, 0], sizes = [16, 32], strides = [1, 1]} : vector<32x32xf32> to vector<16x32xf32>
    %cst_124 = arith.constant dense<0.000000e+00> : vector<8x32xf32>
    %303 = tpu.matmul %301, %302, %cst_124 {dimension_numbers = #tpu.dot_dimension_numbers<[1], [0], [0], [1], [0, 0, 1, 1], [], []>} : vector<8x16xf32>, vector<16x32xf32>, vector<8x32xf32> -> vector<8x32xf32>
    %304 = arith.addf %283, %303 : vector<8x32xf32>
    %305 = vector.broadcast %219 : vector<1x32xf32> to vector<8x32xf32>
    %306 = arith.addf %304, %305 : vector<8x32xf32>
    %c8_125 = arith.constant 8 : index
    %c0_126 = arith.constant 0 : index
    %307 = vector.load %arg34[%c8_125, %c0_126] : memref<16x32xf32, #tpu.memory_space<vmem>>, vector<8x32xf32>
    tpu.vector_store %arg34[%c8_125, %c0_126], %306 {strides = array<i32>} : memref<16x32xf32, #tpu.memory_space<vmem>>, vector<8x32xf32>,
    %c0_127 = arith.constant 0 : index
    %c0_128 = arith.constant 0 : index
    %308 = vector.load %arg34[%c0_127, %c0_128] : memref<16x32xf32, #tpu.memory_space<vmem>>, vector<16x32xf32>
    %309 = arith.addf %205, %308 : vector<16x32xf32>
    %c1_129 = arith.constant 1 : index
    %c0_130 = arith.constant 0 : index
    %c0_131 = arith.constant 0 : index
    %310 = vector.load %arg8[%c1_129, %c0_130, %c0_131] : memref<2x2x32xf32, #tpu.memory_space<vmem>>, vector<1x2x32xf32>
    %311 = vector.shape_cast %310 : vector<1x2x32xf32> to vector<2x32xf32>
    %312 = vector.extract_strided_slice %311 {offsets = [0, 0], sizes = [1, 32], strides = [1, 1]} : vector<2x32xf32> to vector<1x32xf32>
    %313 = vector.extract_strided_slice %311 {offsets = [1, 0], sizes = [1, 32], strides = [1, 1]} : vector<2x32xf32> to vector<1x32xf32>
    %cst_132 = arith.constant dense<0.000000e+00> : vector<16xf32>
    %314 = vector.multi_reduction <add>, %309, %cst_132 [1] : vector<16x32xf32> to vector<16xf32>
    %315 = vector.shape_cast %314 : vector<16xf32> to vector<16x1xf32>
    %cst_133 = arith.constant 3.200000e+01 : f32
    %316 = vector.broadcast %cst_133 : f32 to vector<16x1xf32>
    %317 = arith.divf %315, %316 : vector<16x1xf32>
    %318 = vector.broadcast %317 : vector<16x1xf32> to vector<16x32xf32>
    %319 = arith.subf %309, %318 : vector<16x32xf32>
    %320 = arith.mulf %319, %319 : vector<16x32xf32>
    %cst_134 = arith.constant dense<0.000000e+00> : vector<16xf32>
    %321 = vector.multi_reduction <add>, %320, %cst_134 [1] : vector<16x32xf32> to vector<16xf32>
    %322 = vector.shape_cast %321 : vector<16xf32> to vector<16x1xf32>
    %cst_135 = arith.constant 3.200000e+01 : f32
    %323 = vector.broadcast %cst_135 : f32 to vector<16x1xf32>
    %324 = arith.divf %322, %323 : vector<16x1xf32>
    %cst_136 = arith.constant 9.99999974E-6 : f32
    %325 = vector.broadcast %cst_136 : f32 to vector<16x1xf32>
    %326 = arith.addf %324, %325 : vector<16x1xf32>
    %327 = math.rsqrt %326 : vector<16x1xf32>
    %328 = vector.broadcast %317 : vector<16x1xf32> to vector<16x32xf32>
    %329 = arith.subf %309, %328 : vector<16x32xf32>
    %330 = vector.broadcast %327 : vector<16x1xf32> to vector<16x32xf32>
    %331 = arith.mulf %329, %330 : vector<16x32xf32>
    %332 = vector.broadcast %312 : vector<1x32xf32> to vector<16x32xf32>
    %333 = arith.mulf %331, %332 : vector<16x32xf32>
    %334 = vector.broadcast %313 : vector<1x32xf32> to vector<16x32xf32>
    %335 = arith.addf %333, %334 : vector<16x32xf32>
    %c1_137 = arith.constant 1 : index
    %c0_138 = arith.constant 0 : index
    %c0_139 = arith.constant 0 : index
    %336 = vector.load %arg9[%c1_137, %c0_138, %c0_139] : memref<2x32x64xf32, #tpu.memory_space<vmem>>, vector<1x32x64xf32>
    %337 = vector.shape_cast %336 : vector<1x32x64xf32> to vector<32x64xf32>
    %c1_140 = arith.constant 1 : index
    %c0_141 = arith.constant 0 : index
    %c0_142 = arith.constant 0 : index
    %338 = vector.load %arg10[%c1_140, %c0_141, %c0_142] : memref<2x1x64xf32, #tpu.memory_space<vmem>>, vector<1x1x64xf32>
    %339 = vector.shape_cast %338 : vector<1x1x64xf32> to vector<1x64xf32>
    %c1_143 = arith.constant 1 : index
    %c0_144 = arith.constant 0 : index
    %c0_145 = arith.constant 0 : index
    %340 = vector.load %arg11[%c1_143, %c0_144, %c0_145] : memref<2x64x32xf32, #tpu.memory_space<vmem>>, vector<1x64x32xf32>
    %341 = vector.shape_cast %340 : vector<1x64x32xf32> to vector<64x32xf32>
    %c1_146 = arith.constant 1 : index
    %c0_147 = arith.constant 0 : index
    %c0_148 = arith.constant 0 : index
    %342 = vector.load %arg12[%c1_146, %c0_147, %c0_148] : memref<2x1x32xf32, #tpu.memory_space<vmem>>, vector<1x1x32xf32>
    %343 = vector.shape_cast %342 : vector<1x1x32xf32> to vector<1x32xf32>
    %cst_149 = arith.constant dense<0.000000e+00> : vector<16x64xf32>
    %344 = tpu.matmul %335, %337, %cst_149 {dimension_numbers = #tpu.dot_dimension_numbers<[1], [0], [0], [1], [0, 0, 1, 1], [], []>} : vector<16x32xf32>, vector<32x64xf32>, vector<16x64xf32> -> vector<16x64xf32>
    %345 = vector.broadcast %339 : vector<1x64xf32> to vector<16x64xf32>
    %346 = arith.addf %344, %345 : vector<16x64xf32>
    %cst_150 = arith.constant 0.000000e+00 : f32
    %347 = vector.broadcast %cst_150 : f32 to vector<16x64xf32>
    %348 = arith.maximumf %346, %347 : vector<16x64xf32>
    %cst_151 = arith.constant dense<0.000000e+00> : vector<16x32xf32>
    %349 = tpu.matmul %348, %341, %cst_151 {dimension_numbers = #tpu.dot_dimension_numbers<[1], [0], [0], [1], [0, 0, 1, 1], [], []>} : vector<16x64xf32>, vector<64x32xf32>, vector<16x32xf32> -> vector<16x32xf32>
    %350 = vector.broadcast %343 : vector<1x32xf32> to vector<16x32xf32>
    %351 = arith.addf %349, %350 : vector<16x32xf32>
    %352 = arith.addf %335, %351 : vector<16x32xf32>
    %c1_152 = arith.constant 1 : index
    %c0_153 = arith.constant 0 : index
    %c0_154 = arith.constant 0 : index
    %353 = vector.load %arg13[%c1_152, %c0_153, %c0_154] : memref<2x2x32xf32, #tpu.memory_space<vmem>>, vector<1x2x32xf32>
    %354 = vector.shape_cast %353 : vector<1x2x32xf32> to vector<2x32xf32>
    %355 = vector.extract_strided_slice %354 {offsets = [0, 0], sizes = [1, 32], strides = [1, 1]} : vector<2x32xf32> to vector<1x32xf32>
    %356 = vector.extract_strided_slice %354 {offsets = [1, 0], sizes = [1, 32], strides = [1, 1]} : vector<2x32xf32> to vector<1x32xf32>
    %cst_155 = arith.constant dense<0.000000e+00> : vector<16xf32>
    %357 = vector.multi_reduction <add>, %352, %cst_155 [1] : vector<16x32xf32> to vector<16xf32>
    %358 = vector.shape_cast %357 : vector<16xf32> to vector<16x1xf32>
    %cst_156 = arith.constant 3.200000e+01 : f32
    %359 = vector.broadcast %cst_156 : f32 to vector<16x1xf32>
    %360 = arith.divf %358, %359 : vector<16x1xf32>
    %361 = vector.broadcast %360 : vector<16x1xf32> to vector<16x32xf32>
    %362 = arith.subf %352, %361 : vector<16x32xf32>
    %363 = arith.mulf %362, %362 : vector<16x32xf32>
    %cst_157 = arith.constant dense<0.000000e+00> : vector<16xf32>
    %364 = vector.multi_reduction <add>, %363, %cst_157 [1] : vector<16x32xf32> to vector<16xf32>
    %365 = vector.shape_cast %364 : vector<16xf32> to vector<16x1xf32>
    %cst_158 = arith.constant 3.200000e+01 : f32
    %366 = vector.broadcast %cst_158 : f32 to vector<16x1xf32>
    %367 = arith.divf %365, %366 : vector<16x1xf32>
    %cst_159 = arith.constant 9.99999974E-6 : f32
    %368 = vector.broadcast %cst_159 : f32 to vector<16x1xf32>
    %369 = arith.addf %367, %368 : vector<16x1xf32>
    %370 = math.rsqrt %369 : vector<16x1xf32>
    %371 = vector.broadcast %360 : vector<16x1xf32> to vector<16x32xf32>
    %372 = arith.subf %352, %371 : vector<16x32xf32>
    %373 = vector.broadcast %370 : vector<16x1xf32> to vector<16x32xf32>
    %374 = arith.mulf %372, %373 : vector<16x32xf32>
    %375 = vector.broadcast %355 : vector<1x32xf32> to vector<16x32xf32>
    %376 = arith.mulf %374, %375 : vector<16x32xf32>
    %377 = vector.broadcast %356 : vector<1x32xf32> to vector<16x32xf32>
    %378 = arith.addf %376, %377 : vector<16x32xf32>
    %c0_160 = arith.constant 0 : index
    %c0_161 = arith.constant 0 : index
    %379 = vector.load %arg1[%c0_160, %c0_161] : memref<16x32xf32, #tpu.memory_space<vmem>>, vector<16x32xf32>
    %c0_162 = arith.constant 0 : index
    %c0_163 = arith.constant 0 : index
    %c0_164 = arith.constant 0 : index
    %380 = vector.load %arg14[%c0_162, %c0_163, %c0_164] : memref<2x32x96xf32, #tpu.memory_space<vmem>>, vector<1x32x96xf32>
    %381 = vector.shape_cast %380 : vector<1x32x96xf32> to vector<32x96xf32>
    %cst_165 = arith.constant dense<0.000000e+00> : vector<16x96xf32>
    %382 = tpu.matmul %379, %381, %cst_165 {dimension_numbers = #tpu.dot_dimension_numbers<[1], [0], [0], [1], [0, 0, 1, 1], [], []>} : vector<16x32xf32>, vector<32x96xf32>, vector<16x96xf32> -> vector<16x96xf32>
    %c0_166 = arith.constant 0 : index
    %c0_167 = arith.constant 0 : index
    %c0_168 = arith.constant 0 : index
    %383 = vector.load %arg15[%c0_166, %c0_167, %c0_168] : memref<2x1x96xf32, #tpu.memory_space<vmem>>, vector<1x1x96xf32>
    %384 = vector.shape_cast %383 : vector<1x1x96xf32> to vector<1x96xf32>
    %385 = vector.broadcast %384 : vector<1x96xf32> to vector<16x96xf32>
    %386 = arith.addf %382, %385 : vector<16x96xf32>
    %387 = vector.extract_strided_slice %386 {offsets = [0, 0], sizes = [16, 32], strides = [1, 1]} : vector<16x96xf32> to vector<16x32xf32>
    %388 = vector.extract_strided_slice %386 {offsets = [0, 32], sizes = [16, 32], strides = [1, 1]} : vector<16x96xf32> to vector<16x32xf32>
    %389 = vector.extract_strided_slice %386 {offsets = [0, 64], sizes = [16, 32], strides = [1, 1]} : vector<16x96xf32> to vector<16x32xf32>
    %c0_169 = arith.constant 0 : index
    %c0_170 = arith.constant 0 : index
    %c0_171 = arith.constant 0 : index
    %390 = vector.load %arg16[%c0_169, %c0_170, %c0_171] : memref<2x32x32xf32, #tpu.memory_space<vmem>>, vector<1x32x32xf32>
    %391 = vector.shape_cast %390 : vector<1x32x32xf32> to vector<32x32xf32>
    %c0_172 = arith.constant 0 : index
    %c0_173 = arith.constant 0 : index
    %c0_174 = arith.constant 0 : index
    %392 = vector.load %arg17[%c0_172, %c0_173, %c0_174] : memref<2x1x32xf32, #tpu.memory_space<vmem>>, vector<1x1x32xf32>
    %393 = vector.shape_cast %392 : vector<1x1x32xf32> to vector<1x32xf32>
    %394 = vector.extract_strided_slice %387 {offsets = [0, 0], sizes = [8, 16], strides = [1, 1]} : vector<16x32xf32> to vector<8x16xf32>
    %395 = vector.extract_strided_slice %388 {offsets = [0, 0], sizes = [8, 16], strides = [1, 1]} : vector<16x32xf32> to vector<8x16xf32>
    %396 = vector.extract_strided_slice %389 {offsets = [0, 0], sizes = [8, 16], strides = [1, 1]} : vector<16x32xf32> to vector<8x16xf32>
    %cst_175 = arith.constant dense<0.000000e+00> : vector<8x8xf32>
    %397 = tpu.matmul %394, %395, %cst_175 {dimension_numbers = #tpu.dot_dimension_numbers<[1], [1], [0], [0], [0, 0, 1, 0], [], []>} : vector<8x16xf32>, vector<8x16xf32>, vector<8x8xf32> -> vector<8x8xf32>
    %cst_176 = arith.constant 2.500000e-01 : f32
    %398 = vector.broadcast %cst_176 : f32 to vector<8x8xf32>
    %399 = arith.mulf %397, %398 : vector<8x8xf32>
    %400 = arith.addf %399, %29 : vector<8x8xf32>
    %cst_177 = arith.constant dense<0xFF800000> : vector<8xf32>
    %401 = vector.multi_reduction <maximumf>, %400, %cst_177 [1] : vector<8x8xf32> to vector<8xf32>
    %402 = vector.shape_cast %401 : vector<8xf32> to vector<8x1xf32>
    %403 = vector.broadcast %402 : vector<8x1xf32> to vector<8x8xf32>
    %404 = arith.subf %400, %403 : vector<8x8xf32>
    %405 = math.exp %404 : vector<8x8xf32>
    %cst_178 = arith.constant dense<0.000000e+00> : vector<8xf32>
    %406 = vector.multi_reduction <add>, %405, %cst_178 [1] : vector<8x8xf32> to vector<8xf32>
    %407 = vector.shape_cast %406 : vector<8xf32> to vector<8x1xf32>
    %408 = vector.broadcast %407 : vector<8x1xf32> to vector<8x8xf32>
    %409 = arith.divf %405, %408 : vector<8x8xf32>
    %cst_179 = arith.constant dense<0.000000e+00> : vector<8x16xf32>
    %410 = tpu.matmul %409, %396, %cst_179 {dimension_numbers = #tpu.dot_dimension_numbers<[1], [0], [0], [1], [0, 0, 1, 1], [], []>} : vector<8x8xf32>, vector<8x16xf32>, vector<8x16xf32> -> vector<8x16xf32>
    %411 = vector.extract_strided_slice %391 {offsets = [0, 0], sizes = [16, 32], strides = [1, 1]} : vector<32x32xf32> to vector<16x32xf32>
    %cst_180 = arith.constant dense<0.000000e+00> : vector<8x32xf32>
    %412 = tpu.matmul %410, %411, %cst_180 {dimension_numbers = #tpu.dot_dimension_numbers<[1], [0], [0], [1], [0, 0, 1, 1], [], []>} : vector<8x16xf32>, vector<16x32xf32>, vector<8x32xf32> -> vector<8x32xf32>
    %413 = vector.extract_strided_slice %387 {offsets = [0, 16], sizes = [8, 16], strides = [1, 1]} : vector<16x32xf32> to vector<8x16xf32>
    %414 = vector.extract_strided_slice %388 {offsets = [0, 16], sizes = [8, 16], strides = [1, 1]} : vector<16x32xf32> to vector<8x16xf32>
    %415 = vector.extract_strided_slice %389 {offsets = [0, 16], sizes = [8, 16], strides = [1, 1]} : vector<16x32xf32> to vector<8x16xf32>
    %cst_181 = arith.constant dense<0.000000e+00> : vector<8x8xf32>
    %416 = tpu.matmul %413, %414, %cst_181 {dimension_numbers = #tpu.dot_dimension_numbers<[1], [1], [0], [0], [0, 0, 1, 0], [], []>} : vector<8x16xf32>, vector<8x16xf32>, vector<8x8xf32> -> vector<8x8xf32>
    %cst_182 = arith.constant 2.500000e-01 : f32
    %417 = vector.broadcast %cst_182 : f32 to vector<8x8xf32>
    %418 = arith.mulf %416, %417 : vector<8x8xf32>
    %419 = arith.addf %418, %29 : vector<8x8xf32>
    %cst_183 = arith.constant dense<0xFF800000> : vector<8xf32>
    %420 = vector.multi_reduction <maximumf>, %419, %cst_183 [1] : vector<8x8xf32> to vector<8xf32>
    %421 = vector.shape_cast %420 : vector<8xf32> to vector<8x1xf32>
    %422 = vector.broadcast %421 : vector<8x1xf32> to vector<8x8xf32>
    %423 = arith.subf %419, %422 : vector<8x8xf32>
    %424 = math.exp %423 : vector<8x8xf32>
    %cst_184 = arith.constant dense<0.000000e+00> : vector<8xf32>
    %425 = vector.multi_reduction <add>, %424, %cst_184 [1] : vector<8x8xf32> to vector<8xf32>
    %426 = vector.shape_cast %425 : vector<8xf32> to vector<8x1xf32>
    %427 = vector.broadcast %426 : vector<8x1xf32> to vector<8x8xf32>
    %428 = arith.divf %424, %427 : vector<8x8xf32>
    %cst_185 = arith.constant dense<0.000000e+00> : vector<8x16xf32>
    %429 = tpu.matmul %428, %415, %cst_185 {dimension_numbers = #tpu.dot_dimension_numbers<[1], [0], [0], [1], [0, 0, 1, 1], [], []>} : vector<8x8xf32>, vector<8x16xf32>, vector<8x16xf32> -> vector<8x16xf32>
    %430 = vector.extract_strided_slice %391 {offsets = [16, 0], sizes = [16, 32], strides = [1, 1]} : vector<32x32xf32> to vector<16x32xf32>
    %cst_186 = arith.constant dense<0.000000e+00> : vector<8x32xf32>
    %431 = tpu.matmul %429, %430, %cst_186 {dimension_numbers = #tpu.dot_dimension_numbers<[1], [0], [0], [1], [0, 0, 1, 1], [], []>} : vector<8x16xf32>, vector<16x32xf32>, vector<8x32xf32> -> vector<8x32xf32>
    %432 = arith.addf %412, %431 : vector<8x32xf32>
    %433 = vector.broadcast %393 : vector<1x32xf32> to vector<8x32xf32>
    %434 = arith.addf %432, %433 : vector<8x32xf32>
    %c0_187 = arith.constant 0 : index
    %c0_188 = arith.constant 0 : index
    %435 = vector.load %arg34[%c0_187, %c0_188] : memref<16x32xf32, #tpu.memory_space<vmem>>, vector<8x32xf32>
    tpu.vector_store %arg34[%c0_187, %c0_188], %434 {strides = array<i32>} : memref<16x32xf32, #tpu.memory_space<vmem>>, vector<8x32xf32>,
    %436 = vector.extract_strided_slice %387 {offsets = [8, 0], sizes = [8, 16], strides = [1, 1]} : vector<16x32xf32> to vector<8x16xf32>
    %437 = vector.extract_strided_slice %388 {offsets = [8, 0], sizes = [8, 16], strides = [1, 1]} : vector<16x32xf32> to vector<8x16xf32>
    %438 = vector.extract_strided_slice %389 {offsets = [8, 0], sizes = [8, 16], strides = [1, 1]} : vector<16x32xf32> to vector<8x16xf32>
    %cst_189 = arith.constant dense<0.000000e+00> : vector<8x8xf32>
    %439 = tpu.matmul %436, %437, %cst_189 {dimension_numbers = #tpu.dot_dimension_numbers<[1], [1], [0], [0], [0, 0, 1, 0], [], []>} : vector<8x16xf32>, vector<8x16xf32>, vector<8x8xf32> -> vector<8x8xf32>
    %cst_190 = arith.constant 2.500000e-01 : f32
    %440 = vector.broadcast %cst_190 : f32 to vector<8x8xf32>
    %441 = arith.mulf %439, %440 : vector<8x8xf32>
    %442 = arith.addf %441, %31 : vector<8x8xf32>
    %cst_191 = arith.constant dense<0xFF800000> : vector<8xf32>
    %443 = vector.multi_reduction <maximumf>, %442, %cst_191 [1] : vector<8x8xf32> to vector<8xf32>
    %444 = vector.shape_cast %443 : vector<8xf32> to vector<8x1xf32>
    %445 = vector.broadcast %444 : vector<8x1xf32> to vector<8x8xf32>
    %446 = arith.subf %442, %445 : vector<8x8xf32>
    %447 = math.exp %446 : vector<8x8xf32>
    %cst_192 = arith.constant dense<0.000000e+00> : vector<8xf32>
    %448 = vector.multi_reduction <add>, %447, %cst_192 [1] : vector<8x8xf32> to vector<8xf32>
    %449 = vector.shape_cast %448 : vector<8xf32> to vector<8x1xf32>
    %450 = vector.broadcast %449 : vector<8x1xf32> to vector<8x8xf32>
    %451 = arith.divf %447, %450 : vector<8x8xf32>
    %cst_193 = arith.constant dense<0.000000e+00> : vector<8x16xf32>
    %452 = tpu.matmul %451, %438, %cst_193 {dimension_numbers = #tpu.dot_dimension_numbers<[1], [0], [0], [1], [0, 0, 1, 1], [], []>} : vector<8x8xf32>, vector<8x16xf32>, vector<8x16xf32> -> vector<8x16xf32>
    %453 = vector.extract_strided_slice %391 {offsets = [0, 0], sizes = [16, 32], strides = [1, 1]} : vector<32x32xf32> to vector<16x32xf32>
    %cst_194 = arith.constant dense<0.000000e+00> : vector<8x32xf32>
    %454 = tpu.matmul %452, %453, %cst_194 {dimension_numbers = #tpu.dot_dimension_numbers<[1], [0], [0], [1], [0, 0, 1, 1], [], []>} : vector<8x16xf32>, vector<16x32xf32>, vector<8x32xf32> -> vector<8x32xf32>
    %455 = vector.extract_strided_slice %387 {offsets = [8, 16], sizes = [8, 16], strides = [1, 1]} : vector<16x32xf32> to vector<8x16xf32>
    %456 = vector.extract_strided_slice %388 {offsets = [8, 16], sizes = [8, 16], strides = [1, 1]} : vector<16x32xf32> to vector<8x16xf32>
    %457 = vector.extract_strided_slice %389 {offsets = [8, 16], sizes = [8, 16], strides = [1, 1]} : vector<16x32xf32> to vector<8x16xf32>
    %cst_195 = arith.constant dense<0.000000e+00> : vector<8x8xf32>
    %458 = tpu.matmul %455, %456, %cst_195 {dimension_numbers = #tpu.dot_dimension_numbers<[1], [1], [0], [0], [0, 0, 1, 0], [], []>} : vector<8x16xf32>, vector<8x16xf32>, vector<8x8xf32> -> vector<8x8xf32>
    %cst_196 = arith.constant 2.500000e-01 : f32
    %459 = vector.broadcast %cst_196 : f32 to vector<8x8xf32>
    %460 = arith.mulf %458, %459 : vector<8x8xf32>
    %461 = arith.addf %460, %31 : vector<8x8xf32>
    %cst_197 = arith.constant dense<0xFF800000> : vector<8xf32>
    %462 = vector.multi_reduction <maximumf>, %461, %cst_197 [1] : vector<8x8xf32> to vector<8xf32>
    %463 = vector.shape_cast %462 : vector<8xf32> to vector<8x1xf32>
    %464 = vector.broadcast %463 : vector<8x1xf32> to vector<8x8xf32>
    %465 = arith.subf %461, %464 : vector<8x8xf32>
    %466 = math.exp %465 : vector<8x8xf32>
    %cst_198 = arith.constant dense<0.000000e+00> : vector<8xf32>
    %467 = vector.multi_reduction <add>, %466, %cst_198 [1] : vector<8x8xf32> to vector<8xf32>
    %468 = vector.shape_cast %467 : vector<8xf32> to vector<8x1xf32>
    %469 = vector.broadcast %468 : vector<8x1xf32> to vector<8x8xf32>
    %470 = arith.divf %466, %469 : vector<8x8xf32>
    %cst_199 = arith.constant dense<0.000000e+00> : vector<8x16xf32>
    %471 = tpu.matmul %470, %457, %cst_199 {dimension_numbers = #tpu.dot_dimension_numbers<[1], [0], [0], [1], [0, 0, 1, 1], [], []>} : vector<8x8xf32>, vector<8x16xf32>, vector<8x16xf32> -> vector<8x16xf32>
    %472 = vector.extract_strided_slice %391 {offsets = [16, 0], sizes = [16, 32], strides = [1, 1]} : vector<32x32xf32> to vector<16x32xf32>
    %cst_200 = arith.constant dense<0.000000e+00> : vector<8x32xf32>
    %473 = tpu.matmul %471, %472, %cst_200 {dimension_numbers = #tpu.dot_dimension_numbers<[1], [0], [0], [1], [0, 0, 1, 1], [], []>} : vector<8x16xf32>, vector<16x32xf32>, vector<8x32xf32> -> vector<8x32xf32>
    %474 = arith.addf %454, %473 : vector<8x32xf32>
    %475 = vector.broadcast %393 : vector<1x32xf32> to vector<8x32xf32>
    %476 = arith.addf %474, %475 : vector<8x32xf32>
    %c8_201 = arith.constant 8 : index
    %c0_202 = arith.constant 0 : index
    %477 = vector.load %arg34[%c8_201, %c0_202] : memref<16x32xf32, #tpu.memory_space<vmem>>, vector<8x32xf32>
    tpu.vector_store %arg34[%c8_201, %c0_202], %476 {strides = array<i32>} : memref<16x32xf32, #tpu.memory_space<vmem>>, vector<8x32xf32>,
    %c0_203 = arith.constant 0 : index
    %c0_204 = arith.constant 0 : index
    %478 = vector.load %arg34[%c0_203, %c0_204] : memref<16x32xf32, #tpu.memory_space<vmem>>, vector<16x32xf32>
    %479 = arith.addf %379, %478 : vector<16x32xf32>
    %c0_205 = arith.constant 0 : index
    %c0_206 = arith.constant 0 : index
    %c0_207 = arith.constant 0 : index
    %480 = vector.load %arg18[%c0_205, %c0_206, %c0_207] : memref<2x2x32xf32, #tpu.memory_space<vmem>>, vector<1x2x32xf32>
    %481 = vector.shape_cast %480 : vector<1x2x32xf32> to vector<2x32xf32>
    %482 = vector.extract_strided_slice %481 {offsets = [0, 0], sizes = [1, 32], strides = [1, 1]} : vector<2x32xf32> to vector<1x32xf32>
    %483 = vector.extract_strided_slice %481 {offsets = [1, 0], sizes = [1, 32], strides = [1, 1]} : vector<2x32xf32> to vector<1x32xf32>
    %cst_208 = arith.constant dense<0.000000e+00> : vector<16xf32>
    %484 = vector.multi_reduction <add>, %479, %cst_208 [1] : vector<16x32xf32> to vector<16xf32>
    %485 = vector.shape_cast %484 : vector<16xf32> to vector<16x1xf32>
    %cst_209 = arith.constant 3.200000e+01 : f32
    %486 = vector.broadcast %cst_209 : f32 to vector<16x1xf32>
    %487 = arith.divf %485, %486 : vector<16x1xf32>
    %488 = vector.broadcast %487 : vector<16x1xf32> to vector<16x32xf32>
    %489 = arith.subf %479, %488 : vector<16x32xf32>
    %490 = arith.mulf %489, %489 : vector<16x32xf32>
    %cst_210 = arith.constant dense<0.000000e+00> : vector<16xf32>
    %491 = vector.multi_reduction <add>, %490, %cst_210 [1] : vector<16x32xf32> to vector<16xf32>
    %492 = vector.shape_cast %491 : vector<16xf32> to vector<16x1xf32>
    %cst_211 = arith.constant 3.200000e+01 : f32
    %493 = vector.broadcast %cst_211 : f32 to vector<16x1xf32>
    %494 = arith.divf %492, %493 : vector<16x1xf32>
    %cst_212 = arith.constant 9.99999974E-6 : f32
    %495 = vector.broadcast %cst_212 : f32 to vector<16x1xf32>
    %496 = arith.addf %494, %495 : vector<16x1xf32>
    %497 = math.rsqrt %496 : vector<16x1xf32>
    %498 = vector.broadcast %487 : vector<16x1xf32> to vector<16x32xf32>
    %499 = arith.subf %479, %498 : vector<16x32xf32>
    %500 = vector.broadcast %497 : vector<16x1xf32> to vector<16x32xf32>
    %501 = arith.mulf %499, %500 : vector<16x32xf32>
    %502 = vector.broadcast %482 : vector<1x32xf32> to vector<16x32xf32>
    %503 = arith.mulf %501, %502 : vector<16x32xf32>
    %504 = vector.broadcast %483 : vector<1x32xf32> to vector<16x32xf32>
    %505 = arith.addf %503, %504 : vector<16x32xf32>
    %c0_213 = arith.constant 0 : index
    %c0_214 = arith.constant 0 : index
    %c0_215 = arith.constant 0 : index
    %506 = vector.load %arg19[%c0_213, %c0_214, %c0_215] : memref<2x32x32xf32, #tpu.memory_space<vmem>>, vector<1x32x32xf32>
    %507 = vector.shape_cast %506 : vector<1x32x32xf32> to vector<32x32xf32>
    %cst_216 = arith.constant dense<0.000000e+00> : vector<16x32xf32>
    %508 = tpu.matmul %505, %507, %cst_216 {dimension_numbers = #tpu.dot_dimension_numbers<[1], [0], [0], [1], [0, 0, 1, 1], [], []>} : vector<16x32xf32>, vector<32x32xf32>, vector<16x32xf32> -> vector<16x32xf32>
    %c0_217 = arith.constant 0 : index
    %c0_218 = arith.constant 0 : index
    %c0_219 = arith.constant 0 : index
    %509 = vector.load %arg20[%c0_217, %c0_218, %c0_219] : memref<2x1x32xf32, #tpu.memory_space<vmem>>, vector<1x1x32xf32>
    %510 = vector.shape_cast %509 : vector<1x1x32xf32> to vector<1x32xf32>
    %511 = vector.broadcast %510 : vector<1x32xf32> to vector<16x32xf32>
    %512 = arith.addf %508, %511 : vector<16x32xf32>
    %c0_220 = arith.constant 0 : index
    %c0_221 = arith.constant 0 : index
    %c0_222 = arith.constant 0 : index
    %513 = vector.load %arg21[%c0_220, %c0_221, %c0_222] : memref<2x32x64xf32, #tpu.memory_space<vmem>>, vector<1x32x64xf32>
    %514 = vector.shape_cast %513 : vector<1x32x64xf32> to vector<32x64xf32>
    %cst_223 = arith.constant dense<0.000000e+00> : vector<16x64xf32>
    %515 = tpu.matmul %378, %514, %cst_223 {dimension_numbers = #tpu.dot_dimension_numbers<[1], [0], [0], [1], [0, 0, 1, 1], [], []>} : vector<16x32xf32>, vector<32x64xf32>, vector<16x64xf32> -> vector<16x64xf32>
    %c0_224 = arith.constant 0 : index
    %c0_225 = arith.constant 0 : index
    %c0_226 = arith.constant 0 : index
    %516 = vector.load %arg22[%c0_224, %c0_225, %c0_226] : memref<2x1x64xf32, #tpu.memory_space<vmem>>, vector<1x1x64xf32>
    %517 = vector.shape_cast %516 : vector<1x1x64xf32> to vector<1x64xf32>
    %518 = vector.broadcast %517 : vector<1x64xf32> to vector<16x64xf32>
    %519 = arith.addf %515, %518 : vector<16x64xf32>
    %520 = vector.extract_strided_slice %519 {offsets = [0, 0], sizes = [16, 32], strides = [1, 1]} : vector<16x64xf32> to vector<16x32xf32>
    %521 = vector.extract_strided_slice %519 {offsets = [0, 32], sizes = [16, 32], strides = [1, 1]} : vector<16x64xf32> to vector<16x32xf32>
    %c0_227 = arith.constant 0 : index
    %c0_228 = arith.constant 0 : index
    %c0_229 = arith.constant 0 : index
    %522 = vector.load %arg23[%c0_227, %c0_228, %c0_229] : memref<2x32x32xf32, #tpu.memory_space<vmem>>, vector<1x32x32xf32>
    %523 = vector.shape_cast %522 : vector<1x32x32xf32> to vector<32x32xf32>
    %c0_230 = arith.constant 0 : index
    %c0_231 = arith.constant 0 : index
    %c0_232 = arith.constant 0 : index
    %524 = vector.load %arg24[%c0_230, %c0_231, %c0_232] : memref<2x1x32xf32, #tpu.memory_space<vmem>>, vector<1x1x32xf32>
    %525 = vector.shape_cast %524 : vector<1x1x32xf32> to vector<1x32xf32>
    %526 = vector.extract_strided_slice %512 {offsets = [0, 0], sizes = [8, 16], strides = [1, 1]} : vector<16x32xf32> to vector<8x16xf32>
    %527 = vector.extract_strided_slice %520 {offsets = [0, 0], sizes = [8, 16], strides = [1, 1]} : vector<16x32xf32> to vector<8x16xf32>
    %528 = vector.extract_strided_slice %521 {offsets = [0, 0], sizes = [8, 16], strides = [1, 1]} : vector<16x32xf32> to vector<8x16xf32>
    %cst_233 = arith.constant dense<0.000000e+00> : vector<8x8xf32>
    %529 = tpu.matmul %526, %527, %cst_233 {dimension_numbers = #tpu.dot_dimension_numbers<[1], [1], [0], [0], [0, 0, 1, 0], [], []>} : vector<8x16xf32>, vector<8x16xf32>, vector<8x8xf32> -> vector<8x8xf32>
    %cst_234 = arith.constant 2.500000e-01 : f32
    %530 = vector.broadcast %cst_234 : f32 to vector<8x8xf32>
    %531 = arith.mulf %529, %530 : vector<8x8xf32>
    %532 = vector.broadcast %6 : vector<1x8xf32> to vector<8x8xf32>
    %533 = arith.addf %531, %532 : vector<8x8xf32>
    %cst_235 = arith.constant dense<0xFF800000> : vector<8xf32>
    %534 = vector.multi_reduction <maximumf>, %533, %cst_235 [1] : vector<8x8xf32> to vector<8xf32>
    %535 = vector.shape_cast %534 : vector<8xf32> to vector<8x1xf32>
    %536 = vector.broadcast %535 : vector<8x1xf32> to vector<8x8xf32>
    %537 = arith.subf %533, %536 : vector<8x8xf32>
    %538 = math.exp %537 : vector<8x8xf32>
    %cst_236 = arith.constant dense<0.000000e+00> : vector<8xf32>
    %539 = vector.multi_reduction <add>, %538, %cst_236 [1] : vector<8x8xf32> to vector<8xf32>
    %540 = vector.shape_cast %539 : vector<8xf32> to vector<8x1xf32>
    %541 = vector.broadcast %540 : vector<8x1xf32> to vector<8x8xf32>
    %542 = arith.divf %538, %541 : vector<8x8xf32>
    %cst_237 = arith.constant dense<0.000000e+00> : vector<8x16xf32>
    %543 = tpu.matmul %542, %528, %cst_237 {dimension_numbers = #tpu.dot_dimension_numbers<[1], [0], [0], [1], [0, 0, 1, 1], [], []>} : vector<8x8xf32>, vector<8x16xf32>, vector<8x16xf32> -> vector<8x16xf32>
    %544 = vector.extract_strided_slice %523 {offsets = [0, 0], sizes = [16, 32], strides = [1, 1]} : vector<32x32xf32> to vector<16x32xf32>
    %cst_238 = arith.constant dense<0.000000e+00> : vector<8x32xf32>
    %545 = tpu.matmul %543, %544, %cst_238 {dimension_numbers = #tpu.dot_dimension_numbers<[1], [0], [0], [1], [0, 0, 1, 1], [], []>} : vector<8x16xf32>, vector<16x32xf32>, vector<8x32xf32> -> vector<8x32xf32>
    %546 = vector.extract_strided_slice %512 {offsets = [0, 16], sizes = [8, 16], strides = [1, 1]} : vector<16x32xf32> to vector<8x16xf32>
    %547 = vector.extract_strided_slice %520 {offsets = [0, 16], sizes = [8, 16], strides = [1, 1]} : vector<16x32xf32> to vector<8x16xf32>
    %548 = vector.extract_strided_slice %521 {offsets = [0, 16], sizes = [8, 16], strides = [1, 1]} : vector<16x32xf32> to vector<8x16xf32>
    %cst_239 = arith.constant dense<0.000000e+00> : vector<8x8xf32>
    %549 = tpu.matmul %546, %547, %cst_239 {dimension_numbers = #tpu.dot_dimension_numbers<[1], [1], [0], [0], [0, 0, 1, 0], [], []>} : vector<8x16xf32>, vector<8x16xf32>, vector<8x8xf32> -> vector<8x8xf32>
    %cst_240 = arith.constant 2.500000e-01 : f32
    %550 = vector.broadcast %cst_240 : f32 to vector<8x8xf32>
    %551 = arith.mulf %549, %550 : vector<8x8xf32>
    %552 = vector.broadcast %6 : vector<1x8xf32> to vector<8x8xf32>
    %553 = arith.addf %551, %552 : vector<8x8xf32>
    %cst_241 = arith.constant dense<0xFF800000> : vector<8xf32>
    %554 = vector.multi_reduction <maximumf>, %553, %cst_241 [1] : vector<8x8xf32> to vector<8xf32>
    %555 = vector.shape_cast %554 : vector<8xf32> to vector<8x1xf32>
    %556 = vector.broadcast %555 : vector<8x1xf32> to vector<8x8xf32>
    %557 = arith.subf %553, %556 : vector<8x8xf32>
    %558 = math.exp %557 : vector<8x8xf32>
    %cst_242 = arith.constant dense<0.000000e+00> : vector<8xf32>
    %559 = vector.multi_reduction <add>, %558, %cst_242 [1] : vector<8x8xf32> to vector<8xf32>
    %560 = vector.shape_cast %559 : vector<8xf32> to vector<8x1xf32>
    %561 = vector.broadcast %560 : vector<8x1xf32> to vector<8x8xf32>
    %562 = arith.divf %558, %561 : vector<8x8xf32>
    %cst_243 = arith.constant dense<0.000000e+00> : vector<8x16xf32>
    %563 = tpu.matmul %562, %548, %cst_243 {dimension_numbers = #tpu.dot_dimension_numbers<[1], [0], [0], [1], [0, 0, 1, 1], [], []>} : vector<8x8xf32>, vector<8x16xf32>, vector<8x16xf32> -> vector<8x16xf32>
    %564 = vector.extract_strided_slice %523 {offsets = [16, 0], sizes = [16, 32], strides = [1, 1]} : vector<32x32xf32> to vector<16x32xf32>
    %cst_244 = arith.constant dense<0.000000e+00> : vector<8x32xf32>
    %565 = tpu.matmul %563, %564, %cst_244 {dimension_numbers = #tpu.dot_dimension_numbers<[1], [0], [0], [1], [0, 0, 1, 1], [], []>} : vector<8x16xf32>, vector<16x32xf32>, vector<8x32xf32> -> vector<8x32xf32>
    %566 = arith.addf %545, %565 : vector<8x32xf32>
    %567 = vector.broadcast %525 : vector<1x32xf32> to vector<8x32xf32>
    %568 = arith.addf %566, %567 : vector<8x32xf32>
    %c0_245 = arith.constant 0 : index
    %c0_246 = arith.constant 0 : index
    %569 = vector.load %arg34[%c0_245, %c0_246] : memref<16x32xf32, #tpu.memory_space<vmem>>, vector<8x32xf32>
    tpu.vector_store %arg34[%c0_245, %c0_246], %568 {strides = array<i32>} : memref<16x32xf32, #tpu.memory_space<vmem>>, vector<8x32xf32>,
    %570 = vector.extract_strided_slice %512 {offsets = [8, 0], sizes = [8, 16], strides = [1, 1]} : vector<16x32xf32> to vector<8x16xf32>
    %571 = vector.extract_strided_slice %520 {offsets = [8, 0], sizes = [8, 16], strides = [1, 1]} : vector<16x32xf32> to vector<8x16xf32>
    %572 = vector.extract_strided_slice %521 {offsets = [8, 0], sizes = [8, 16], strides = [1, 1]} : vector<16x32xf32> to vector<8x16xf32>
    %cst_247 = arith.constant dense<0.000000e+00> : vector<8x8xf32>
    %573 = tpu.matmul %570, %571, %cst_247 {dimension_numbers = #tpu.dot_dimension_numbers<[1], [1], [0], [0], [0, 0, 1, 0], [], []>} : vector<8x16xf32>, vector<8x16xf32>, vector<8x8xf32> -> vector<8x8xf32>
    %cst_248 = arith.constant 2.500000e-01 : f32
    %574 = vector.broadcast %cst_248 : f32 to vector<8x8xf32>
    %575 = arith.mulf %573, %574 : vector<8x8xf32>
    %576 = vector.broadcast %11 : vector<1x8xf32> to vector<8x8xf32>
    %577 = arith.addf %575, %576 : vector<8x8xf32>
    %cst_249 = arith.constant dense<0xFF800000> : vector<8xf32>
    %578 = vector.multi_reduction <maximumf>, %577, %cst_249 [1] : vector<8x8xf32> to vector<8xf32>
    %579 = vector.shape_cast %578 : vector<8xf32> to vector<8x1xf32>
    %580 = vector.broadcast %579 : vector<8x1xf32> to vector<8x8xf32>
    %581 = arith.subf %577, %580 : vector<8x8xf32>
    %582 = math.exp %581 : vector<8x8xf32>
    %cst_250 = arith.constant dense<0.000000e+00> : vector<8xf32>
    %583 = vector.multi_reduction <add>, %582, %cst_250 [1] : vector<8x8xf32> to vector<8xf32>
    %584 = vector.shape_cast %583 : vector<8xf32> to vector<8x1xf32>
    %585 = vector.broadcast %584 : vector<8x1xf32> to vector<8x8xf32>
    %586 = arith.divf %582, %585 : vector<8x8xf32>
    %cst_251 = arith.constant dense<0.000000e+00> : vector<8x16xf32>
    %587 = tpu.matmul %586, %572, %cst_251 {dimension_numbers = #tpu.dot_dimension_numbers<[1], [0], [0], [1], [0, 0, 1, 1], [], []>} : vector<8x8xf32>, vector<8x16xf32>, vector<8x16xf32> -> vector<8x16xf32>
    %588 = vector.extract_strided_slice %523 {offsets = [0, 0], sizes = [16, 32], strides = [1, 1]} : vector<32x32xf32> to vector<16x32xf32>
    %cst_252 = arith.constant dense<0.000000e+00> : vector<8x32xf32>
    %589 = tpu.matmul %587, %588, %cst_252 {dimension_numbers = #tpu.dot_dimension_numbers<[1], [0], [0], [1], [0, 0, 1, 1], [], []>} : vector<8x16xf32>, vector<16x32xf32>, vector<8x32xf32> -> vector<8x32xf32>
    %590 = vector.extract_strided_slice %512 {offsets = [8, 16], sizes = [8, 16], strides = [1, 1]} : vector<16x32xf32> to vector<8x16xf32>
    %591 = vector.extract_strided_slice %520 {offsets = [8, 16], sizes = [8, 16], strides = [1, 1]} : vector<16x32xf32> to vector<8x16xf32>
    %592 = vector.extract_strided_slice %521 {offsets = [8, 16], sizes = [8, 16], strides = [1, 1]} : vector<16x32xf32> to vector<8x16xf32>
    %cst_253 = arith.constant dense<0.000000e+00> : vector<8x8xf32>
    %593 = tpu.matmul %590, %591, %cst_253 {dimension_numbers = #tpu.dot_dimension_numbers<[1], [1], [0], [0], [0, 0, 1, 0], [], []>} : vector<8x16xf32>, vector<8x16xf32>, vector<8x8xf32> -> vector<8x8xf32>
    %cst_254 = arith.constant 2.500000e-01 : f32
    %594 = vector.broadcast %cst_254 : f32 to vector<8x8xf32>
    %595 = arith.mulf %593, %594 : vector<8x8xf32>
    %596 = vector.broadcast %11 : vector<1x8xf32> to vector<8x8xf32>
    %597 = arith.addf %595, %596 : vector<8x8xf32>
    %cst_255 = arith.constant dense<0xFF800000> : vector<8xf32>
    %598 = vector.multi_reduction <maximumf>, %597, %cst_255 [1] : vector<8x8xf32> to vector<8xf32>
    %599 = vector.shape_cast %598 : vector<8xf32> to vector<8x1xf32>
    %600 = vector.broadcast %599 : vector<8x1xf32> to vector<8x8xf32>
    %601 = arith.subf %597, %600 : vector<8x8xf32>
    %602 = math.exp %601 : vector<8x8xf32>
    %cst_256 = arith.constant dense<0.000000e+00> : vector<8xf32>
    %603 = vector.multi_reduction <add>, %602, %cst_256 [1] : vector<8x8xf32> to vector<8xf32>
    %604 = vector.shape_cast %603 : vector<8xf32> to vector<8x1xf32>
    %605 = vector.broadcast %604 : vector<8x1xf32> to vector<8x8xf32>
    %606 = arith.divf %602, %605 : vector<8x8xf32>
    %cst_257 = arith.constant dense<0.000000e+00> : vector<8x16xf32>
    %607 = tpu.matmul %606, %592, %cst_257 {dimension_numbers = #tpu.dot_dimension_numbers<[1], [0], [0], [1], [0, 0, 1, 1], [], []>} : vector<8x8xf32>, vector<8x16xf32>, vector<8x16xf32> -> vector<8x16xf32>
    %608 = vector.extract_strided_slice %523 {offsets = [16, 0], sizes = [16, 32], strides = [1, 1]} : vector<32x32xf32> to vector<16x32xf32>
    %cst_258 = arith.constant dense<0.000000e+00> : vector<8x32xf32>
    %609 = tpu.matmul %607, %608, %cst_258 {dimension_numbers = #tpu.dot_dimension_numbers<[1], [0], [0], [1], [0, 0, 1, 1], [], []>} : vector<8x16xf32>, vector<16x32xf32>, vector<8x32xf32> -> vector<8x32xf32>
    %610 = arith.addf %589, %609 : vector<8x32xf32>
    %611 = vector.broadcast %525 : vector<1x32xf32> to vector<8x32xf32>
    %612 = arith.addf %610, %611 : vector<8x32xf32>
    %c8_259 = arith.constant 8 : index
    %c0_260 = arith.constant 0 : index
    %613 = vector.load %arg34[%c8_259, %c0_260] : memref<16x32xf32, #tpu.memory_space<vmem>>, vector<8x32xf32>
    tpu.vector_store %arg34[%c8_259, %c0_260], %612 {strides = array<i32>} : memref<16x32xf32, #tpu.memory_space<vmem>>, vector<8x32xf32>,
    %c0_261 = arith.constant 0 : index
    %c0_262 = arith.constant 0 : index
    %614 = vector.load %arg34[%c0_261, %c0_262] : memref<16x32xf32, #tpu.memory_space<vmem>>, vector<16x32xf32>
    %615 = arith.addf %505, %614 : vector<16x32xf32>
    %c0_263 = arith.constant 0 : index
    %c0_264 = arith.constant 0 : index
    %c0_265 = arith.constant 0 : index
    %616 = vector.load %arg25[%c0_263, %c0_264, %c0_265] : memref<2x2x32xf32, #tpu.memory_space<vmem>>, vector<1x2x32xf32>
    %617 = vector.shape_cast %616 : vector<1x2x32xf32> to vector<2x32xf32>
    %618 = vector.extract_strided_slice %617 {offsets = [0, 0], sizes = [1, 32], strides = [1, 1]} : vector<2x32xf32> to vector<1x32xf32>
    %619 = vector.extract_strided_slice %617 {offsets = [1, 0], sizes = [1, 32], strides = [1, 1]} : vector<2x32xf32> to vector<1x32xf32>
    %cst_266 = arith.constant dense<0.000000e+00> : vector<16xf32>
    %620 = vector.multi_reduction <add>, %615, %cst_266 [1] : vector<16x32xf32> to vector<16xf32>
    %621 = vector.shape_cast %620 : vector<16xf32> to vector<16x1xf32>
    %cst_267 = arith.constant 3.200000e+01 : f32
    %622 = vector.broadcast %cst_267 : f32 to vector<16x1xf32>
    %623 = arith.divf %621, %622 : vector<16x1xf32>
    %624 = vector.broadcast %623 : vector<16x1xf32> to vector<16x32xf32>
    %625 = arith.subf %615, %624 : vector<16x32xf32>
    %626 = arith.mulf %625, %625 : vector<16x32xf32>
    %cst_268 = arith.constant dense<0.000000e+00> : vector<16xf32>
    %627 = vector.multi_reduction <add>, %626, %cst_268 [1] : vector<16x32xf32> to vector<16xf32>
    %628 = vector.shape_cast %627 : vector<16xf32> to vector<16x1xf32>
    %cst_269 = arith.constant 3.200000e+01 : f32
    %629 = vector.broadcast %cst_269 : f32 to vector<16x1xf32>
    %630 = arith.divf %628, %629 : vector<16x1xf32>
    %cst_270 = arith.constant 9.99999974E-6 : f32
    %631 = vector.broadcast %cst_270 : f32 to vector<16x1xf32>
    %632 = arith.addf %630, %631 : vector<16x1xf32>
    %633 = math.rsqrt %632 : vector<16x1xf32>
    %634 = vector.broadcast %623 : vector<16x1xf32> to vector<16x32xf32>
    %635 = arith.subf %615, %634 : vector<16x32xf32>
    %636 = vector.broadcast %633 : vector<16x1xf32> to vector<16x32xf32>
    %637 = arith.mulf %635, %636 : vector<16x32xf32>
    %638 = vector.broadcast %618 : vector<1x32xf32> to vector<16x32xf32>
    %639 = arith.mulf %637, %638 : vector<16x32xf32>
    %640 = vector.broadcast %619 : vector<1x32xf32> to vector<16x32xf32>
    %641 = arith.addf %639, %640 : vector<16x32xf32>
    %c0_271 = arith.constant 0 : index
    %c0_272 = arith.constant 0 : index
    %c0_273 = arith.constant 0 : index
    %642 = vector.load %arg26[%c0_271, %c0_272, %c0_273] : memref<2x32x64xf32, #tpu.memory_space<vmem>>, vector<1x32x64xf32>
    %643 = vector.shape_cast %642 : vector<1x32x64xf32> to vector<32x64xf32>
    %c0_274 = arith.constant 0 : index
    %c0_275 = arith.constant 0 : index
    %c0_276 = arith.constant 0 : index
    %644 = vector.load %arg27[%c0_274, %c0_275, %c0_276] : memref<2x1x64xf32, #tpu.memory_space<vmem>>, vector<1x1x64xf32>
    %645 = vector.shape_cast %644 : vector<1x1x64xf32> to vector<1x64xf32>
    %c0_277 = arith.constant 0 : index
    %c0_278 = arith.constant 0 : index
    %c0_279 = arith.constant 0 : index
    %646 = vector.load %arg28[%c0_277, %c0_278, %c0_279] : memref<2x64x32xf32, #tpu.memory_space<vmem>>, vector<1x64x32xf32>
    %647 = vector.shape_cast %646 : vector<1x64x32xf32> to vector<64x32xf32>
    %c0_280 = arith.constant 0 : index
    %c0_281 = arith.constant 0 : index
    %c0_282 = arith.constant 0 : index
    %648 = vector.load %arg29[%c0_280, %c0_281, %c0_282] : memref<2x1x32xf32, #tpu.memory_space<vmem>>, vector<1x1x32xf32>
    %649 = vector.shape_cast %648 : vector<1x1x32xf32> to vector<1x32xf32>
    %cst_283 = arith.constant dense<0.000000e+00> : vector<16x64xf32>
    %650 = tpu.matmul %641, %643, %cst_283 {dimension_numbers = #tpu.dot_dimension_numbers<[1], [0], [0], [1], [0, 0, 1, 1], [], []>} : vector<16x32xf32>, vector<32x64xf32>, vector<16x64xf32> -> vector<16x64xf32>
    %651 = vector.broadcast %645 : vector<1x64xf32> to vector<16x64xf32>
    %652 = arith.addf %650, %651 : vector<16x64xf32>
    %cst_284 = arith.constant 0.000000e+00 : f32
    %653 = vector.broadcast %cst_284 : f32 to vector<16x64xf32>
    %654 = arith.maximumf %652, %653 : vector<16x64xf32>
    %cst_285 = arith.constant dense<0.000000e+00> : vector<16x32xf32>
    %655 = tpu.matmul %654, %647, %cst_285 {dimension_numbers = #tpu.dot_dimension_numbers<[1], [0], [0], [1], [0, 0, 1, 1], [], []>} : vector<16x64xf32>, vector<64x32xf32>, vector<16x32xf32> -> vector<16x32xf32>
    %656 = vector.broadcast %649 : vector<1x32xf32> to vector<16x32xf32>
    %657 = arith.addf %655, %656 : vector<16x32xf32>
    %658 = arith.addf %641, %657 : vector<16x32xf32>
    %c0_286 = arith.constant 0 : index
    %c0_287 = arith.constant 0 : index
    %c0_288 = arith.constant 0 : index
    %659 = vector.load %arg30[%c0_286, %c0_287, %c0_288] : memref<2x2x32xf32, #tpu.memory_space<vmem>>, vector<1x2x32xf32>
    %660 = vector.shape_cast %659 : vector<1x2x32xf32> to vector<2x32xf32>
    %661 = vector.extract_strided_slice %660 {offsets = [0, 0], sizes = [1, 32], strides = [1, 1]} : vector<2x32xf32> to vector<1x32xf32>
    %662 = vector.extract_strided_slice %660 {offsets = [1, 0], sizes = [1, 32], strides = [1, 1]} : vector<2x32xf32> to vector<1x32xf32>
    %cst_289 = arith.constant dense<0.000000e+00> : vector<16xf32>
    %663 = vector.multi_reduction <add>, %658, %cst_289 [1] : vector<16x32xf32> to vector<16xf32>
    %664 = vector.shape_cast %663 : vector<16xf32> to vector<16x1xf32>
    %cst_290 = arith.constant 3.200000e+01 : f32
    %665 = vector.broadcast %cst_290 : f32 to vector<16x1xf32>
    %666 = arith.divf %664, %665 : vector<16x1xf32>
    %667 = vector.broadcast %666 : vector<16x1xf32> to vector<16x32xf32>
    %668 = arith.subf %658, %667 : vector<16x32xf32>
    %669 = arith.mulf %668, %668 : vector<16x32xf32>
    %cst_291 = arith.constant dense<0.000000e+00> : vector<16xf32>
    %670 = vector.multi_reduction <add>, %669, %cst_291 [1] : vector<16x32xf32> to vector<16xf32>
    %671 = vector.shape_cast %670 : vector<16xf32> to vector<16x1xf32>
    %cst_292 = arith.constant 3.200000e+01 : f32
    %672 = vector.broadcast %cst_292 : f32 to vector<16x1xf32>
    %673 = arith.divf %671, %672 : vector<16x1xf32>
    %cst_293 = arith.constant 9.99999974E-6 : f32
    %674 = vector.broadcast %cst_293 : f32 to vector<16x1xf32>
    %675 = arith.addf %673, %674 : vector<16x1xf32>
    %676 = math.rsqrt %675 : vector<16x1xf32>
    %677 = vector.broadcast %666 : vector<16x1xf32> to vector<16x32xf32>
    %678 = arith.subf %658, %677 : vector<16x32xf32>
    %679 = vector.broadcast %676 : vector<16x1xf32> to vector<16x32xf32>
    %680 = arith.mulf %678, %679 : vector<16x32xf32>
    %681 = vector.broadcast %661 : vector<1x32xf32> to vector<16x32xf32>
    %682 = arith.mulf %680, %681 : vector<16x32xf32>
    %683 = vector.broadcast %662 : vector<1x32xf32> to vector<16x32xf32>
    %684 = arith.addf %682, %683 : vector<16x32xf32>
    %c1_294 = arith.constant 1 : index
    %c0_295 = arith.constant 0 : index
    %c0_296 = arith.constant 0 : index
    %685 = vector.load %arg14[%c1_294, %c0_295, %c0_296] : memref<2x32x96xf32, #tpu.memory_space<vmem>>, vector<1x32x96xf32>
    %686 = vector.shape_cast %685 : vector<1x32x96xf32> to vector<32x96xf32>
    %cst_297 = arith.constant dense<0.000000e+00> : vector<16x96xf32>
    %687 = tpu.matmul %684, %686, %cst_297 {dimension_numbers = #tpu.dot_dimension_numbers<[1], [0], [0], [1], [0, 0, 1, 1], [], []>} : vector<16x32xf32>, vector<32x96xf32>, vector<16x96xf32> -> vector<16x96xf32>
    %c1_298 = arith.constant 1 : index
    %c0_299 = arith.constant 0 : index
    %c0_300 = arith.constant 0 : index
    %688 = vector.load %arg15[%c1_298, %c0_299, %c0_300] : memref<2x1x96xf32, #tpu.memory_space<vmem>>, vector<1x1x96xf32>
    %689 = vector.shape_cast %688 : vector<1x1x96xf32> to vector<1x96xf32>
    %690 = vector.broadcast %689 : vector<1x96xf32> to vector<16x96xf32>
    %691 = arith.addf %687, %690 : vector<16x96xf32>
    %692 = vector.extract_strided_slice %691 {offsets = [0, 0], sizes = [16, 32], strides = [1, 1]} : vector<16x96xf32> to vector<16x32xf32>
    %693 = vector.extract_strided_slice %691 {offsets = [0, 32], sizes = [16, 32], strides = [1, 1]} : vector<16x96xf32> to vector<16x32xf32>
    %694 = vector.extract_strided_slice %691 {offsets = [0, 64], sizes = [16, 32], strides = [1, 1]} : vector<16x96xf32> to vector<16x32xf32>
    %c1_301 = arith.constant 1 : index
    %c0_302 = arith.constant 0 : index
    %c0_303 = arith.constant 0 : index
    %695 = vector.load %arg16[%c1_301, %c0_302, %c0_303] : memref<2x32x32xf32, #tpu.memory_space<vmem>>, vector<1x32x32xf32>
    %696 = vector.shape_cast %695 : vector<1x32x32xf32> to vector<32x32xf32>
    %c1_304 = arith.constant 1 : index
    %c0_305 = arith.constant 0 : index
    %c0_306 = arith.constant 0 : index
    %697 = vector.load %arg17[%c1_304, %c0_305, %c0_306] : memref<2x1x32xf32, #tpu.memory_space<vmem>>, vector<1x1x32xf32>
    %698 = vector.shape_cast %697 : vector<1x1x32xf32> to vector<1x32xf32>
    %699 = vector.extract_strided_slice %692 {offsets = [0, 0], sizes = [8, 16], strides = [1, 1]} : vector<16x32xf32> to vector<8x16xf32>
    %700 = vector.extract_strided_slice %693 {offsets = [0, 0], sizes = [8, 16], strides = [1, 1]} : vector<16x32xf32> to vector<8x16xf32>
    %701 = vector.extract_strided_slice %694 {offsets = [0, 0], sizes = [8, 16], strides = [1, 1]} : vector<16x32xf32> to vector<8x16xf32>
    %cst_307 = arith.constant dense<0.000000e+00> : vector<8x8xf32>
    %702 = tpu.matmul %699, %700, %cst_307 {dimension_numbers = #tpu.dot_dimension_numbers<[1], [1], [0], [0], [0, 0, 1, 0], [], []>} : vector<8x16xf32>, vector<8x16xf32>, vector<8x8xf32> -> vector<8x8xf32>
    %cst_308 = arith.constant 2.500000e-01 : f32
    %703 = vector.broadcast %cst_308 : f32 to vector<8x8xf32>
    %704 = arith.mulf %702, %703 : vector<8x8xf32>
    %705 = arith.addf %704, %29 : vector<8x8xf32>
    %cst_309 = arith.constant dense<0xFF800000> : vector<8xf32>
    %706 = vector.multi_reduction <maximumf>, %705, %cst_309 [1] : vector<8x8xf32> to vector<8xf32>
    %707 = vector.shape_cast %706 : vector<8xf32> to vector<8x1xf32>
    %708 = vector.broadcast %707 : vector<8x1xf32> to vector<8x8xf32>
    %709 = arith.subf %705, %708 : vector<8x8xf32>
    %710 = math.exp %709 : vector<8x8xf32>
    %cst_310 = arith.constant dense<0.000000e+00> : vector<8xf32>
    %711 = vector.multi_reduction <add>, %710, %cst_310 [1] : vector<8x8xf32> to vector<8xf32>
    %712 = vector.shape_cast %711 : vector<8xf32> to vector<8x1xf32>
    %713 = vector.broadcast %712 : vector<8x1xf32> to vector<8x8xf32>
    %714 = arith.divf %710, %713 : vector<8x8xf32>
    %cst_311 = arith.constant dense<0.000000e+00> : vector<8x16xf32>
    %715 = tpu.matmul %714, %701, %cst_311 {dimension_numbers = #tpu.dot_dimension_numbers<[1], [0], [0], [1], [0, 0, 1, 1], [], []>} : vector<8x8xf32>, vector<8x16xf32>, vector<8x16xf32> -> vector<8x16xf32>
    %716 = vector.extract_strided_slice %696 {offsets = [0, 0], sizes = [16, 32], strides = [1, 1]} : vector<32x32xf32> to vector<16x32xf32>
    %cst_312 = arith.constant dense<0.000000e+00> : vector<8x32xf32>
    %717 = tpu.matmul %715, %716, %cst_312 {dimension_numbers = #tpu.dot_dimension_numbers<[1], [0], [0], [1], [0, 0, 1, 1], [], []>} : vector<8x16xf32>, vector<16x32xf32>, vector<8x32xf32> -> vector<8x32xf32>
    %718 = vector.extract_strided_slice %692 {offsets = [0, 16], sizes = [8, 16], strides = [1, 1]} : vector<16x32xf32> to vector<8x16xf32>
    %719 = vector.extract_strided_slice %693 {offsets = [0, 16], sizes = [8, 16], strides = [1, 1]} : vector<16x32xf32> to vector<8x16xf32>
    %720 = vector.extract_strided_slice %694 {offsets = [0, 16], sizes = [8, 16], strides = [1, 1]} : vector<16x32xf32> to vector<8x16xf32>
    %cst_313 = arith.constant dense<0.000000e+00> : vector<8x8xf32>
    %721 = tpu.matmul %718, %719, %cst_313 {dimension_numbers = #tpu.dot_dimension_numbers<[1], [1], [0], [0], [0, 0, 1, 0], [], []>} : vector<8x16xf32>, vector<8x16xf32>, vector<8x8xf32> -> vector<8x8xf32>
    %cst_314 = arith.constant 2.500000e-01 : f32
    %722 = vector.broadcast %cst_314 : f32 to vector<8x8xf32>
    %723 = arith.mulf %721, %722 : vector<8x8xf32>
    %724 = arith.addf %723, %29 : vector<8x8xf32>
    %cst_315 = arith.constant dense<0xFF800000> : vector<8xf32>
    %725 = vector.multi_reduction <maximumf>, %724, %cst_315 [1] : vector<8x8xf32> to vector<8xf32>
    %726 = vector.shape_cast %725 : vector<8xf32> to vector<8x1xf32>
    %727 = vector.broadcast %726 : vector<8x1xf32> to vector<8x8xf32>
    %728 = arith.subf %724, %727 : vector<8x8xf32>
    %729 = math.exp %728 : vector<8x8xf32>
    %cst_316 = arith.constant dense<0.000000e+00> : vector<8xf32>
    %730 = vector.multi_reduction <add>, %729, %cst_316 [1] : vector<8x8xf32> to vector<8xf32>
    %731 = vector.shape_cast %730 : vector<8xf32> to vector<8x1xf32>
    %732 = vector.broadcast %731 : vector<8x1xf32> to vector<8x8xf32>
    %733 = arith.divf %729, %732 : vector<8x8xf32>
    %cst_317 = arith.constant dense<0.000000e+00> : vector<8x16xf32>
    %734 = tpu.matmul %733, %720, %cst_317 {dimension_numbers = #tpu.dot_dimension_numbers<[1], [0], [0], [1], [0, 0, 1, 1], [], []>} : vector<8x8xf32>, vector<8x16xf32>, vector<8x16xf32> -> vector<8x16xf32>
    %735 = vector.extract_strided_slice %696 {offsets = [16, 0], sizes = [16, 32], strides = [1, 1]} : vector<32x32xf32> to vector<16x32xf32>
    %cst_318 = arith.constant dense<0.000000e+00> : vector<8x32xf32>
    %736 = tpu.matmul %734, %735, %cst_318 {dimension_numbers = #tpu.dot_dimension_numbers<[1], [0], [0], [1], [0, 0, 1, 1], [], []>} : vector<8x16xf32>, vector<16x32xf32>, vector<8x32xf32> -> vector<8x32xf32>
    %737 = arith.addf %717, %736 : vector<8x32xf32>
    %738 = vector.broadcast %698 : vector<1x32xf32> to vector<8x32xf32>
    %739 = arith.addf %737, %738 : vector<8x32xf32>
    %c0_319 = arith.constant 0 : index
    %c0_320 = arith.constant 0 : index
    %740 = vector.load %arg34[%c0_319, %c0_320] : memref<16x32xf32, #tpu.memory_space<vmem>>, vector<8x32xf32>
    tpu.vector_store %arg34[%c0_319, %c0_320], %739 {strides = array<i32>} : memref<16x32xf32, #tpu.memory_space<vmem>>, vector<8x32xf32>,
    %741 = vector.extract_strided_slice %692 {offsets = [8, 0], sizes = [8, 16], strides = [1, 1]} : vector<16x32xf32> to vector<8x16xf32>
    %742 = vector.extract_strided_slice %693 {offsets = [8, 0], sizes = [8, 16], strides = [1, 1]} : vector<16x32xf32> to vector<8x16xf32>
    %743 = vector.extract_strided_slice %694 {offsets = [8, 0], sizes = [8, 16], strides = [1, 1]} : vector<16x32xf32> to vector<8x16xf32>
    %cst_321 = arith.constant dense<0.000000e+00> : vector<8x8xf32>
    %744 = tpu.matmul %741, %742, %cst_321 {dimension_numbers = #tpu.dot_dimension_numbers<[1], [1], [0], [0], [0, 0, 1, 0], [], []>} : vector<8x16xf32>, vector<8x16xf32>, vector<8x8xf32> -> vector<8x8xf32>
    %cst_322 = arith.constant 2.500000e-01 : f32
    %745 = vector.broadcast %cst_322 : f32 to vector<8x8xf32>
    %746 = arith.mulf %744, %745 : vector<8x8xf32>
    %747 = arith.addf %746, %31 : vector<8x8xf32>
    %cst_323 = arith.constant dense<0xFF800000> : vector<8xf32>
    %748 = vector.multi_reduction <maximumf>, %747, %cst_323 [1] : vector<8x8xf32> to vector<8xf32>
    %749 = vector.shape_cast %748 : vector<8xf32> to vector<8x1xf32>
    %750 = vector.broadcast %749 : vector<8x1xf32> to vector<8x8xf32>
    %751 = arith.subf %747, %750 : vector<8x8xf32>
    %752 = math.exp %751 : vector<8x8xf32>
    %cst_324 = arith.constant dense<0.000000e+00> : vector<8xf32>
    %753 = vector.multi_reduction <add>, %752, %cst_324 [1] : vector<8x8xf32> to vector<8xf32>
    %754 = vector.shape_cast %753 : vector<8xf32> to vector<8x1xf32>
    %755 = vector.broadcast %754 : vector<8x1xf32> to vector<8x8xf32>
    %756 = arith.divf %752, %755 : vector<8x8xf32>
    %cst_325 = arith.constant dense<0.000000e+00> : vector<8x16xf32>
    %757 = tpu.matmul %756, %743, %cst_325 {dimension_numbers = #tpu.dot_dimension_numbers<[1], [0], [0], [1], [0, 0, 1, 1], [], []>} : vector<8x8xf32>, vector<8x16xf32>, vector<8x16xf32> -> vector<8x16xf32>
    %758 = vector.extract_strided_slice %696 {offsets = [0, 0], sizes = [16, 32], strides = [1, 1]} : vector<32x32xf32> to vector<16x32xf32>
    %cst_326 = arith.constant dense<0.000000e+00> : vector<8x32xf32>
    %759 = tpu.matmul %757, %758, %cst_326 {dimension_numbers = #tpu.dot_dimension_numbers<[1], [0], [0], [1], [0, 0, 1, 1], [], []>} : vector<8x16xf32>, vector<16x32xf32>, vector<8x32xf32> -> vector<8x32xf32>
    %760 = vector.extract_strided_slice %692 {offsets = [8, 16], sizes = [8, 16], strides = [1, 1]} : vector<16x32xf32> to vector<8x16xf32>
    %761 = vector.extract_strided_slice %693 {offsets = [8, 16], sizes = [8, 16], strides = [1, 1]} : vector<16x32xf32> to vector<8x16xf32>
    %762 = vector.extract_strided_slice %694 {offsets = [8, 16], sizes = [8, 16], strides = [1, 1]} : vector<16x32xf32> to vector<8x16xf32>
    %cst_327 = arith.constant dense<0.000000e+00> : vector<8x8xf32>
    %763 = tpu.matmul %760, %761, %cst_327 {dimension_numbers = #tpu.dot_dimension_numbers<[1], [1], [0], [0], [0, 0, 1, 0], [], []>} : vector<8x16xf32>, vector<8x16xf32>, vector<8x8xf32> -> vector<8x8xf32>
    %cst_328 = arith.constant 2.500000e-01 : f32
    %764 = vector.broadcast %cst_328 : f32 to vector<8x8xf32>
    %765 = arith.mulf %763, %764 : vector<8x8xf32>
    %766 = arith.addf %765, %31 : vector<8x8xf32>
    %cst_329 = arith.constant dense<0xFF800000> : vector<8xf32>
    %767 = vector.multi_reduction <maximumf>, %766, %cst_329 [1] : vector<8x8xf32> to vector<8xf32>
    %768 = vector.shape_cast %767 : vector<8xf32> to vector<8x1xf32>
    %769 = vector.broadcast %768 : vector<8x1xf32> to vector<8x8xf32>
    %770 = arith.subf %766, %769 : vector<8x8xf32>
    %771 = math.exp %770 : vector<8x8xf32>
    %cst_330 = arith.constant dense<0.000000e+00> : vector<8xf32>
    %772 = vector.multi_reduction <add>, %771, %cst_330 [1] : vector<8x8xf32> to vector<8xf32>
    %773 = vector.shape_cast %772 : vector<8xf32> to vector<8x1xf32>
    %774 = vector.broadcast %773 : vector<8x1xf32> to vector<8x8xf32>
    %775 = arith.divf %771, %774 : vector<8x8xf32>
    %cst_331 = arith.constant dense<0.000000e+00> : vector<8x16xf32>
    %776 = tpu.matmul %775, %762, %cst_331 {dimension_numbers = #tpu.dot_dimension_numbers<[1], [0], [0], [1], [0, 0, 1, 1], [], []>} : vector<8x8xf32>, vector<8x16xf32>, vector<8x16xf32> -> vector<8x16xf32>
    %777 = vector.extract_strided_slice %696 {offsets = [16, 0], sizes = [16, 32], strides = [1, 1]} : vector<32x32xf32> to vector<16x32xf32>
    %cst_332 = arith.constant dense<0.000000e+00> : vector<8x32xf32>
    %778 = tpu.matmul %776, %777, %cst_332 {dimension_numbers = #tpu.dot_dimension_numbers<[1], [0], [0], [1], [0, 0, 1, 1], [], []>} : vector<8x16xf32>, vector<16x32xf32>, vector<8x32xf32> -> vector<8x32xf32>
    %779 = arith.addf %759, %778 : vector<8x32xf32>
    %780 = vector.broadcast %698 : vector<1x32xf32> to vector<8x32xf32>
    %781 = arith.addf %779, %780 : vector<8x32xf32>
    %c8_333 = arith.constant 8 : index
    %c0_334 = arith.constant 0 : index
    %782 = vector.load %arg34[%c8_333, %c0_334] : memref<16x32xf32, #tpu.memory_space<vmem>>, vector<8x32xf32>
    tpu.vector_store %arg34[%c8_333, %c0_334], %781 {strides = array<i32>} : memref<16x32xf32, #tpu.memory_space<vmem>>, vector<8x32xf32>,
    %c0_335 = arith.constant 0 : index
    %c0_336 = arith.constant 0 : index
    %783 = vector.load %arg34[%c0_335, %c0_336] : memref<16x32xf32, #tpu.memory_space<vmem>>, vector<16x32xf32>
    %784 = arith.addf %684, %783 : vector<16x32xf32>
    %c1_337 = arith.constant 1 : index
    %c0_338 = arith.constant 0 : index
    %c0_339 = arith.constant 0 : index
    %785 = vector.load %arg18[%c1_337, %c0_338, %c0_339] : memref<2x2x32xf32, #tpu.memory_space<vmem>>, vector<1x2x32xf32>
    %786 = vector.shape_cast %785 : vector<1x2x32xf32> to vector<2x32xf32>
    %787 = vector.extract_strided_slice %786 {offsets = [0, 0], sizes = [1, 32], strides = [1, 1]} : vector<2x32xf32> to vector<1x32xf32>
    %788 = vector.extract_strided_slice %786 {offsets = [1, 0], sizes = [1, 32], strides = [1, 1]} : vector<2x32xf32> to vector<1x32xf32>
    %cst_340 = arith.constant dense<0.000000e+00> : vector<16xf32>
    %789 = vector.multi_reduction <add>, %784, %cst_340 [1] : vector<16x32xf32> to vector<16xf32>
    %790 = vector.shape_cast %789 : vector<16xf32> to vector<16x1xf32>
    %cst_341 = arith.constant 3.200000e+01 : f32
    %791 = vector.broadcast %cst_341 : f32 to vector<16x1xf32>
    %792 = arith.divf %790, %791 : vector<16x1xf32>
    %793 = vector.broadcast %792 : vector<16x1xf32> to vector<16x32xf32>
    %794 = arith.subf %784, %793 : vector<16x32xf32>
    %795 = arith.mulf %794, %794 : vector<16x32xf32>
    %cst_342 = arith.constant dense<0.000000e+00> : vector<16xf32>
    %796 = vector.multi_reduction <add>, %795, %cst_342 [1] : vector<16x32xf32> to vector<16xf32>
    %797 = vector.shape_cast %796 : vector<16xf32> to vector<16x1xf32>
    %cst_343 = arith.constant 3.200000e+01 : f32
    %798 = vector.broadcast %cst_343 : f32 to vector<16x1xf32>
    %799 = arith.divf %797, %798 : vector<16x1xf32>
    %cst_344 = arith.constant 9.99999974E-6 : f32
    %800 = vector.broadcast %cst_344 : f32 to vector<16x1xf32>
    %801 = arith.addf %799, %800 : vector<16x1xf32>
    %802 = math.rsqrt %801 : vector<16x1xf32>
    %803 = vector.broadcast %792 : vector<16x1xf32> to vector<16x32xf32>
    %804 = arith.subf %784, %803 : vector<16x32xf32>
    %805 = vector.broadcast %802 : vector<16x1xf32> to vector<16x32xf32>
    %806 = arith.mulf %804, %805 : vector<16x32xf32>
    %807 = vector.broadcast %787 : vector<1x32xf32> to vector<16x32xf32>
    %808 = arith.mulf %806, %807 : vector<16x32xf32>
    %809 = vector.broadcast %788 : vector<1x32xf32> to vector<16x32xf32>
    %810 = arith.addf %808, %809 : vector<16x32xf32>
    %c1_345 = arith.constant 1 : index
    %c0_346 = arith.constant 0 : index
    %c0_347 = arith.constant 0 : index
    %811 = vector.load %arg19[%c1_345, %c0_346, %c0_347] : memref<2x32x32xf32, #tpu.memory_space<vmem>>, vector<1x32x32xf32>
    %812 = vector.shape_cast %811 : vector<1x32x32xf32> to vector<32x32xf32>
    %cst_348 = arith.constant dense<0.000000e+00> : vector<16x32xf32>
    %813 = tpu.matmul %810, %812, %cst_348 {dimension_numbers = #tpu.dot_dimension_numbers<[1], [0], [0], [1], [0, 0, 1, 1], [], []>} : vector<16x32xf32>, vector<32x32xf32>, vector<16x32xf32> -> vector<16x32xf32>
    %c1_349 = arith.constant 1 : index
    %c0_350 = arith.constant 0 : index
    %c0_351 = arith.constant 0 : index
    %814 = vector.load %arg20[%c1_349, %c0_350, %c0_351] : memref<2x1x32xf32, #tpu.memory_space<vmem>>, vector<1x1x32xf32>
    %815 = vector.shape_cast %814 : vector<1x1x32xf32> to vector<1x32xf32>
    %816 = vector.broadcast %815 : vector<1x32xf32> to vector<16x32xf32>
    %817 = arith.addf %813, %816 : vector<16x32xf32>
    %c1_352 = arith.constant 1 : index
    %c0_353 = arith.constant 0 : index
    %c0_354 = arith.constant 0 : index
    %818 = vector.load %arg21[%c1_352, %c0_353, %c0_354] : memref<2x32x64xf32, #tpu.memory_space<vmem>>, vector<1x32x64xf32>
    %819 = vector.shape_cast %818 : vector<1x32x64xf32> to vector<32x64xf32>
    %cst_355 = arith.constant dense<0.000000e+00> : vector<16x64xf32>
    %820 = tpu.matmul %378, %819, %cst_355 {dimension_numbers = #tpu.dot_dimension_numbers<[1], [0], [0], [1], [0, 0, 1, 1], [], []>} : vector<16x32xf32>, vector<32x64xf32>, vector<16x64xf32> -> vector<16x64xf32>
    %c1_356 = arith.constant 1 : index
    %c0_357 = arith.constant 0 : index
    %c0_358 = arith.constant 0 : index
    %821 = vector.load %arg22[%c1_356, %c0_357, %c0_358] : memref<2x1x64xf32, #tpu.memory_space<vmem>>, vector<1x1x64xf32>
    %822 = vector.shape_cast %821 : vector<1x1x64xf32> to vector<1x64xf32>
    %823 = vector.broadcast %822 : vector<1x64xf32> to vector<16x64xf32>
    %824 = arith.addf %820, %823 : vector<16x64xf32>
    %825 = vector.extract_strided_slice %824 {offsets = [0, 0], sizes = [16, 32], strides = [1, 1]} : vector<16x64xf32> to vector<16x32xf32>
    %826 = vector.extract_strided_slice %824 {offsets = [0, 32], sizes = [16, 32], strides = [1, 1]} : vector<16x64xf32> to vector<16x32xf32>
    %c1_359 = arith.constant 1 : index
    %c0_360 = arith.constant 0 : index
    %c0_361 = arith.constant 0 : index
    %827 = vector.load %arg23[%c1_359, %c0_360, %c0_361] : memref<2x32x32xf32, #tpu.memory_space<vmem>>, vector<1x32x32xf32>
    %828 = vector.shape_cast %827 : vector<1x32x32xf32> to vector<32x32xf32>
    %c1_362 = arith.constant 1 : index
    %c0_363 = arith.constant 0 : index
    %c0_364 = arith.constant 0 : index
    %829 = vector.load %arg24[%c1_362, %c0_363, %c0_364] : memref<2x1x32xf32, #tpu.memory_space<vmem>>, vector<1x1x32xf32>
    %830 = vector.shape_cast %829 : vector<1x1x32xf32> to vector<1x32xf32>
    %831 = vector.extract_strided_slice %817 {offsets = [0, 0], sizes = [8, 16], strides = [1, 1]} : vector<16x32xf32> to vector<8x16xf32>
    %832 = vector.extract_strided_slice %825 {offsets = [0, 0], sizes = [8, 16], strides = [1, 1]} : vector<16x32xf32> to vector<8x16xf32>
    %833 = vector.extract_strided_slice %826 {offsets = [0, 0], sizes = [8, 16], strides = [1, 1]} : vector<16x32xf32> to vector<8x16xf32>
    %cst_365 = arith.constant dense<0.000000e+00> : vector<8x8xf32>
    %834 = tpu.matmul %831, %832, %cst_365 {dimension_numbers = #tpu.dot_dimension_numbers<[1], [1], [0], [0], [0, 0, 1, 0], [], []>} : vector<8x16xf32>, vector<8x16xf32>, vector<8x8xf32> -> vector<8x8xf32>
    %cst_366 = arith.constant 2.500000e-01 : f32
    %835 = vector.broadcast %cst_366 : f32 to vector<8x8xf32>
    %836 = arith.mulf %834, %835 : vector<8x8xf32>
    %837 = vector.broadcast %6 : vector<1x8xf32> to vector<8x8xf32>
    %838 = arith.addf %836, %837 : vector<8x8xf32>
    %cst_367 = arith.constant dense<0xFF800000> : vector<8xf32>
    %839 = vector.multi_reduction <maximumf>, %838, %cst_367 [1] : vector<8x8xf32> to vector<8xf32>
    %840 = vector.shape_cast %839 : vector<8xf32> to vector<8x1xf32>
    %841 = vector.broadcast %840 : vector<8x1xf32> to vector<8x8xf32>
    %842 = arith.subf %838, %841 : vector<8x8xf32>
    %843 = math.exp %842 : vector<8x8xf32>
    %cst_368 = arith.constant dense<0.000000e+00> : vector<8xf32>
    %844 = vector.multi_reduction <add>, %843, %cst_368 [1] : vector<8x8xf32> to vector<8xf32>
    %845 = vector.shape_cast %844 : vector<8xf32> to vector<8x1xf32>
    %846 = vector.broadcast %845 : vector<8x1xf32> to vector<8x8xf32>
    %847 = arith.divf %843, %846 : vector<8x8xf32>
    %cst_369 = arith.constant dense<0.000000e+00> : vector<8x16xf32>
    %848 = tpu.matmul %847, %833, %cst_369 {dimension_numbers = #tpu.dot_dimension_numbers<[1], [0], [0], [1], [0, 0, 1, 1], [], []>} : vector<8x8xf32>, vector<8x16xf32>, vector<8x16xf32> -> vector<8x16xf32>
    %849 = vector.extract_strided_slice %828 {offsets = [0, 0], sizes = [16, 32], strides = [1, 1]} : vector<32x32xf32> to vector<16x32xf32>
    %cst_370 = arith.constant dense<0.000000e+00> : vector<8x32xf32>
    %850 = tpu.matmul %848, %849, %cst_370 {dimension_numbers = #tpu.dot_dimension_numbers<[1], [0], [0], [1], [0, 0, 1, 1], [], []>} : vector<8x16xf32>, vector<16x32xf32>, vector<8x32xf32> -> vector<8x32xf32>
    %851 = vector.extract_strided_slice %817 {offsets = [0, 16], sizes = [8, 16], strides = [1, 1]} : vector<16x32xf32> to vector<8x16xf32>
    %852 = vector.extract_strided_slice %825 {offsets = [0, 16], sizes = [8, 16], strides = [1, 1]} : vector<16x32xf32> to vector<8x16xf32>
    %853 = vector.extract_strided_slice %826 {offsets = [0, 16], sizes = [8, 16], strides = [1, 1]} : vector<16x32xf32> to vector<8x16xf32>
    %cst_371 = arith.constant dense<0.000000e+00> : vector<8x8xf32>
    %854 = tpu.matmul %851, %852, %cst_371 {dimension_numbers = #tpu.dot_dimension_numbers<[1], [1], [0], [0], [0, 0, 1, 0], [], []>} : vector<8x16xf32>, vector<8x16xf32>, vector<8x8xf32> -> vector<8x8xf32>
    %cst_372 = arith.constant 2.500000e-01 : f32
    %855 = vector.broadcast %cst_372 : f32 to vector<8x8xf32>
    %856 = arith.mulf %854, %855 : vector<8x8xf32>
    %857 = vector.broadcast %6 : vector<1x8xf32> to vector<8x8xf32>
    %858 = arith.addf %856, %857 : vector<8x8xf32>
    %cst_373 = arith.constant dense<0xFF800000> : vector<8xf32>
    %859 = vector.multi_reduction <maximumf>, %858, %cst_373 [1] : vector<8x8xf32> to vector<8xf32>
    %860 = vector.shape_cast %859 : vector<8xf32> to vector<8x1xf32>
    %861 = vector.broadcast %860 : vector<8x1xf32> to vector<8x8xf32>
    %862 = arith.subf %858, %861 : vector<8x8xf32>
    %863 = math.exp %862 : vector<8x8xf32>
    %cst_374 = arith.constant dense<0.000000e+00> : vector<8xf32>
    %864 = vector.multi_reduction <add>, %863, %cst_374 [1] : vector<8x8xf32> to vector<8xf32>
    %865 = vector.shape_cast %864 : vector<8xf32> to vector<8x1xf32>
    %866 = vector.broadcast %865 : vector<8x1xf32> to vector<8x8xf32>
    %867 = arith.divf %863, %866 : vector<8x8xf32>
    %cst_375 = arith.constant dense<0.000000e+00> : vector<8x16xf32>
    %868 = tpu.matmul %867, %853, %cst_375 {dimension_numbers = #tpu.dot_dimension_numbers<[1], [0], [0], [1], [0, 0, 1, 1], [], []>} : vector<8x8xf32>, vector<8x16xf32>, vector<8x16xf32> -> vector<8x16xf32>
    %869 = vector.extract_strided_slice %828 {offsets = [16, 0], sizes = [16, 32], strides = [1, 1]} : vector<32x32xf32> to vector<16x32xf32>
    %cst_376 = arith.constant dense<0.000000e+00> : vector<8x32xf32>
    %870 = tpu.matmul %868, %869, %cst_376 {dimension_numbers = #tpu.dot_dimension_numbers<[1], [0], [0], [1], [0, 0, 1, 1], [], []>} : vector<8x16xf32>, vector<16x32xf32>, vector<8x32xf32> -> vector<8x32xf32>
    %871 = arith.addf %850, %870 : vector<8x32xf32>
    %872 = vector.broadcast %830 : vector<1x32xf32> to vector<8x32xf32>
    %873 = arith.addf %871, %872 : vector<8x32xf32>
    %c0_377 = arith.constant 0 : index
    %c0_378 = arith.constant 0 : index
    %874 = vector.load %arg34[%c0_377, %c0_378] : memref<16x32xf32, #tpu.memory_space<vmem>>, vector<8x32xf32>
    tpu.vector_store %arg34[%c0_377, %c0_378], %873 {strides = array<i32>} : memref<16x32xf32, #tpu.memory_space<vmem>>, vector<8x32xf32>,
    %875 = vector.extract_strided_slice %817 {offsets = [8, 0], sizes = [8, 16], strides = [1, 1]} : vector<16x32xf32> to vector<8x16xf32>
    %876 = vector.extract_strided_slice %825 {offsets = [8, 0], sizes = [8, 16], strides = [1, 1]} : vector<16x32xf32> to vector<8x16xf32>
    %877 = vector.extract_strided_slice %826 {offsets = [8, 0], sizes = [8, 16], strides = [1, 1]} : vector<16x32xf32> to vector<8x16xf32>
    %cst_379 = arith.constant dense<0.000000e+00> : vector<8x8xf32>
    %878 = tpu.matmul %875, %876, %cst_379 {dimension_numbers = #tpu.dot_dimension_numbers<[1], [1], [0], [0], [0, 0, 1, 0], [], []>} : vector<8x16xf32>, vector<8x16xf32>, vector<8x8xf32> -> vector<8x8xf32>
    %cst_380 = arith.constant 2.500000e-01 : f32
    %879 = vector.broadcast %cst_380 : f32 to vector<8x8xf32>
    %880 = arith.mulf %878, %879 : vector<8x8xf32>
    %881 = vector.broadcast %11 : vector<1x8xf32> to vector<8x8xf32>
    %882 = arith.addf %880, %881 : vector<8x8xf32>
    %cst_381 = arith.constant dense<0xFF800000> : vector<8xf32>
    %883 = vector.multi_reduction <maximumf>, %882, %cst_381 [1] : vector<8x8xf32> to vector<8xf32>
    %884 = vector.shape_cast %883 : vector<8xf32> to vector<8x1xf32>
    %885 = vector.broadcast %884 : vector<8x1xf32> to vector<8x8xf32>
    %886 = arith.subf %882, %885 : vector<8x8xf32>
    %887 = math.exp %886 : vector<8x8xf32>
    %cst_382 = arith.constant dense<0.000000e+00> : vector<8xf32>
    %888 = vector.multi_reduction <add>, %887, %cst_382 [1] : vector<8x8xf32> to vector<8xf32>
    %889 = vector.shape_cast %888 : vector<8xf32> to vector<8x1xf32>
    %890 = vector.broadcast %889 : vector<8x1xf32> to vector<8x8xf32>
    %891 = arith.divf %887, %890 : vector<8x8xf32>
    %cst_383 = arith.constant dense<0.000000e+00> : vector<8x16xf32>
    %892 = tpu.matmul %891, %877, %cst_383 {dimension_numbers = #tpu.dot_dimension_numbers<[1], [0], [0], [1], [0, 0, 1, 1], [], []>} : vector<8x8xf32>, vector<8x16xf32>, vector<8x16xf32> -> vector<8x16xf32>
    %893 = vector.extract_strided_slice %828 {offsets = [0, 0], sizes = [16, 32], strides = [1, 1]} : vector<32x32xf32> to vector<16x32xf32>
    %cst_384 = arith.constant dense<0.000000e+00> : vector<8x32xf32>
    %894 = tpu.matmul %892, %893, %cst_384 {dimension_numbers = #tpu.dot_dimension_numbers<[1], [0], [0], [1], [0, 0, 1, 1], [], []>} : vector<8x16xf32>, vector<16x32xf32>, vector<8x32xf32> -> vector<8x32xf32>
    %895 = vector.extract_strided_slice %817 {offsets = [8, 16], sizes = [8, 16], strides = [1, 1]} : vector<16x32xf32> to vector<8x16xf32>
    %896 = vector.extract_strided_slice %825 {offsets = [8, 16], sizes = [8, 16], strides = [1, 1]} : vector<16x32xf32> to vector<8x16xf32>
    %897 = vector.extract_strided_slice %826 {offsets = [8, 16], sizes = [8, 16], strides = [1, 1]} : vector<16x32xf32> to vector<8x16xf32>
    %cst_385 = arith.constant dense<0.000000e+00> : vector<8x8xf32>
    %898 = tpu.matmul %895, %896, %cst_385 {dimension_numbers = #tpu.dot_dimension_numbers<[1], [1], [0], [0], [0, 0, 1, 0], [], []>} : vector<8x16xf32>, vector<8x16xf32>, vector<8x8xf32> -> vector<8x8xf32>
    %cst_386 = arith.constant 2.500000e-01 : f32
    %899 = vector.broadcast %cst_386 : f32 to vector<8x8xf32>
    %900 = arith.mulf %898, %899 : vector<8x8xf32>
    %901 = vector.broadcast %11 : vector<1x8xf32> to vector<8x8xf32>
    %902 = arith.addf %900, %901 : vector<8x8xf32>
    %cst_387 = arith.constant dense<0xFF800000> : vector<8xf32>
    %903 = vector.multi_reduction <maximumf>, %902, %cst_387 [1] : vector<8x8xf32> to vector<8xf32>
    %904 = vector.shape_cast %903 : vector<8xf32> to vector<8x1xf32>
    %905 = vector.broadcast %904 : vector<8x1xf32> to vector<8x8xf32>
    %906 = arith.subf %902, %905 : vector<8x8xf32>
    %907 = math.exp %906 : vector<8x8xf32>
    %cst_388 = arith.constant dense<0.000000e+00> : vector<8xf32>
    %908 = vector.multi_reduction <add>, %907, %cst_388 [1] : vector<8x8xf32> to vector<8xf32>
    %909 = vector.shape_cast %908 : vector<8xf32> to vector<8x1xf32>
    %910 = vector.broadcast %909 : vector<8x1xf32> to vector<8x8xf32>
    %911 = arith.divf %907, %910 : vector<8x8xf32>
    %cst_389 = arith.constant dense<0.000000e+00> : vector<8x16xf32>
    %912 = tpu.matmul %911, %897, %cst_389 {dimension_numbers = #tpu.dot_dimension_numbers<[1], [0], [0], [1], [0, 0, 1, 1], [], []>} : vector<8x8xf32>, vector<8x16xf32>, vector<8x16xf32> -> vector<8x16xf32>
    %913 = vector.extract_strided_slice %828 {offsets = [16, 0], sizes = [16, 32], strides = [1, 1]} : vector<32x32xf32> to vector<16x32xf32>
    %cst_390 = arith.constant dense<0.000000e+00> : vector<8x32xf32>
    %914 = tpu.matmul %912, %913, %cst_390 {dimension_numbers = #tpu.dot_dimension_numbers<[1], [0], [0], [1], [0, 0, 1, 1], [], []>} : vector<8x16xf32>, vector<16x32xf32>, vector<8x32xf32> -> vector<8x32xf32>
    %915 = arith.addf %894, %914 : vector<8x32xf32>
    %916 = vector.broadcast %830 : vector<1x32xf32> to vector<8x32xf32>
    %917 = arith.addf %915, %916 : vector<8x32xf32>
    %c8_391 = arith.constant 8 : index
    %c0_392 = arith.constant 0 : index
    %918 = vector.load %arg34[%c8_391, %c0_392] : memref<16x32xf32, #tpu.memory_space<vmem>>, vector<8x32xf32>
    tpu.vector_store %arg34[%c8_391, %c0_392], %917 {strides = array<i32>} : memref<16x32xf32, #tpu.memory_space<vmem>>, vector<8x32xf32>,
    %c0_393 = arith.constant 0 : index
    %c0_394 = arith.constant 0 : index
    %919 = vector.load %arg34[%c0_393, %c0_394] : memref<16x32xf32, #tpu.memory_space<vmem>>, vector<16x32xf32>
    %920 = arith.addf %810, %919 : vector<16x32xf32>
    %c1_395 = arith.constant 1 : index
    %c0_396 = arith.constant 0 : index
    %c0_397 = arith.constant 0 : index
    %921 = vector.load %arg25[%c1_395, %c0_396, %c0_397] : memref<2x2x32xf32, #tpu.memory_space<vmem>>, vector<1x2x32xf32>
    %922 = vector.shape_cast %921 : vector<1x2x32xf32> to vector<2x32xf32>
    %923 = vector.extract_strided_slice %922 {offsets = [0, 0], sizes = [1, 32], strides = [1, 1]} : vector<2x32xf32> to vector<1x32xf32>
    %924 = vector.extract_strided_slice %922 {offsets = [1, 0], sizes = [1, 32], strides = [1, 1]} : vector<2x32xf32> to vector<1x32xf32>
    %cst_398 = arith.constant dense<0.000000e+00> : vector<16xf32>
    %925 = vector.multi_reduction <add>, %920, %cst_398 [1] : vector<16x32xf32> to vector<16xf32>
    %926 = vector.shape_cast %925 : vector<16xf32> to vector<16x1xf32>
    %cst_399 = arith.constant 3.200000e+01 : f32
    %927 = vector.broadcast %cst_399 : f32 to vector<16x1xf32>
    %928 = arith.divf %926, %927 : vector<16x1xf32>
    %929 = vector.broadcast %928 : vector<16x1xf32> to vector<16x32xf32>
    %930 = arith.subf %920, %929 : vector<16x32xf32>
    %931 = arith.mulf %930, %930 : vector<16x32xf32>
    %cst_400 = arith.constant dense<0.000000e+00> : vector<16xf32>
    %932 = vector.multi_reduction <add>, %931, %cst_400 [1] : vector<16x32xf32> to vector<16xf32>
    %933 = vector.shape_cast %932 : vector<16xf32> to vector<16x1xf32>
    %cst_401 = arith.constant 3.200000e+01 : f32
    %934 = vector.broadcast %cst_401 : f32 to vector<16x1xf32>
    %935 = arith.divf %933, %934 : vector<16x1xf32>
    %cst_402 = arith.constant 9.99999974E-6 : f32
    %936 = vector.broadcast %cst_402 : f32 to vector<16x1xf32>
    %937 = arith.addf %935, %936 : vector<16x1xf32>
    %938 = math.rsqrt %937 : vector<16x1xf32>
    %939 = vector.broadcast %928 : vector<16x1xf32> to vector<16x32xf32>
    %940 = arith.subf %920, %939 : vector<16x32xf32>
    %941 = vector.broadcast %938 : vector<16x1xf32> to vector<16x32xf32>
    %942 = arith.mulf %940, %941 : vector<16x32xf32>
    %943 = vector.broadcast %923 : vector<1x32xf32> to vector<16x32xf32>
    %944 = arith.mulf %942, %943 : vector<16x32xf32>
    %945 = vector.broadcast %924 : vector<1x32xf32> to vector<16x32xf32>
    %946 = arith.addf %944, %945 : vector<16x32xf32>
    %c1_403 = arith.constant 1 : index
    %c0_404 = arith.constant 0 : index
    %c0_405 = arith.constant 0 : index
    %947 = vector.load %arg26[%c1_403, %c0_404, %c0_405] : memref<2x32x64xf32, #tpu.memory_space<vmem>>, vector<1x32x64xf32>
    %948 = vector.shape_cast %947 : vector<1x32x64xf32> to vector<32x64xf32>
    %c1_406 = arith.constant 1 : index
    %c0_407 = arith.constant 0 : index
    %c0_408 = arith.constant 0 : index
    %949 = vector.load %arg27[%c1_406, %c0_407, %c0_408] : memref<2x1x64xf32, #tpu.memory_space<vmem>>, vector<1x1x64xf32>
    %950 = vector.shape_cast %949 : vector<1x1x64xf32> to vector<1x64xf32>
    %c1_409 = arith.constant 1 : index
    %c0_410 = arith.constant 0 : index
    %c0_411 = arith.constant 0 : index
    %951 = vector.load %arg28[%c1_409, %c0_410, %c0_411] : memref<2x64x32xf32, #tpu.memory_space<vmem>>, vector<1x64x32xf32>
    %952 = vector.shape_cast %951 : vector<1x64x32xf32> to vector<64x32xf32>
    %c1_412 = arith.constant 1 : index
    %c0_413 = arith.constant 0 : index
    %c0_414 = arith.constant 0 : index
    %953 = vector.load %arg29[%c1_412, %c0_413, %c0_414] : memref<2x1x32xf32, #tpu.memory_space<vmem>>, vector<1x1x32xf32>
    %954 = vector.shape_cast %953 : vector<1x1x32xf32> to vector<1x32xf32>
    %cst_415 = arith.constant dense<0.000000e+00> : vector<16x64xf32>
    %955 = tpu.matmul %946, %948, %cst_415 {dimension_numbers = #tpu.dot_dimension_numbers<[1], [0], [0], [1], [0, 0, 1, 1], [], []>} : vector<16x32xf32>, vector<32x64xf32>, vector<16x64xf32> -> vector<16x64xf32>
    %956 = vector.broadcast %950 : vector<1x64xf32> to vector<16x64xf32>
    %957 = arith.addf %955, %956 : vector<16x64xf32>
    %cst_416 = arith.constant 0.000000e+00 : f32
    %958 = vector.broadcast %cst_416 : f32 to vector<16x64xf32>
    %959 = arith.maximumf %957, %958 : vector<16x64xf32>
    %cst_417 = arith.constant dense<0.000000e+00> : vector<16x32xf32>
    %960 = tpu.matmul %959, %952, %cst_417 {dimension_numbers = #tpu.dot_dimension_numbers<[1], [0], [0], [1], [0, 0, 1, 1], [], []>} : vector<16x64xf32>, vector<64x32xf32>, vector<16x32xf32> -> vector<16x32xf32>
    %961 = vector.broadcast %954 : vector<1x32xf32> to vector<16x32xf32>
    %962 = arith.addf %960, %961 : vector<16x32xf32>
    %963 = arith.addf %946, %962 : vector<16x32xf32>
    %c1_418 = arith.constant 1 : index
    %c0_419 = arith.constant 0 : index
    %c0_420 = arith.constant 0 : index
    %964 = vector.load %arg30[%c1_418, %c0_419, %c0_420] : memref<2x2x32xf32, #tpu.memory_space<vmem>>, vector<1x2x32xf32>
    %965 = vector.shape_cast %964 : vector<1x2x32xf32> to vector<2x32xf32>
    %966 = vector.extract_strided_slice %965 {offsets = [0, 0], sizes = [1, 32], strides = [1, 1]} : vector<2x32xf32> to vector<1x32xf32>
    %967 = vector.extract_strided_slice %965 {offsets = [1, 0], sizes = [1, 32], strides = [1, 1]} : vector<2x32xf32> to vector<1x32xf32>
    %cst_421 = arith.constant dense<0.000000e+00> : vector<16xf32>
    %968 = vector.multi_reduction <add>, %963, %cst_421 [1] : vector<16x32xf32> to vector<16xf32>
    %969 = vector.shape_cast %968 : vector<16xf32> to vector<16x1xf32>
    %cst_422 = arith.constant 3.200000e+01 : f32
    %970 = vector.broadcast %cst_422 : f32 to vector<16x1xf32>
    %971 = arith.divf %969, %970 : vector<16x1xf32>
    %972 = vector.broadcast %971 : vector<16x1xf32> to vector<16x32xf32>
    %973 = arith.subf %963, %972 : vector<16x32xf32>
    %974 = arith.mulf %973, %973 : vector<16x32xf32>
    %cst_423 = arith.constant dense<0.000000e+00> : vector<16xf32>
    %975 = vector.multi_reduction <add>, %974, %cst_423 [1] : vector<16x32xf32> to vector<16xf32>
    %976 = vector.shape_cast %975 : vector<16xf32> to vector<16x1xf32>
    %cst_424 = arith.constant 3.200000e+01 : f32
    %977 = vector.broadcast %cst_424 : f32 to vector<16x1xf32>
    %978 = arith.divf %976, %977 : vector<16x1xf32>
    %cst_425 = arith.constant 9.99999974E-6 : f32
    %979 = vector.broadcast %cst_425 : f32 to vector<16x1xf32>
    %980 = arith.addf %978, %979 : vector<16x1xf32>
    %981 = math.rsqrt %980 : vector<16x1xf32>
    %982 = vector.broadcast %971 : vector<16x1xf32> to vector<16x32xf32>
    %983 = arith.subf %963, %982 : vector<16x32xf32>
    %984 = vector.broadcast %981 : vector<16x1xf32> to vector<16x32xf32>
    %985 = arith.mulf %983, %984 : vector<16x32xf32>
    %986 = vector.broadcast %966 : vector<1x32xf32> to vector<16x32xf32>
    %987 = arith.mulf %985, %986 : vector<16x32xf32>
    %988 = vector.broadcast %967 : vector<1x32xf32> to vector<16x32xf32>
    %989 = arith.addf %987, %988 : vector<16x32xf32>
    %c0_426 = arith.constant 0 : index
    %c0_427 = arith.constant 0 : index
    %990 = vector.load %arg31[%c0_426, %c0_427] : memref<32x128xf32, #tpu.memory_space<vmem>>, vector<32x128xf32>
    %cst_428 = arith.constant dense<0.000000e+00> : vector<16x128xf32>
    %991 = tpu.matmul %989, %990, %cst_428 {dimension_numbers = #tpu.dot_dimension_numbers<[1], [0], [0], [1], [0, 0, 1, 1], [], []>} : vector<16x32xf32>, vector<32x128xf32>, vector<16x128xf32> -> vector<16x128xf32>
    %c0_429 = arith.constant 0 : index
    %c0_430 = arith.constant 0 : index
    %992 = vector.load %arg32[%c0_429, %c0_430] : memref<1x128xf32, #tpu.memory_space<vmem>>, vector<1x128xf32>
    %993 = vector.broadcast %992 : vector<1x128xf32> to vector<16x128xf32>
    %994 = arith.addf %991, %993 : vector<16x128xf32>
    %c0_431 = arith.constant 0 : index
    %c0_432 = arith.constant 0 : index
    %995 = vector.load %arg33[%c0_431, %c0_432] : memref<16x128xf32, #tpu.memory_space<vmem>>, vector<16x128xf32>
    tpu.vector_store %arg33[%c0_431, %c0_432], %994 {strides = array<i32>} : memref<16x128xf32, #tpu.memory_space<vmem>>, vector<16x128xf32>,
    return
  }
}

</mosaic_0001>

<llo_original>
// kernel: transformer_forward.1
$region0: #{transformer_forward.1}
  #allocation0 [shape = 'u32[]', space=smem, size = 0x4, offset = 0x4, fixed_abs, tag = 'smem constant byte address 0x4 - core index']
  #allocation1 [shape = 'u32[72,128]{1,0:T(1,128)}', space=vmem, size = 0x9000, scoped, tag = 'internal scratch']
  #allocation2 [shape = 'f32[16,32]{1,0:T(8,128)}', space=vmem, size = 0x2000, scoped, tag = 'scratch operand']
  %s0 = inlined_call_operand.smem [shape: u32[34], index: -1, kind: input, shape index: {}]
  %s1 = sld [smem:[%s0]]
  %s2 = scalar_lea.smem %s0, 1
  %s3 = sld [smem:[%s2]]
  %s4 = scalar_lea.smem %s0, 2
  %s5 = sld [smem:[%s4]]
  %s6 = scalar_lea.smem %s0, 3
  %s7 = sld [smem:[%s6]]
  %s8 = scalar_lea.smem %s0, 4
  %s9 = sld [smem:[%s8]]
  %s10 = scalar_lea.smem %s0, 5
  %s11 = sld [smem:[%s10]]
  %s12 = scalar_lea.smem %s0, 6
  %s13 = sld [smem:[%s12]]
  %s14 = scalar_lea.smem %s0, 7
  %s15 = sld [smem:[%s14]]
  %s16 = scalar_lea.smem %s0, 8
  %s17 = sld [smem:[%s16]]
  %s18 = scalar_lea.smem %s0, 9
  %s19 = sld [smem:[%s18]]
  %s20 = scalar_lea.smem %s0, 10
  %s21 = sld [smem:[%s20]]
  %s22 = scalar_lea.smem %s0, 11
  %s23 = sld [smem:[%s22]]
  %s24 = scalar_lea.smem %s0, 12
  %s25 = sld [smem:[%s24]]
  %s26 = scalar_lea.smem %s0, 13
  %s27 = sld [smem:[%s26]]
  %s28 = scalar_lea.smem %s0, 14
  %s29 = sld [smem:[%s28]]
  %s30 = scalar_lea.smem %s0, 15
  %s31 = sld [smem:[%s30]]
  %s32 = scalar_lea.smem %s0, 16
  %s33 = sld [smem:[%s32]]
  %s34 = scalar_lea.smem %s0, 17
  %s35 = sld [smem:[%s34]]
  %s36 = scalar_lea.smem %s0, 18
  %s37 = sld [smem:[%s36]]
  %s38 = scalar_lea.smem %s0, 19
  %s39 = sld [smem:[%s38]]
  %s40 = scalar_lea.smem %s0, 20
  %s41 = sld [smem:[%s40]]
  %s42 = scalar_lea.smem %s0, 21
  %s43 = sld [smem:[%s42]]
  %s44 = scalar_lea.smem %s0, 22
  %s45 = sld [smem:[%s44]]
  %s46 = scalar_lea.smem %s0, 23
  %s47 = sld [smem:[%s46]]
  %s48 = scalar_lea.smem %s0, 24
  %s49 = sld [smem:[%s48]]
  %s50 = scalar_lea.smem %s0, 25
  %s51 = sld [smem:[%s50]]
  %s52 = scalar_lea.smem %s0, 26
  %s53 = sld [smem:[%s52]]
  %s54 = scalar_lea.smem %s0, 27
  %s55 = sld [smem:[%s54]]
  %s56 = scalar_lea.smem %s0, 28
  %s57 = sld [smem:[%s56]]
  %s58 = scalar_lea.smem %s0, 29
  %s59 = sld [smem:[%s58]]
  %s60 = scalar_lea.smem %s0, 30
  %s61 = sld [smem:[%s60]]
  %s62 = scalar_lea.smem %s0, 31
  %s63 = sld [smem:[%s62]]
  %s64 = scalar_lea.smem %s0, 32
  %s65 = sld [smem:[%s64]]
  %s66 = scalar_lea.smem %s0, 33
  %s67 = sld [smem:[%s66]]
  %s68 = sld [smem:[#allocation0]]
  $region142: #{transformer_forward.1} parent=0
    _
  %s70 = ssub.s32 1, %s68
  %s71 = scalar_select 0, %s70, %s68
  $region1: #{transformer_forward.1} parent=0
    #allocation3 [shape = 'u8[8192]{0}', space=vmem, size = 0x2000, scoped, tag = 'output window, operand 0, single buffered']
    #allocation4 [shape = 's32[1]{0}', space=sflag, size = 0x4, scoped, tag = 'scoped memory for transformer_forward.1']
    %72 = vsyncpa [#allocation4], 0
    // Predicated region
    $region2: #{transformer_forward.1} parent=1 // pred_check
      _
    $region3: #{transformer_forward.1} parent=1 // pred_check_branch
      %74 = sbr.rel (0) target = $region5
    $region4: #{transformer_forward.1} parent=1 // pred_region
      _
    $region5: #{transformer_forward.1} parent=1 // pred_fallthru
      _
    // Predicated region
    $region6: #{transformer_forward.1} parent=1 // pred_check
      _
    $region7: #{transformer_forward.1} parent=1 // pred_check_branch
      %76 = sbr.rel (0) target = $region9
    $region8: #{transformer_forward.1} parent=1 // pred_region
      _
    $region9: #{transformer_forward.1} parent=1 // pred_fallthru
      _
    // Predicated region
    $region10: #{transformer_forward.1} parent=1 // pred_check
      _
    $region11: #{transformer_forward.1} parent=1 // pred_check_branch
      %78 = sbr.rel (0) target = $region13
    $region12: #{transformer_forward.1} parent=1 // pred_region
      _
    $region13: #{transformer_forward.1} parent=1 // pred_fallthru
      _
    // Predicated region
    $region14: #{transformer_forward.1} parent=1 // pred_check
      _
    $region15: #{transformer_forward.1} parent=1 // pred_check_branch
      %80 = sbr.rel (0) target = $region17
    $region16: #{transformer_forward.1} parent=1 // pred_region
      _
    $region17: #{transformer_forward.1} parent=1 // pred_fallthru
      _
    // Predicated region
    $region18: #{transformer_forward.1} parent=1 // pred_check
      _
    $region19: #{transformer_forward.1} parent=1 // pred_check_branch
      %82 = sbr.rel (0) target = $region21
    $region20: #{transformer_forward.1} parent=1 // pred_region
      _
    $region21: #{transformer_forward.1} parent=1 // pred_fallthru
      _
    // Predicated region
    $region22: #{transformer_forward.1} parent=1 // pred_check
      _
    $region23: #{transformer_forward.1} parent=1 // pred_check_branch
      %84 = sbr.rel (0) target = $region25
    $region24: #{transformer_forward.1} parent=1 // pred_region
      _
    $region25: #{transformer_forward.1} parent=1 // pred_fallthru
      _
    // Predicated region
    $region26: #{transformer_forward.1} parent=1 // pred_check
      _
    $region27: #{transformer_forward.1} parent=1 // pred_check_branch
      %86 = sbr.rel (0) target = $region29
    $region28: #{transformer_forward.1} parent=1 // pred_region
      _
    $region29: #{transformer_forward.1} parent=1 // pred_fallthru
      _
    // Predicated region
    $region30: #{transformer_forward.1} parent=1 // pred_check
      _
    $region31: #{transformer_forward.1} parent=1 // pred_check_branch
      %88 = sbr.rel (0) target = $region33
    $region32: #{transformer_forward.1} parent=1 // pred_region
      _
    $region33: #{transformer_forward.1} parent=1 // pred_fallthru
      _
    // Predicated region
    $region34: #{transformer_forward.1} parent=1 // pred_check
      _
    $region35: #{transformer_forward.1} parent=1 // pred_check_branch
      %90 = sbr.rel (0) target = $region37
    $region36: #{transformer_forward.1} parent=1 // pred_region
      _
    $region37: #{transformer_forward.1} parent=1 // pred_fallthru
      _
    // Predicated region
    $region38: #{transformer_forward.1} parent=1 // pred_check
      _
    $region39: #{transformer_forward.1} parent=1 // pred_check_branch
      %92 = sbr.rel (0) target = $region41
    $region40: #{transformer_forward.1} parent=1 // pred_region
      _
    $region41: #{transformer_forward.1} parent=1 // pred_fallthru
      _
    // Predicated region
    $region42: #{transformer_forward.1} parent=1 // pred_check
      _
    $region43: #{transformer_forward.1} parent=1 // pred_check_branch
      %94 = sbr.rel (0) target = $region45
    $region44: #{transformer_forward.1} parent=1 // pred_region
      _
    $region45: #{transformer_forward.1} parent=1 // pred_fallthru
      _
    // Predicated region
    $region46: #{transformer_forward.1} parent=1 // pred_check
      _
    $region47: #{transformer_forward.1} parent=1 // pred_check_branch
      %96 = sbr.rel (0) target = $region49
    $region48: #{transformer_forward.1} parent=1 // pred_region
      _
    $region49: #{transformer_forward.1} parent=1 // pred_fallthru
      _
    // Predicated region
    $region50: #{transformer_forward.1} parent=1 // pred_check
      _
    $region51: #{transformer_forward.1} parent=1 // pred_check_branch
      %98 = sbr.rel (0) target = $region53
    $region52: #{transformer_forward.1} parent=1 // pred_region
      _
    $region53: #{transformer_forward.1} parent=1 // pred_fallthru
      _
    // Predicated region
    $region54: #{transformer_forward.1} parent=1 // pred_check
      _
    $region55: #{transformer_forward.1} parent=1 // pred_check_branch
      %100 = sbr.rel (0) target = $region57
    $region56: #{transformer_forward.1} parent=1 // pred_region
      _
    $region57: #{transformer_forward.1} parent=1 // pred_fallthru
      _
    // Predicated region
    $region58: #{transformer_forward.1} parent=1 // pred_check
      _
    $region59: #{transformer_forward.1} parent=1 // pred_check_branch
      %102 = sbr.rel (0) target = $region61
    $region60: #{transformer_forward.1} parent=1 // pred_region
      _
    $region61: #{transformer_forward.1} parent=1 // pred_fallthru
      _
    // Predicated region
    $region62: #{transformer_forward.1} parent=1 // pred_check
      _
    $region63: #{transformer_forward.1} parent=1 // pred_check_branch
      %104 = sbr.rel (0) target = $region65
    $region64: #{transformer_forward.1} parent=1 // pred_region
      _
    $region65: #{transformer_forward.1} parent=1 // pred_fallthru
      _
    // Predicated region
    $region66: #{transformer_forward.1} parent=1 // pred_check
      _
    $region67: #{transformer_forward.1} parent=1 // pred_check_branch
      %106 = sbr.rel (0) target = $region69
    $region68: #{transformer_forward.1} parent=1 // pred_region
      _
    $region69: #{transformer_forward.1} parent=1 // pred_fallthru
      _
    // Predicated region
    $region70: #{transformer_forward.1} parent=1 // pred_check
      _
    $region71: #{transformer_forward.1} parent=1 // pred_check_branch
      %108 = sbr.rel (0) target = $region73
    $region72: #{transformer_forward.1} parent=1 // pred_region
      _
    $region73: #{transformer_forward.1} parent=1 // pred_fallthru
      _
    // Predicated region
    $region74: #{transformer_forward.1} parent=1 // pred_check
      _
    $region75: #{transformer_forward.1} parent=1 // pred_check_branch
      %110 = sbr.rel (0) target = $region77
    $region76: #{transformer_forward.1} parent=1 // pred_region
      _
    $region77: #{transformer_forward.1} parent=1 // pred_fallthru
      _
    // Predicated region
    $region78: #{transformer_forward.1} parent=1 // pred_check
      _
    $region79: #{transformer_forward.1} parent=1 // pred_check_branch
      %112 = sbr.rel (0) target = $region81
    $region80: #{transformer_forward.1} parent=1 // pred_region
      _
    $region81: #{transformer_forward.1} parent=1 // pred_fallthru
      _
    // Predicated region
    $region82: #{transformer_forward.1} parent=1 // pred_check
      _
    $region83: #{transformer_forward.1} parent=1 // pred_check_branch
      %114 = sbr.rel (0) target = $region85
    $region84: #{transformer_forward.1} parent=1 // pred_region
      _
    $region85: #{transformer_forward.1} parent=1 // pred_fallthru
      _
    // Predicated region
    $region86: #{transformer_forward.1} parent=1 // pred_check
      _
    $region87: #{transformer_forward.1} parent=1 // pred_check_branch
      %116 = sbr.rel (0) target = $region89
    $region88: #{transformer_forward.1} parent=1 // pred_region
      _
    $region89: #{transformer_forward.1} parent=1 // pred_fallthru
      _
    // Predicated region
    $region90: #{transformer_forward.1} parent=1 // pred_check
      _
    $region91: #{transformer_forward.1} parent=1 // pred_check_branch
      %118 = sbr.rel (0) target = $region93
    $region92: #{transformer_forward.1} parent=1 // pred_region
      _
    $region93: #{transformer_forward.1} parent=1 // pred_fallthru
      _
    // Predicated region
    $region94: #{transformer_forward.1} parent=1 // pred_check
      _
    $region95: #{transformer_forward.1} parent=1 // pred_check_branch
      %120 = sbr.rel (0) target = $region97
    $region96: #{transformer_forward.1} parent=1 // pred_region
      _
    $region97: #{transformer_forward.1} parent=1 // pred_fallthru
      _
    // Predicated region
    $region98: #{transformer_forward.1} parent=1 // pred_check
      _
    $region99: #{transformer_forward.1} parent=1 // pred_check_branch
      %122 = sbr.rel (0) target = $region101
    $region100: #{transformer_forward.1} parent=1 // pred_region
      _
    $region101: #{transformer_forward.1} parent=1 // pred_fallthru
      _
    // Predicated region
    $region102: #{transformer_forward.1} parent=1 // pred_check
      _
    $region103: #{transformer_forward.1} parent=1 // pred_check_branch
      %124 = sbr.rel (0) target = $region105
    $region104: #{transformer_forward.1} parent=1 // pred_region
      _
    $region105: #{transformer_forward.1} parent=1 // pred_fallthru
      _
    // Predicated region
    $region106: #{transformer_forward.1} parent=1 // pred_check
      _
    $region107: #{transformer_forward.1} parent=1 // pred_check_branch
      %126 = sbr.rel (0) target = $region109
    $region108: #{transformer_forward.1} parent=1 // pred_region
      _
    $region109: #{transformer_forward.1} parent=1 // pred_fallthru
      _
    // Predicated region
    $region110: #{transformer_forward.1} parent=1 // pred_check
      _
    $region111: #{transformer_forward.1} parent=1 // pred_check_branch
      %128 = sbr.rel (0) target = $region113
    $region112: #{transformer_forward.1} parent=1 // pred_region
      _
    $region113: #{transformer_forward.1} parent=1 // pred_fallthru
      _
    // Predicated region
    $region114: #{transformer_forward.1} parent=1 // pred_check
      _
    $region115: #{transformer_forward.1} parent=1 // pred_check_branch
      %130 = sbr.rel (0) target = $region117
    $region116: #{transformer_forward.1} parent=1 // pred_region
      _
    $region117: #{transformer_forward.1} parent=1 // pred_fallthru
      _
    // Predicated region
    $region118: #{transformer_forward.1} parent=1 // pred_check
      _
    $region119: #{transformer_forward.1} parent=1 // pred_check_branch
      %132 = sbr.rel (0) target = $region121
    $region120: #{transformer_forward.1} parent=1 // pred_region
      _
    $region121: #{transformer_forward.1} parent=1 // pred_fallthru
      _
    // Predicated region
    $region122: #{transformer_forward.1} parent=1 // pred_check
      _
    $region123: #{transformer_forward.1} parent=1 // pred_check_branch
      %134 = sbr.rel (0) target = $region125
    $region124: #{transformer_forward.1} parent=1 // pred_region
      _
    $region125: #{transformer_forward.1} parent=1 // pred_fallthru
      _
    // Predicated region
    $region126: #{transformer_forward.1} parent=1 // pred_check
      _
    $region127: #{transformer_forward.1} parent=1 // pred_check_branch
      %136 = sbr.rel (0) target = $region129
    $region128: #{transformer_forward.1} parent=1 // pred_region
      _
    $region129: #{transformer_forward.1} parent=1 // pred_fallthru
      _
    // Predicated region
    $region130: #{transformer_forward.1} parent=1 // pred_check
      _
    $region131: #{transformer_forward.1} parent=1 // pred_check_branch
      %138 = sbr.rel (0) target = $region133
    $region132: #{transformer_forward.1} parent=1 // pred_region
      _
    $region133: #{transformer_forward.1} parent=1 // pred_fallthru
      _
    %v139 = vld [vmem:[%s5] sm:$0x3]
    %v140 = vld [vmem:[%s7] sm:$0x3]
    %v141 = vsub.f32 1.0, %v139
    %v142 = vmul.f32 %v141, -1e+09
    %v143 = vsub.f32 1.0, %v140
    %v144 = vmul.f32 %v143, -1e+09
    %v145 = vlaneseq
    %v146 = vshrl.u32 %v145, 7
    %v147 = vlaneseq
    %v148 = vand.u32 %v147, 127
    %vm149 = vcmp.le.s32.totalorder %v148, %v146
    %v150 = vsel %vm149, 0.0, -1e+09
    %v151 = vperm.slane %v144, 0
    %v152 = vmin.f32 %v151, %v150
    %v153 = vperm.slane %v144, 1
    %v154 = vmin.f32 %v153, %v150
    %v155 = vld [vmem:[%s1] sm:$0xff]
    %v156 = vld [vmem:[%s1 + $0x8] sm:$0xff]
    %v157 = vld [vmem:[%s9] sm:$0xff]
    %v158 = vld [vmem:[%s9 + $0x8] sm:$0xff]
    %v159 = vld [vmem:[%s9 + $0x10] sm:$0xff]
    %v160 = vld [vmem:[%s9 + $0x18] sm:$0xff]
    %v161 = vld [vmem:[%s11] sm:$0x1]
    %v163 = vperm.slane %v161, 0
    %vm165 = vcmask 261120
    %v167 = vsel %vm165, %v155, 0
    %v170 = vsel %vm165, %v156, 0
    %172 = vmatpush.msra.mxu0 0.0
    %173 = vmatpush.msra.mxu0 0.0
    %174 = vmatpush.msra.mxu0 0.0
    %175 = vmatpush.msra.mxu0 0.0
    %176 = vmatpush.msra.mxu0 0.0
    %177 = vmatpush.msra.mxu0 0.0
    %178 = vmatpush.msra.mxu0 0.0
    %179 = vmatpush.msra.mxu0 0.0
    %180 = vmatpush.msra.mxu0 0.0
    %181 = vmatpush.msra.mxu0 0.0
    %182 = vmatpush.msra.mxu0 0.0
    %183 = vmatpush.msra.mxu0 0.0
    %184 = vmatpush.msra.mxu0 %v160
    %185 = vmatpush.msra.mxu0 %v159
    %186 = vmatpush.msra.mxu0 %v158
    %187 = vmatpush.msra.mxu0 %v157
    %188 = vmatmul.f32.gmra.mxu0 %v167
    %v189 = vpop.f32.mrf.mxu0
    %v190 = vadd.f32 %v163, %v189
    %191 = vmatmul.f32.gmra.mxu0 %v170
    %v192 = vpop.f32.mrf.mxu0
    %v193 = vadd.f32 %v163, %v192
    %194 = vdwg.mxu0
    %v195 = vld [vmem:[%s13] sm:$0xff]
    %v196 = vld [vmem:[%s13 + $0x8] sm:$0xff]
    %v197 = vld [vmem:[%s13 + $0x10] sm:$0xff]
    %v198 = vld [vmem:[%s13 + $0x18] sm:$0xff]
    %v199 = vld [vmem:[%s15] sm:$0x1]
    %201 = vrot.lane.b32.xlu0 %v190, 96
    %v202 = vpop.permute.xlu0 %201
    %vm203 = vcmask 130048
    %v204 = vsel %vm203, %v190, 0
    %v206 = vsel %vm203, %v202, 0
    %208 = vmatpush.xpose.msra.mxu0 0.0
    %209 = vmatpush.xpose.msra.mxu0 0.0
    %210 = vmatpush.xpose.msra.mxu0 0.0
    %211 = vmatpush.xpose.msra.mxu0 0.0
    %212 = vmatpush.xpose.msra.mxu0 0.0
    %213 = vmatpush.xpose.msra.mxu0 0.0
    %214 = vmatpush.xpose.msra.mxu0 0.0
    %215 = vmatpush.xpose.msra.mxu0 0.0
    %216 = vmatpush.xpose.msra.mxu0 0.0
    %217 = vmatpush.xpose.msra.mxu0 0.0
    %218 = vmatpush.xpose.msra.mxu0 0.0
    %219 = vmatpush.xpose.msra.mxu0 0.0
    %220 = vmatpush.xpose.msra.mxu0 0.0
    %221 = vmatpush.xpose.msra.mxu0 0.0
    %222 = vmatpush.xpose.msra.mxu0 0.0
    %223 = vmatpush.xpose.msra.mxu0 %v206
    %224 = vmatmul.f32.gmra.mxu0 %v204
    %v225 = vpop.f32.mrf.mxu0
    %v226 = vadd.f32 0.0, %v225
    %227 = vdwg.mxu0
    %v228 = vmul.f32 %v226, 0.25
    %v229 = vperm.slane %v142, 0
    %v230 = vadd.f32 %v228, %v229
    %vm231 = vcmask 64512
    %v232 = vsel %vm231, %v230, -inf
    %233 = vmax.xlane.f32.xlu0 %v232
    %v234 = vpop.xlane.xlu0 %233
    %v235 = vsub.f32 %v230, %v234
    %v236 = vmul.f32 %v235, 1.442695
    %v237 = vpow.pop %v236
    %v238 = vsel %vm231, %v237, 0.0
    %239 = vadd.xlane.f32.xlu0 %v238
    %v240 = vpop.xlane.xlu0 %239
    %v241 = vrcp.pop %v240
    %v242 = vmul.f32 %v240, %v241
    %v243 = vsub.f32 1.0, %v242
    %v244 = vmul.f32 %v241, %v243
    %v245 = vadd.f32 %v241, %v244
    %vm246 = vweird.f32 %v240
    %vm247 = vweird.f32 %v241
    %vm248 = vmor %vm246, %vm247
    %v249 = vsel %vm248, %v241, %v245
    %v250 = vand.u32 2147483647, %v240
    %vm251 = vcmp.eq.f32.partialorder %v250, 8.507059e+37
    %v252 = vand.u32 %v240, 2147483648
    %v253 = vor.u32 1.1754944e-38, %v252
    %v254 = vsel %vm251, %v253, %v249
    %v255 = vmul.f32 %v237, %v254
    %256 = vrot.lane.b32.xlu0 %v190, 64
    %v257 = vpop.permute.xlu0 %256
    %v260 = vsel %vm231, %v255, 0
    %262 = vmatpush.msra.mxu0 0.0
    %263 = vmatpush.msra.mxu0 0.0
    %264 = vmatpush.msra.mxu0 0.0
    %265 = vmatpush.msra.mxu0 0.0
    %266 = vmatpush.msra.mxu0 0.0
    %267 = vmatpush.msra.mxu0 0.0
    %268 = vmatpush.msra.mxu0 0.0
    %269 = vmatpush.msra.mxu0 0.0
    %270 = vmatpush.msra.mxu0 0.0
    %271 = vmatpush.msra.mxu0 0.0
    %272 = vmatpush.msra.mxu0 0.0
    %273 = vmatpush.msra.mxu0 0.0
    %274 = vmatpush.msra.mxu0 0.0
    %275 = vmatpush.msra.mxu0 0.0
    %276 = vmatpush.msra.mxu0 0.0
    %277 = vmatpush.msra.mxu0 %v257
    %278 = vmatmul.f32.gmra.mxu0 %v260
    %v279 = vpop.f32.mrf.mxu0
    %v280 = vadd.f32 0.0, %v279
    %281 = vdwg.mxu0
    %282 = vrot.lane.b32.xlu0 %v190, 112
    %v283 = vpop.permute.xlu0 %282
    %284 = vrot.lane.b32.xlu0 %v190, 80
    %v285 = vpop.permute.xlu0 %284
    %v286 = vsel %vm203, %v283, 0
    %v288 = vsel %vm203, %v285, 0
    %290 = vmatpush.xpose.msra.mxu0 0.0
    %291 = vmatpush.xpose.msra.mxu0 0.0
    %292 = vmatpush.xpose.msra.mxu0 0.0
    %293 = vmatpush.xpose.msra.mxu0 0.0
    %294 = vmatpush.xpose.msra.mxu0 0.0
    %295 = vmatpush.xpose.msra.mxu0 0.0
    %296 = vmatpush.xpose.msra.mxu0 0.0
    %297 = vmatpush.xpose.msra.mxu0 0.0
    %298 = vmatpush.xpose.msra.mxu0 0.0
    %299 = vmatpush.xpose.msra.mxu0 0.0
    %300 = vmatpush.xpose.msra.mxu0 0.0
    %301 = vmatpush.xpose.msra.mxu0 0.0
    %302 = vmatpush.xpose.msra.mxu0 0.0
    %303 = vmatpush.xpose.msra.mxu0 0.0
    %304 = vmatpush.xpose.msra.mxu0 0.0
    %305 = vmatpush.xpose.msra.mxu0 %v288
    %306 = vmatmul.f32.gmra.mxu0 %v286
    %v307 = vpop.f32.mrf.mxu0
    %v308 = vadd.f32 0.0, %v307
    %309 = vdwg.mxu0
    %v310 = vmul.f32 %v308, 0.25
    %v311 = vadd.f32 %v310, %v229
    %v312 = vsel %vm231, %v311, -inf
    %313 = vmax.xlane.f32.xlu0 %v312
    %v314 = vpop.xlane.xlu0 %313
    %v315 = vsub.f32 %v311, %v314
    %v316 = vmul.f32 %v315, 1.442695
    %v317 = vpow.pop %v316
    %v318 = vsel %vm231, %v317, 0.0
    %319 = vadd.xlane.f32.xlu0 %v318
    %v320 = vpop.xlane.xlu0 %319
    %v321 = vrcp.pop %v320
    %v322 = vmul.f32 %v320, %v321
    %v323 = vsub.f32 1.0, %v322
    %v324 = vmul.f32 %v321, %v323
    %v325 = vadd.f32 %v321, %v324
    %vm326 = vweird.f32 %v320
    %vm327 = vweird.f32 %v321
    %vm328 = vmor %vm326, %vm327
    %v329 = vsel %vm328, %v321, %v325
    %v330 = vand.u32 2147483647, %v320
    %vm331 = vcmp.eq.f32.partialorder %v330, 8.507059e+37
    %v332 = vand.u32 %v320, 2147483648
    %v333 = vor.u32 1.1754944e-38, %v332
    %v334 = vsel %vm331, %v333, %v329
    %v335 = vmul.f32 %v317, %v334
    %336 = vrot.lane.b32.xlu0 %v190, 48
    %v337 = vpop.permute.xlu0 %336
    %v340 = vsel %vm231, %v335, 0
    %342 = vmatpush.msra.mxu0 0.0
    %343 = vmatpush.msra.mxu0 0.0
    %344 = vmatpush.msra.mxu0 0.0
    %345 = vmatpush.msra.mxu0 0.0
    %346 = vmatpush.msra.mxu0 0.0
    %347 = vmatpush.msra.mxu0 0.0
    %348 = vmatpush.msra.mxu0 0.0
    %349 = vmatpush.msra.mxu0 0.0
    %350 = vmatpush.msra.mxu0 0.0
    %351 = vmatpush.msra.mxu0 0.0
    %352 = vmatpush.msra.mxu0 0.0
    %353 = vmatpush.msra.mxu0 0.0
    %354 = vmatpush.msra.mxu0 0.0
    %355 = vmatpush.msra.mxu0 0.0
    %356 = vmatpush.msra.mxu0 0.0
    %357 = vmatpush.msra.mxu0 %v337
    %358 = vmatmul.f32.gmra.mxu0 %v340
    %v359 = vpop.f32.mrf.mxu0
    %v360 = vadd.f32 0.0, %v359
    %361 = vdwg.mxu0
    %v363 = vsel %vm203, %v360, 0
    %365 = vmatpush.msra.mxu0 0.0
    %366 = vmatpush.msra.mxu0 0.0
    %367 = vmatpush.msra.mxu0 0.0
    %368 = vmatpush.msra.mxu0 0.0
    %369 = vmatpush.msra.mxu0 0.0
    %370 = vmatpush.msra.mxu0 0.0
    %371 = vmatpush.msra.mxu0 0.0
    %372 = vmatpush.msra.mxu0 0.0
    %373 = vmatpush.msra.mxu0 0.0
    %374 = vmatpush.msra.mxu0 0.0
    %375 = vmatpush.msra.mxu0 0.0
    %376 = vmatpush.msra.mxu0 0.0
    %377 = vmatpush.msra.mxu0 0.0
    %378 = vmatpush.msra.mxu0 0.0
    %379 = vmatpush.msra.mxu0 %v198
    %380 = vmatpush.msra.mxu0 %v197
    %381 = vmatmul.f32.gmra.mxu0 %v363
    %v382 = vpop.f32.mrf.mxu0
    %v383 = vadd.f32 0.0, %v382
    %384 = vdwg.mxu0
    %v386 = vsel %vm203, %v280, 0
    %388 = vmatpush.msra.mxu0 0.0
    %389 = vmatpush.msra.mxu0 0.0
    %390 = vmatpush.msra.mxu0 0.0
    %391 = vmatpush.msra.mxu0 0.0
    %392 = vmatpush.msra.mxu0 0.0
    %393 = vmatpush.msra.mxu0 0.0
    %394 = vmatpush.msra.mxu0 0.0
    %395 = vmatpush.msra.mxu0 0.0
    %396 = vmatpush.msra.mxu0 0.0
    %397 = vmatpush.msra.mxu0 0.0
    %398 = vmatpush.msra.mxu0 0.0
    %399 = vmatpush.msra.mxu0 0.0
    %400 = vmatpush.msra.mxu0 0.0
    %401 = vmatpush.msra.mxu0 0.0
    %402 = vmatpush.msra.mxu0 %v196
    %403 = vmatpush.msra.mxu0 %v195
    %404 = vmatmul.f32.gmra.mxu0 %v386
    %v405 = vpop.f32.mrf.mxu0
    %v406 = vadd.f32 %v383, %v405
    %407 = vdwg.mxu0
    %v409 = vperm.slane %v199, 0
    %v411 = vadd.f32 %v406, %v409
    %412 = vst.msk [vmem:[#allocation2] sm:$0xff] %vm165, %v411
    %414 = vrot.lane.b32.xlu0 %v193, 96
    %v415 = vpop.permute.xlu0 %414
    %v416 = vsel %vm203, %v193, 0
    %v418 = vsel %vm203, %v415, 0
    %420 = vmatpush.xpose.msra.mxu0 0.0
    %421 = vmatpush.xpose.msra.mxu0 0.0
    %422 = vmatpush.xpose.msra.mxu0 0.0
    %423 = vmatpush.xpose.msra.mxu0 0.0
    %424 = vmatpush.xpose.msra.mxu0 0.0
    %425 = vmatpush.xpose.msra.mxu0 0.0
    %426 = vmatpush.xpose.msra.mxu0 0.0
    %427 = vmatpush.xpose.msra.mxu0 0.0
    %428 = vmatpush.xpose.msra.mxu0 0.0
    %429 = vmatpush.xpose.msra.mxu0 0.0
    %430 = vmatpush.xpose.msra.mxu0 0.0
    %431 = vmatpush.xpose.msra.mxu0 0.0
    %432 = vmatpush.xpose.msra.mxu0 0.0
    %433 = vmatpush.xpose.msra.mxu0 0.0
    %434 = vmatpush.xpose.msra.mxu0 0.0
    %435 = vmatpush.xpose.msra.mxu0 %v418
    %436 = vmatmul.f32.gmra.mxu0 %v416
    %v437 = vpop.f32.mrf.mxu0
    %v438 = vadd.f32 0.0, %v437
    %439 = vdwg.mxu0
    %v440 = vmul.f32 %v438, 0.25
    %v441 = vperm.slane %v142, 1
    %v442 = vadd.f32 %v440, %v441
    %v443 = vsel %vm231, %v442, -inf
    %444 = vmax.xlane.f32.xlu0 %v443
    %v445 = vpop.xlane.xlu0 %444
    %v446 = vsub.f32 %v442, %v445
    %v447 = vmul.f32 %v446, 1.442695
    %v448 = vpow.pop %v447
    %v449 = vsel %vm231, %v448, 0.0
    %450 = vadd.xlane.f32.xlu0 %v449
    %v451 = vpop.xlane.xlu0 %450
    %v452 = vrcp.pop %v451
    %v453 = vmul.f32 %v451, %v452
    %v454 = vsub.f32 1.0, %v453
    %v455 = vmul.f32 %v452, %v454
    %v456 = vadd.f32 %v452, %v455
    %vm457 = vweird.f32 %v451
    %vm458 = vweird.f32 %v452
    %vm459 = vmor %vm457, %vm458
    %v460 = vsel %vm459, %v452, %v456
    %v461 = vand.u32 2147483647, %v451
    %vm462 = vcmp.eq.f32.partialorder %v461, 8.507059e+37
    %v463 = vand.u32 %v451, 2147483648
    %v464 = vor.u32 1.1754944e-38, %v463
    %v465 = vsel %vm462, %v464, %v460
    %v466 = vmul.f32 %v448, %v465
    %467 = vrot.lane.b32.xlu0 %v193, 64
    %v468 = vpop.permute.xlu0 %467
    %v471 = vsel %vm231, %v466, 0
    %473 = vmatpush.msra.mxu0 0.0
    %474 = vmatpush.msra.mxu0 0.0
    %475 = vmatpush.msra.mxu0 0.0
    %476 = vmatpush.msra.mxu0 0.0
    %477 = vmatpush.msra.mxu0 0.0
    %478 = vmatpush.msra.mxu0 0.0
    %479 = vmatpush.msra.mxu0 0.0
    %480 = vmatpush.msra.mxu0 0.0
    %481 = vmatpush.msra.mxu0 0.0
    %482 = vmatpush.msra.mxu0 0.0
    %483 = vmatpush.msra.mxu0 0.0
    %484 = vmatpush.msra.mxu0 0.0
    %485 = vmatpush.msra.mxu0 0.0
    %486 = vmatpush.msra.mxu0 0.0
    %487 = vmatpush.msra.mxu0 0.0
    %488 = vmatpush.msra.mxu0 %v468
    %489 = vmatmul.f32.gmra.mxu0 %v471
    %v490 = vpop.f32.mrf.mxu0
    %v491 = vadd.f32 0.0, %v490
    %492 = vdwg.mxu0
    %493 = vrot.lane.b32.xlu0 %v193, 112
    %v494 = vpop.permute.xlu0 %493
    %495 = vrot.lane.b32.xlu0 %v193, 80
    %v496 = vpop.permute.xlu0 %495
    %v497 = vsel %vm203, %v494, 0
    %v499 = vsel %vm203, %v496, 0
    %501 = vmatpush.xpose.msra.mxu0 0.0
    %502 = vmatpush.xpose.msra.mxu0 0.0
    %503 = vmatpush.xpose.msra.mxu0 0.0
    %504 = vmatpush.xpose.msra.mxu0 0.0
    %505 = vmatpush.xpose.msra.mxu0 0.0
    %506 = vmatpush.xpose.msra.mxu0 0.0
    %507 = vmatpush.xpose.msra.mxu0 0.0
    %508 = vmatpush.xpose.msra.mxu0 0.0
    %509 = vmatpush.xpose.msra.mxu0 0.0
    %510 = vmatpush.xpose.msra.mxu0 0.0
    %511 = vmatpush.xpose.msra.mxu0 0.0
    %512 = vmatpush.xpose.msra.mxu0 0.0
    %513 = vmatpush.xpose.msra.mxu0 0.0
    %514 = vmatpush.xpose.msra.mxu0 0.0
    %515 = vmatpush.xpose.msra.mxu0 0.0
    %516 = vmatpush.xpose.msra.mxu0 %v499
    %517 = vmatmul.f32.gmra.mxu0 %v497
    %v518 = vpop.f32.mrf.mxu0
    %v519 = vadd.f32 0.0, %v518
    %520 = vdwg.mxu0
    %v521 = vmul.f32 %v519, 0.25
    %v522 = vadd.f32 %v521, %v441
    %v523 = vsel %vm231, %v522, -inf
    %524 = vmax.xlane.f32.xlu0 %v523
    %v525 = vpop.xlane.xlu0 %524
    %v526 = vsub.f32 %v522, %v525
    %v527 = vmul.f32 %v526, 1.442695
    %v528 = vpow.pop %v527
    %v529 = vsel %vm231, %v528, 0.0
    %530 = vadd.xlane.f32.xlu0 %v529
    %v531 = vpop.xlane.xlu0 %530
    %v532 = vrcp.pop %v531
    %v533 = vmul.f32 %v531, %v532
    %v534 = vsub.f32 1.0, %v533
    %v535 = vmul.f32 %v532, %v534
    %v536 = vadd.f32 %v532, %v535
    %vm537 = vweird.f32 %v531
    %vm538 = vweird.f32 %v532
    %vm539 = vmor %vm537, %vm538
    %v540 = vsel %vm539, %v532, %v536
    %v541 = vand.u32 2147483647, %v531
    %vm542 = vcmp.eq.f32.partialorder %v541, 8.507059e+37
    %v543 = vand.u32 %v531, 2147483648
    %v544 = vor.u32 1.1754944e-38, %v543
    %v545 = vsel %vm542, %v544, %v540
    %v546 = vmul.f32 %v528, %v545
    %547 = vrot.lane.b32.xlu0 %v193, 48
    %v548 = vpop.permute.xlu0 %547
    %v551 = vsel %vm231, %v546, 0
    %553 = vmatpush.msra.mxu0 0.0
    %554 = vmatpush.msra.mxu0 0.0
    %555 = vmatpush.msra.mxu0 0.0
    %556 = vmatpush.msra.mxu0 0.0
    %557 = vmatpush.msra.mxu0 0.0
    %558 = vmatpush.msra.mxu0 0.0
    %559 = vmatpush.msra.mxu0 0.0
    %560 = vmatpush.msra.mxu0 0.0
    %561 = vmatpush.msra.mxu0 0.0
    %562 = vmatpush.msra.mxu0 0.0
    %563 = vmatpush.msra.mxu0 0.0
    %564 = vmatpush.msra.mxu0 0.0
    %565 = vmatpush.msra.mxu0 0.0
    %566 = vmatpush.msra.mxu0 0.0
    %567 = vmatpush.msra.mxu0 0.0
    %568 = vmatpush.msra.mxu0 %v548
    %569 = vmatmul.f32.gmra.mxu0 %v551
    %v570 = vpop.f32.mrf.mxu0
    %v571 = vadd.f32 0.0, %v570
    %572 = vdwg.mxu0
    %v574 = vsel %vm203, %v571, 0
    %576 = vmatpush.msra.mxu0 0.0
    %577 = vmatpush.msra.mxu0 0.0
    %578 = vmatpush.msra.mxu0 0.0
    %579 = vmatpush.msra.mxu0 0.0
    %580 = vmatpush.msra.mxu0 0.0
    %581 = vmatpush.msra.mxu0 0.0
    %582 = vmatpush.msra.mxu0 0.0
    %583 = vmatpush.msra.mxu0 0.0
    %584 = vmatpush.msra.mxu0 0.0
    %585 = vmatpush.msra.mxu0 0.0
    %586 = vmatpush.msra.mxu0 0.0
    %587 = vmatpush.msra.mxu0 0.0
    %588 = vmatpush.msra.mxu0 0.0
    %589 = vmatpush.msra.mxu0 0.0
    %590 = vmatpush.msra.mxu0 %v198
    %591 = vmatpush.msra.mxu0 %v197
    %592 = vmatmul.f32.gmra.mxu0 %v574
    %v593 = vpop.f32.mrf.mxu0
    %v594 = vadd.f32 0.0, %v593
    %595 = vdwg.mxu0
    %v597 = vsel %vm203, %v491, 0
    %599 = vmatpush.msra.mxu0 0.0
    %600 = vmatpush.msra.mxu0 0.0
    %601 = vmatpush.msra.mxu0 0.0
    %602 = vmatpush.msra.mxu0 0.0
    %603 = vmatpush.msra.mxu0 0.0
    %604 = vmatpush.msra.mxu0 0.0
    %605 = vmatpush.msra.mxu0 0.0
    %606 = vmatpush.msra.mxu0 0.0
    %607 = vmatpush.msra.mxu0 0.0
    %608 = vmatpush.msra.mxu0 0.0
    %609 = vmatpush.msra.mxu0 0.0
    %610 = vmatpush.msra.mxu0 0.0
    %611 = vmatpush.msra.mxu0 0.0
    %612 = vmatpush.msra.mxu0 0.0
    %613 = vmatpush.msra.mxu0 %v196
    %614 = vmatpush.msra.mxu0 %v195
    %615 = vmatmul.f32.gmra.mxu0 %v597
    %v616 = vpop.f32.mrf.mxu0
    %v617 = vadd.f32 %v594, %v616
    %618 = vdwg.mxu0
    %v619 = vadd.f32 %v617, %v409
    %620 = vst.msk [vmem:[#allocation2 + $0x8] sm:$0xff] %vm165, %v619
    %v621 = vld [vmem:[#allocation2] sm:$0xff]
    %v622 = vld [vmem:[#allocation2 + $0x8] sm:$0xff]
    %v623 = vadd.f32 %v155, %v621
    %v624 = vadd.f32 %v156, %v622
    %v625 = vld [vmem:[%s17] sm:$0x3]
    %v626 = vsel %vm165, %v623, 0.0
    %627 = vadd.xlane.f32.xlu0 %v626
    %v628 = vpop.xlane.xlu0 %627
    %v629 = vsel %vm165, %v624, 0.0
    %630 = vadd.xlane.f32.xlu0 %v629
    %v631 = vpop.xlane.xlu0 %630
    %v632 = vrcp.pop 32.0
    %v633 = vmul.f32 32.0, %v632
    %v634 = vsub.f32 1.0, %v633
    %v635 = vmul.f32 %v632, %v634
    %v636 = vadd.f32 %v632, %v635
    %vm637 = vweird.f32 %v632
    %v638 = vsel %vm637, %v632, %v636
    %v639 = vmul.f32 %v628, %v638
    %v640 = vmul.f32 %v631, %v638
    %v641 = vsub.f32 %v623, %v639
    %v642 = vsub.f32 %v624, %v640
    %v643 = vmul.f32 %v641, %v641
    %v644 = vmul.f32 %v642, %v642
    %v645 = vsel %vm165, %v643, 0.0
    %646 = vadd.xlane.f32.xlu0 %v645
    %v647 = vpop.xlane.xlu0 %646
    %v648 = vsel %vm165, %v644, 0.0
    %649 = vadd.xlane.f32.xlu0 %v648
    %v650 = vpop.xlane.xlu0 %649
    %v651 = vmul.f32 %v647, %v638
    %v652 = vmul.f32 %v650, %v638
    %v653 = vadd.f32 %v651, 1e-05
    %v654 = vadd.f32 %v652, 1e-05
    %v655 = vrsqrt.pop %v653
    %v656 = vmul.f32 %v655, %v653
    %v657 = vmul.f32 %v656, %v655
    %v658 = vmul.f32 0.5, %v657
    %v659 = vsub.f32 1.5, %v658
    %v660 = vmul.f32 %v655, %v659
    %vm661 = vweird.f32 %v653
    %vm662 = vweird.f32 %v655
    %vm663 = vmor %vm661, %vm662
    %v664 = vsel %vm663, %v655, %v660
    %v665 = vrsqrt.pop %v654
    %v666 = vmul.f32 %v665, %v654
    %v667 = vmul.f32 %v666, %v665
    %v668 = vmul.f32 0.5, %v667
    %v669 = vsub.f32 1.5, %v668
    %v670 = vmul.f32 %v665, %v669
    %vm671 = vweird.f32 %v654
    %vm672 = vweird.f32 %v665
    %vm673 = vmor %vm671, %vm672
    %v674 = vsel %vm673, %v665, %v670
    %v675 = vmul.f32 %v641, %v664
    %v676 = vmul.f32 %v642, %v674
    %v677 = vperm.slane %v625, 0
    %v678 = vmul.f32 %v675, %v677
    %v679 = vmul.f32 %v676, %v677
    %v680 = vperm.slane %v625, 1
    %v681 = vadd.f32 %v678, %v680
    %v682 = vadd.f32 %v679, %v680
    %v683 = vld [vmem:[%s19] sm:$0xff]
    %v684 = vld [vmem:[%s19 + $0x8] sm:$0xff]
    %v685 = vld [vmem:[%s19 + $0x10] sm:$0xff]
    %v686 = vld [vmem:[%s19 + $0x18] sm:$0xff]
    %v687 = vld [vmem:[%s21] sm:$0x1]
    %v688 = vld [vmem:[%s23] sm:$0xff]
    %v689 = vld [vmem:[%s23 + $0x8] sm:$0xff]
    %v690 = vld [vmem:[%s23 + $0x10] sm:$0xff]
    %v691 = vld [vmem:[%s23 + $0x18] sm:$0xff]
    %v692 = vld [vmem:[%s23 + $0x20] sm:$0xff]
    %v693 = vld [vmem:[%s23 + $0x28] sm:$0xff]
    %v694 = vld [vmem:[%s23 + $0x30] sm:$0xff]
    %v695 = vld [vmem:[%s23 + $0x38] sm:$0xff]
    %v696 = vld [vmem:[%s25] sm:$0x1]
    %v698 = vperm.slane %v687, 0
    %v701 = vsel %vm165, %v681, 0
    %v704 = vsel %vm165, %v682, 0
    %706 = vmatpush.msra.mxu0 0.0
    %707 = vmatpush.msra.mxu0 0.0
    %708 = vmatpush.msra.mxu0 0.0
    %709 = vmatpush.msra.mxu0 0.0
    %710 = vmatpush.msra.mxu0 0.0
    %711 = vmatpush.msra.mxu0 0.0
    %712 = vmatpush.msra.mxu0 0.0
    %713 = vmatpush.msra.mxu0 0.0
    %714 = vmatpush.msra.mxu0 0.0
    %715 = vmatpush.msra.mxu0 0.0
    %716 = vmatpush.msra.mxu0 0.0
    %717 = vmatpush.msra.mxu0 0.0
    %718 = vmatpush.msra.mxu0 %v686
    %719 = vmatpush.msra.mxu0 %v685
    %720 = vmatpush.msra.mxu0 %v684
    %721 = vmatpush.msra.mxu0 %v683
    %722 = vmatmul.f32.gmra.mxu0 %v701
    %v723 = vpop.f32.mrf.mxu0
    %v724 = vadd.f32 %v698, %v723
    %725 = vmatmul.f32.gmra.mxu0 %v704
    %v726 = vpop.f32.mrf.mxu0
    %v727 = vadd.f32 %v698, %v726
    %728 = vdwg.mxu0
    %v729 = vmax.f32 %v724, 0.0
    %v730 = vmax.f32 %v727, 0.0
    %v732 = vperm.slane %v696, 0
    %vm734 = vcmask 523264
    %v736 = vsel %vm734, %v729, 0
    %v739 = vsel %vm734, %v730, 0
    %741 = vmatpush.msra.mxu0 0.0
    %742 = vmatpush.msra.mxu0 0.0
    %743 = vmatpush.msra.mxu0 0.0
    %744 = vmatpush.msra.mxu0 0.0
    %745 = vmatpush.msra.mxu0 0.0
    %746 = vmatpush.msra.mxu0 0.0
    %747 = vmatpush.msra.mxu0 0.0
    %748 = vmatpush.msra.mxu0 0.0
    %749 = vmatpush.msra.mxu0 %v695
    %750 = vmatpush.msra.mxu0 %v694
    %751 = vmatpush.msra.mxu0 %v693
    %752 = vmatpush.msra.mxu0 %v692
    %753 = vmatpush.msra.mxu0 %v691
    %754 = vmatpush.msra.mxu0 %v690
    %755 = vmatpush.msra.mxu0 %v689
    %756 = vmatpush.msra.mxu0 %v688
    %757 = vmatmul.f32.gmra.mxu0 %v736
    %v758 = vpop.f32.mrf.mxu0
    %v759 = vadd.f32 %v732, %v758
    %760 = vmatmul.f32.gmra.mxu0 %v739
    %v761 = vpop.f32.mrf.mxu0
    %v762 = vadd.f32 %v732, %v761
    %763 = vdwg.mxu0
    %v764 = vadd.f32 %v681, %v759
    %v765 = vadd.f32 %v682, %v762
    %v766 = vld [vmem:[%s27] sm:$0x3]
    %v767 = vsel %vm165, %v764, 0.0
    %768 = vadd.xlane.f32.xlu0 %v767
    %v769 = vpop.xlane.xlu0 %768
    %v770 = vsel %vm165, %v765, 0.0
    %771 = vadd.xlane.f32.xlu0 %v770
    %v772 = vpop.xlane.xlu0 %771
    %v773 = vmul.f32 %v769, %v638
    %v774 = vmul.f32 %v772, %v638
    %v775 = vsub.f32 %v764, %v773
    %v776 = vsub.f32 %v765, %v774
    %v777 = vmul.f32 %v775, %v775
    %v778 = vmul.f32 %v776, %v776
    %v779 = vsel %vm165, %v777, 0.0
    %780 = vadd.xlane.f32.xlu0 %v779
    %v781 = vpop.xlane.xlu0 %780
    %v782 = vsel %vm165, %v778, 0.0
    %783 = vadd.xlane.f32.xlu0 %v782
    %v784 = vpop.xlane.xlu0 %783
    %v785 = vmul.f32 %v781, %v638
    %v786 = vmul.f32 %v784, %v638
    %v787 = vadd.f32 %v785, 1e-05
    %v788 = vadd.f32 %v786, 1e-05
    %v789 = vrsqrt.pop %v787
    %v790 = vmul.f32 %v789, %v787
    %v791 = vmul.f32 %v790, %v789
    %v792 = vmul.f32 0.5, %v791
    %v793 = vsub.f32 1.5, %v792
    %v794 = vmul.f32 %v789, %v793
    %vm795 = vweird.f32 %v787
    %vm796 = vweird.f32 %v789
    %vm797 = vmor %vm795, %vm796
    %v798 = vsel %vm797, %v789, %v794
    %v799 = vrsqrt.pop %v788
    %v800 = vmul.f32 %v799, %v788
    %v801 = vmul.f32 %v800, %v799
    %v802 = vmul.f32 0.5, %v801
    %v803 = vsub.f32 1.5, %v802
    %v804 = vmul.f32 %v799, %v803
    %vm805 = vweird.f32 %v788
    %vm806 = vweird.f32 %v799
    %vm807 = vmor %vm805, %vm806
    %v808 = vsel %vm807, %v799, %v804
    %v809 = vmul.f32 %v775, %v798
    %v810 = vmul.f32 %v776, %v808
    %v811 = vperm.slane %v766, 0
    %v812 = vmul.f32 %v809, %v811
    %v813 = vmul.f32 %v810, %v811
    %v814 = vperm.slane %v766, 1
    %v815 = vadd.f32 %v812, %v814
    %v816 = vadd.f32 %v813, %v814
    %s817 = scalar_lea.vmem %s9, 32
    %v818 = vld [vmem:[%s817] sm:$0xff]
    %v819 = vld [vmem:[%s817 + $0x8] sm:$0xff]
    %v820 = vld [vmem:[%s817 + $0x10] sm:$0xff]
    %v821 = vld [vmem:[%s817 + $0x18] sm:$0xff]
    %s822 = scalar_lea.vmem %s11, 1
    %v823 = vld [vmem:[%s822] sm:$0x1]
    %v825 = vperm.slane %v823, 0
    %v828 = vsel %vm165, %v815, 0
    %v831 = vsel %vm165, %v816, 0
    %833 = vmatpush.msra.mxu0 0.0
    %834 = vmatpush.msra.mxu0 0.0
    %835 = vmatpush.msra.mxu0 0.0
    %836 = vmatpush.msra.mxu0 0.0
    %837 = vmatpush.msra.mxu0 0.0
    %838 = vmatpush.msra.mxu0 0.0
    %839 = vmatpush.msra.mxu0 0.0
    %840 = vmatpush.msra.mxu0 0.0
    %841 = vmatpush.msra.mxu0 0.0
    %842 = vmatpush.msra.mxu0 0.0
    %843 = vmatpush.msra.mxu0 0.0
    %844 = vmatpush.msra.mxu0 0.0
    %845 = vmatpush.msra.mxu0 %v821
    %846 = vmatpush.msra.mxu0 %v820
    %847 = vmatpush.msra.mxu0 %v819
    %848 = vmatpush.msra.mxu0 %v818
    %849 = vmatmul.f32.gmra.mxu0 %v828
    %v850 = vpop.f32.mrf.mxu0
    %v851 = vadd.f32 %v825, %v850
    %852 = vmatmul.f32.gmra.mxu0 %v831
    %v853 = vpop.f32.mrf.mxu0
    %v854 = vadd.f32 %v825, %v853
    %855 = vdwg.mxu0
    %s856 = scalar_lea.vmem %s13, 32
    %v857 = vld [vmem:[%s856] sm:$0xff]
    %v858 = vld [vmem:[%s856 + $0x8] sm:$0xff]
    %v859 = vld [vmem:[%s856 + $0x10] sm:$0xff]
    %v860 = vld [vmem:[%s856 + $0x18] sm:$0xff]
    %s861 = scalar_lea.vmem %s15, 1
    %v862 = vld [vmem:[%s861] sm:$0x1]
    %864 = vrot.lane.b32.xlu0 %v851, 96
    %v865 = vpop.permute.xlu0 %864
    %v866 = vsel %vm203, %v851, 0
    %v868 = vsel %vm203, %v865, 0
    %870 = vmatpush.xpose.msra.mxu0 0.0
    %871 = vmatpush.xpose.msra.mxu0 0.0
    %872 = vmatpush.xpose.msra.mxu0 0.0
    %873 = vmatpush.xpose.msra.mxu0 0.0
    %874 = vmatpush.xpose.msra.mxu0 0.0
    %875 = vmatpush.xpose.msra.mxu0 0.0
    %876 = vmatpush.xpose.msra.mxu0 0.0
    %877 = vmatpush.xpose.msra.mxu0 0.0
    %878 = vmatpush.xpose.msra.mxu0 0.0
    %879 = vmatpush.xpose.msra.mxu0 0.0
    %880 = vmatpush.xpose.msra.mxu0 0.0
    %881 = vmatpush.xpose.msra.mxu0 0.0
    %882 = vmatpush.xpose.msra.mxu0 0.0
    %883 = vmatpush.xpose.msra.mxu0 0.0
    %884 = vmatpush.xpose.msra.mxu0 0.0
    %885 = vmatpush.xpose.msra.mxu0 %v868
    %886 = vmatmul.f32.gmra.mxu0 %v866
    %v887 = vpop.f32.mrf.mxu0
    %v888 = vadd.f32 0.0, %v887
    %889 = vdwg.mxu0
    %v890 = vmul.f32 %v888, 0.25
    %v891 = vadd.f32 %v890, %v229
    %v892 = vsel %vm231, %v891, -inf
    %893 = vmax.xlane.f32.xlu0 %v892
    %v894 = vpop.xlane.xlu0 %893
    %v895 = vsub.f32 %v891, %v894
    %v896 = vmul.f32 %v895, 1.442695
    %v897 = vpow.pop %v896
    %v898 = vsel %vm231, %v897, 0.0
    %899 = vadd.xlane.f32.xlu0 %v898
    %v900 = vpop.xlane.xlu0 %899
    %v901 = vrcp.pop %v900
    %v902 = vmul.f32 %v900, %v901
    %v903 = vsub.f32 1.0, %v902
    %v904 = vmul.f32 %v901, %v903
    %v905 = vadd.f32 %v901, %v904
    %vm906 = vweird.f32 %v900
    %vm907 = vweird.f32 %v901
    %vm908 = vmor %vm906, %vm907
    %v909 = vsel %vm908, %v901, %v905
    %v910 = vand.u32 2147483647, %v900
    %vm911 = vcmp.eq.f32.partialorder %v910, 8.507059e+37
    %v912 = vand.u32 %v900, 2147483648
    %v913 = vor.u32 1.1754944e-38, %v912
    %v914 = vsel %vm911, %v913, %v909
    %v915 = vmul.f32 %v897, %v914
    %916 = vrot.lane.b32.xlu0 %v851, 64
    %v917 = vpop.permute.xlu0 %916
    %v920 = vsel %vm231, %v915, 0
    %922 = vmatpush.msra.mxu0 0.0
    %923 = vmatpush.msra.mxu0 0.0
    %924 = vmatpush.msra.mxu0 0.0
    %925 = vmatpush.msra.mxu0 0.0
    %926 = vmatpush.msra.mxu0 0.0
    %927 = vmatpush.msra.mxu0 0.0
    %928 = vmatpush.msra.mxu0 0.0
    %929 = vmatpush.msra.mxu0 0.0
    %930 = vmatpush.msra.mxu0 0.0
    %931 = vmatpush.msra.mxu0 0.0
    %932 = vmatpush.msra.mxu0 0.0
    %933 = vmatpush.msra.mxu0 0.0
    %934 = vmatpush.msra.mxu0 0.0
    %935 = vmatpush.msra.mxu0 0.0
    %936 = vmatpush.msra.mxu0 0.0
    %937 = vmatpush.msra.mxu0 %v917
    %938 = vmatmul.f32.gmra.mxu0 %v920
    %v939 = vpop.f32.mrf.mxu0
    %v940 = vadd.f32 0.0, %v939
    %941 = vdwg.mxu0
    %942 = vrot.lane.b32.xlu0 %v851, 112
    %v943 = vpop.permute.xlu0 %942
    %944 = vrot.lane.b32.xlu0 %v851, 80
    %v945 = vpop.permute.xlu0 %944
    %v946 = vsel %vm203, %v943, 0
    %v948 = vsel %vm203, %v945, 0
    %950 = vmatpush.xpose.msra.mxu0 0.0
    %951 = vmatpush.xpose.msra.mxu0 0.0
    %952 = vmatpush.xpose.msra.mxu0 0.0
    %953 = vmatpush.xpose.msra.mxu0 0.0
    %954 = vmatpush.xpose.msra.mxu0 0.0
    %955 = vmatpush.xpose.msra.mxu0 0.0
    %956 = vmatpush.xpose.msra.mxu0 0.0
    %957 = vmatpush.xpose.msra.mxu0 0.0
    %958 = vmatpush.xpose.msra.mxu0 0.0
    %959 = vmatpush.xpose.msra.mxu0 0.0
    %960 = vmatpush.xpose.msra.mxu0 0.0
    %961 = vmatpush.xpose.msra.mxu0 0.0
    %962 = vmatpush.xpose.msra.mxu0 0.0
    %963 = vmatpush.xpose.msra.mxu0 0.0
    %964 = vmatpush.xpose.msra.mxu0 0.0
    %965 = vmatpush.xpose.msra.mxu0 %v948
    %966 = vmatmul.f32.gmra.mxu0 %v946
    %v967 = vpop.f32.mrf.mxu0
    %v968 = vadd.f32 0.0, %v967
    %969 = vdwg.mxu0
    %v970 = vmul.f32 %v968, 0.25
    %v971 = vadd.f32 %v970, %v229
    %v972 = vsel %vm231, %v971, -inf
    %973 = vmax.xlane.f32.xlu0 %v972
    %v974 = vpop.xlane.xlu0 %973
    %v975 = vsub.f32 %v971, %v974
    %v976 = vmul.f32 %v975, 1.442695
    %v977 = vpow.pop %v976
    %v978 = vsel %vm231, %v977, 0.0
    %979 = vadd.xlane.f32.xlu0 %v978
    %v980 = vpop.xlane.xlu0 %979
    %v981 = vrcp.pop %v980
    %v982 = vmul.f32 %v980, %v981
    %v983 = vsub.f32 1.0, %v982
    %v984 = vmul.f32 %v981, %v983
    %v985 = vadd.f32 %v981, %v984
    %vm986 = vweird.f32 %v980
    %vm987 = vweird.f32 %v981
    %vm988 = vmor %vm986, %vm987
    %v989 = vsel %vm988, %v981, %v985
    %v990 = vand.u32 2147483647, %v980
    %vm991 = vcmp.eq.f32.partialorder %v990, 8.507059e+37
    %v992 = vand.u32 %v980, 2147483648
    %v993 = vor.u32 1.1754944e-38, %v992
    %v994 = vsel %vm991, %v993, %v989
    %v995 = vmul.f32 %v977, %v994
    %996 = vrot.lane.b32.xlu0 %v851, 48
    %v997 = vpop.permute.xlu0 %996
    %v1000 = vsel %vm231, %v995, 0
    %1002 = vmatpush.msra.mxu0 0.0
    %1003 = vmatpush.msra.mxu0 0.0
    %1004 = vmatpush.msra.mxu0 0.0
    %1005 = vmatpush.msra.mxu0 0.0
    %1006 = vmatpush.msra.mxu0 0.0
    %1007 = vmatpush.msra.mxu0 0.0
    %1008 = vmatpush.msra.mxu0 0.0
    %1009 = vmatpush.msra.mxu0 0.0
    %1010 = vmatpush.msra.mxu0 0.0
    %1011 = vmatpush.msra.mxu0 0.0
    %1012 = vmatpush.msra.mxu0 0.0
    %1013 = vmatpush.msra.mxu0 0.0
    %1014 = vmatpush.msra.mxu0 0.0
    %1015 = vmatpush.msra.mxu0 0.0
    %1016 = vmatpush.msra.mxu0 0.0
    %1017 = vmatpush.msra.mxu0 %v997
    %1018 = vmatmul.f32.gmra.mxu0 %v1000
    %v1019 = vpop.f32.mrf.mxu0
    %v1020 = vadd.f32 0.0, %v1019
    %1021 = vdwg.mxu0
    %v1023 = vsel %vm203, %v1020, 0
    %1025 = vmatpush.msra.mxu0 0.0
    %1026 = vmatpush.msra.mxu0 0.0
    %1027 = vmatpush.msra.mxu0 0.0
    %1028 = vmatpush.msra.mxu0 0.0
    %1029 = vmatpush.msra.mxu0 0.0
    %1030 = vmatpush.msra.mxu0 0.0
    %1031 = vmatpush.msra.mxu0 0.0
    %1032 = vmatpush.msra.mxu0 0.0
    %1033 = vmatpush.msra.mxu0 0.0
    %1034 = vmatpush.msra.mxu0 0.0
    %1035 = vmatpush.msra.mxu0 0.0
    %1036 = vmatpush.msra.mxu0 0.0
    %1037 = vmatpush.msra.mxu0 0.0
    %1038 = vmatpush.msra.mxu0 0.0
    %1039 = vmatpush.msra.mxu0 %v860
    %1040 = vmatpush.msra.mxu0 %v859
    %1041 = vmatmul.f32.gmra.mxu0 %v1023
    %v1042 = vpop.f32.mrf.mxu0
    %v1043 = vadd.f32 0.0, %v1042
    %1044 = vdwg.mxu0
    %v1046 = vsel %vm203, %v940, 0
    %1048 = vmatpush.msra.mxu0 0.0
    %1049 = vmatpush.msra.mxu0 0.0
    %1050 = vmatpush.msra.mxu0 0.0
    %1051 = vmatpush.msra.mxu0 0.0
    %1052 = vmatpush.msra.mxu0 0.0
    %1053 = vmatpush.msra.mxu0 0.0
    %1054 = vmatpush.msra.mxu0 0.0
    %1055 = vmatpush.msra.mxu0 0.0
    %1056 = vmatpush.msra.mxu0 0.0
    %1057 = vmatpush.msra.mxu0 0.0
    %1058 = vmatpush.msra.mxu0 0.0
    %1059 = vmatpush.msra.mxu0 0.0
    %1060 = vmatpush.msra.mxu0 0.0
    %1061 = vmatpush.msra.mxu0 0.0
    %1062 = vmatpush.msra.mxu0 %v858
    %1063 = vmatpush.msra.mxu0 %v857
    %1064 = vmatmul.f32.gmra.mxu0 %v1046
    %v1065 = vpop.f32.mrf.mxu0
    %v1066 = vadd.f32 %v1043, %v1065
    %1067 = vdwg.mxu0
    %v1069 = vperm.slane %v862, 0
    %v1071 = vadd.f32 %v1066, %v1069
    %1072 = vst.msk [vmem:[#allocation2] sm:$0xff] %vm165, %v1071
    %1074 = vrot.lane.b32.xlu0 %v854, 96
    %v1075 = vpop.permute.xlu0 %1074
    %v1076 = vsel %vm203, %v854, 0
    %v1078 = vsel %vm203, %v1075, 0
    %1080 = vmatpush.xpose.msra.mxu0 0.0
    %1081 = vmatpush.xpose.msra.mxu0 0.0
    %1082 = vmatpush.xpose.msra.mxu0 0.0
    %1083 = vmatpush.xpose.msra.mxu0 0.0
    %1084 = vmatpush.xpose.msra.mxu0 0.0
    %1085 = vmatpush.xpose.msra.mxu0 0.0
    %1086 = vmatpush.xpose.msra.mxu0 0.0
    %1087 = vmatpush.xpose.msra.mxu0 0.0
    %1088 = vmatpush.xpose.msra.mxu0 0.0
    %1089 = vmatpush.xpose.msra.mxu0 0.0
    %1090 = vmatpush.xpose.msra.mxu0 0.0
    %1091 = vmatpush.xpose.msra.mxu0 0.0
    %1092 = vmatpush.xpose.msra.mxu0 0.0
    %1093 = vmatpush.xpose.msra.mxu0 0.0
    %1094 = vmatpush.xpose.msra.mxu0 0.0
    %1095 = vmatpush.xpose.msra.mxu0 %v1078
    %1096 = vmatmul.f32.gmra.mxu0 %v1076
    %v1097 = vpop.f32.mrf.mxu0
    %v1098 = vadd.f32 0.0, %v1097
    %1099 = vdwg.mxu0
    %v1100 = vmul.f32 %v1098, 0.25
    %v1101 = vadd.f32 %v1100, %v441
    %v1102 = vsel %vm231, %v1101, -inf
    %1103 = vmax.xlane.f32.xlu0 %v1102
    %v1104 = vpop.xlane.xlu0 %1103
    %v1105 = vsub.f32 %v1101, %v1104
    %v1106 = vmul.f32 %v1105, 1.442695
    %v1107 = vpow.pop %v1106
    %v1108 = vsel %vm231, %v1107, 0.0
    %1109 = vadd.xlane.f32.xlu0 %v1108
    %v1110 = vpop.xlane.xlu0 %1109
    %v1111 = vrcp.pop %v1110
    %v1112 = vmul.f32 %v1110, %v1111
    %v1113 = vsub.f32 1.0, %v1112
    %v1114 = vmul.f32 %v1111, %v1113
    %v1115 = vadd.f32 %v1111, %v1114
    %vm1116 = vweird.f32 %v1110
    %vm1117 = vweird.f32 %v1111
    %vm1118 = vmor %vm1116, %vm1117
    %v1119 = vsel %vm1118, %v1111, %v1115
    %v1120 = vand.u32 2147483647, %v1110
    %vm1121 = vcmp.eq.f32.partialorder %v1120, 8.507059e+37
    %v1122 = vand.u32 %v1110, 2147483648
    %v1123 = vor.u32 1.1754944e-38, %v1122
    %v1124 = vsel %vm1121, %v1123, %v1119
    %v1125 = vmul.f32 %v1107, %v1124
    %1126 = vrot.lane.b32.xlu0 %v854, 64
    %v1127 = vpop.permute.xlu0 %1126
    %v1130 = vsel %vm231, %v1125, 0
    %1132 = vmatpush.msra.mxu0 0.0
    %1133 = vmatpush.msra.mxu0 0.0
    %1134 = vmatpush.msra.mxu0 0.0
    %1135 = vmatpush.msra.mxu0 0.0
    %1136 = vmatpush.msra.mxu0 0.0
    %1137 = vmatpush.msra.mxu0 0.0
    %1138 = vmatpush.msra.mxu0 0.0
    %1139 = vmatpush.msra.mxu0 0.0
    %1140 = vmatpush.msra.mxu0 0.0
    %1141 = vmatpush.msra.mxu0 0.0
    %1142 = vmatpush.msra.mxu0 0.0
    %1143 = vmatpush.msra.mxu0 0.0
    %1144 = vmatpush.msra.mxu0 0.0
    %1145 = vmatpush.msra.mxu0 0.0
    %1146 = vmatpush.msra.mxu0 0.0
    %1147 = vmatpush.msra.mxu0 %v1127
    %1148 = vmatmul.f32.gmra.mxu0 %v1130
    %v1149 = vpop.f32.mrf.mxu0
    %v1150 = vadd.f32 0.0, %v1149
    %1151 = vdwg.mxu0
    %1152 = vrot.lane.b32.xlu0 %v854, 112
    %v1153 = vpop.permute.xlu0 %1152
    %1154 = vrot.lane.b32.xlu0 %v854, 80
    %v1155 = vpop.permute.xlu0 %1154
    %v1156 = vsel %vm203, %v1153, 0
    %v1158 = vsel %vm203, %v1155, 0
    %1160 = vmatpush.xpose.msra.mxu0 0.0
    %1161 = vmatpush.xpose.msra.mxu0 0.0
    %1162 = vmatpush.xpose.msra.mxu0 0.0
    %1163 = vmatpush.xpose.msra.mxu0 0.0
    %1164 = vmatpush.xpose.msra.mxu0 0.0
    %1165 = vmatpush.xpose.msra.mxu0 0.0
    %1166 = vmatpush.xpose.msra.mxu0 0.0
    %1167 = vmatpush.xpose.msra.mxu0 0.0
    %1168 = vmatpush.xpose.msra.mxu0 0.0
    %1169 = vmatpush.xpose.msra.mxu0 0.0
    %1170 = vmatpush.xpose.msra.mxu0 0.0
    %1171 = vmatpush.xpose.msra.mxu0 0.0
    %1172 = vmatpush.xpose.msra.mxu0 0.0
    %1173 = vmatpush.xpose.msra.mxu0 0.0
    %1174 = vmatpush.xpose.msra.mxu0 0.0
    %1175 = vmatpush.xpose.msra.mxu0 %v1158
    %1176 = vmatmul.f32.gmra.mxu0 %v1156
    %v1177 = vpop.f32.mrf.mxu0
    %v1178 = vadd.f32 0.0, %v1177
    %1179 = vdwg.mxu0
    %v1180 = vmul.f32 %v1178, 0.25
    %v1181 = vadd.f32 %v1180, %v441
    %v1182 = vsel %vm231, %v1181, -inf
    %1183 = vmax.xlane.f32.xlu0 %v1182
    %v1184 = vpop.xlane.xlu0 %1183
    %v1185 = vsub.f32 %v1181, %v1184
    %v1186 = vmul.f32 %v1185, 1.442695
    %v1187 = vpow.pop %v1186
    %v1188 = vsel %vm231, %v1187, 0.0
    %1189 = vadd.xlane.f32.xlu0 %v1188
    %v1190 = vpop.xlane.xlu0 %1189
    %v1191 = vrcp.pop %v1190
    %v1192 = vmul.f32 %v1190, %v1191
    %v1193 = vsub.f32 1.0, %v1192
    %v1194 = vmul.f32 %v1191, %v1193
    %v1195 = vadd.f32 %v1191, %v1194
    %vm1196 = vweird.f32 %v1190
    %vm1197 = vweird.f32 %v1191
    %vm1198 = vmor %vm1196, %vm1197
    %v1199 = vsel %vm1198, %v1191, %v1195
    %v1200 = vand.u32 2147483647, %v1190
    %vm1201 = vcmp.eq.f32.partialorder %v1200, 8.507059e+37
    %v1202 = vand.u32 %v1190, 2147483648
    %v1203 = vor.u32 1.1754944e-38, %v1202
    %v1204 = vsel %vm1201, %v1203, %v1199
    %v1205 = vmul.f32 %v1187, %v1204
    %1206 = vrot.lane.b32.xlu0 %v854, 48
    %v1207 = vpop.permute.xlu0 %1206
    %v1210 = vsel %vm231, %v1205, 0
    %1212 = vmatpush.msra.mxu0 0.0
    %1213 = vmatpush.msra.mxu0 0.0
    %1214 = vmatpush.msra.mxu0 0.0
    %1215 = vmatpush.msra.mxu0 0.0
    %1216 = vmatpush.msra.mxu0 0.0
    %1217 = vmatpush.msra.mxu0 0.0
    %1218 = vmatpush.msra.mxu0 0.0
    %1219 = vmatpush.msra.mxu0 0.0
    %1220 = vmatpush.msra.mxu0 0.0
    %1221 = vmatpush.msra.mxu0 0.0
    %1222 = vmatpush.msra.mxu0 0.0
    %1223 = vmatpush.msra.mxu0 0.0
    %1224 = vmatpush.msra.mxu0 0.0
    %1225 = vmatpush.msra.mxu0 0.0
    %1226 = vmatpush.msra.mxu0 0.0
    %1227 = vmatpush.msra.mxu0 %v1207
    %1228 = vmatmul.f32.gmra.mxu0 %v1210
    %v1229 = vpop.f32.mrf.mxu0
    %v1230 = vadd.f32 0.0, %v1229
    %1231 = vdwg.mxu0
    %v1233 = vsel %vm203, %v1230, 0
    %1235 = vmatpush.msra.mxu0 0.0
    %1236 = vmatpush.msra.mxu0 0.0
    %1237 = vmatpush.msra.mxu0 0.0
    %1238 = vmatpush.msra.mxu0 0.0
    %1239 = vmatpush.msra.mxu0 0.0
    %1240 = vmatpush.msra.mxu0 0.0
    %1241 = vmatpush.msra.mxu0 0.0
    %1242 = vmatpush.msra.mxu0 0.0
    %1243 = vmatpush.msra.mxu0 0.0
    %1244 = vmatpush.msra.mxu0 0.0
    %1245 = vmatpush.msra.mxu0 0.0
    %1246 = vmatpush.msra.mxu0 0.0
    %1247 = vmatpush.msra.mxu0 0.0
    %1248 = vmatpush.msra.mxu0 0.0
    %1249 = vmatpush.msra.mxu0 %v860
    %1250 = vmatpush.msra.mxu0 %v859
    %1251 = vmatmul.f32.gmra.mxu0 %v1233
    %v1252 = vpop.f32.mrf.mxu0
    %v1253 = vadd.f32 0.0, %v1252
    %1254 = vdwg.mxu0
    %v1256 = vsel %vm203, %v1150, 0
    %1258 = vmatpush.msra.mxu0 0.0
    %1259 = vmatpush.msra.mxu0 0.0
    %1260 = vmatpush.msra.mxu0 0.0
    %1261 = vmatpush.msra.mxu0 0.0
    %1262 = vmatpush.msra.mxu0 0.0
    %1263 = vmatpush.msra.mxu0 0.0
    %1264 = vmatpush.msra.mxu0 0.0
    %1265 = vmatpush.msra.mxu0 0.0
    %1266 = vmatpush.msra.mxu0 0.0
    %1267 = vmatpush.msra.mxu0 0.0
    %1268 = vmatpush.msra.mxu0 0.0
    %1269 = vmatpush.msra.mxu0 0.0
    %1270 = vmatpush.msra.mxu0 0.0
    %1271 = vmatpush.msra.mxu0 0.0
    %1272 = vmatpush.msra.mxu0 %v858
    %1273 = vmatpush.msra.mxu0 %v857
    %1274 = vmatmul.f32.gmra.mxu0 %v1256
    %v1275 = vpop.f32.mrf.mxu0
    %v1276 = vadd.f32 %v1253, %v1275
    %1277 = vdwg.mxu0
    %v1278 = vadd.f32 %v1276, %v1069
    %1279 = vst.msk [vmem:[#allocation2 + $0x8] sm:$0xff] %vm165, %v1278
    %v1280 = vld [vmem:[#allocation2] sm:$0xff]
    %v1281 = vld [vmem:[#allocation2 + $0x8] sm:$0xff]
    %v1282 = vadd.f32 %v815, %v1280
    %v1283 = vadd.f32 %v816, %v1281
    %s1284 = scalar_lea.vmem %s17, 2
    %v1285 = vld [vmem:[%s1284] sm:$0x3]
    %v1286 = vsel %vm165, %v1282, 0.0
    %1287 = vadd.xlane.f32.xlu0 %v1286
    %v1288 = vpop.xlane.xlu0 %1287
    %v1289 = vsel %vm165, %v1283, 0.0
    %1290 = vadd.xlane.f32.xlu0 %v1289
    %v1291 = vpop.xlane.xlu0 %1290
    %v1292 = vmul.f32 %v1288, %v638
    %v1293 = vmul.f32 %v1291, %v638
    %v1294 = vsub.f32 %v1282, %v1292
    %v1295 = vsub.f32 %v1283, %v1293
    %v1296 = vmul.f32 %v1294, %v1294
    %v1297 = vmul.f32 %v1295, %v1295
    %v1298 = vsel %vm165, %v1296, 0.0
    %1299 = vadd.xlane.f32.xlu0 %v1298
    %v1300 = vpop.xlane.xlu0 %1299
    %v1301 = vsel %vm165, %v1297, 0.0
    %1302 = vadd.xlane.f32.xlu0 %v1301
    %v1303 = vpop.xlane.xlu0 %1302
    %v1304 = vmul.f32 %v1300, %v638
    %v1305 = vmul.f32 %v1303, %v638
    %v1306 = vadd.f32 %v1304, 1e-05
    %v1307 = vadd.f32 %v1305, 1e-05
    %v1308 = vrsqrt.pop %v1306
    %v1309 = vmul.f32 %v1308, %v1306
    %v1310 = vmul.f32 %v1309, %v1308
    %v1311 = vmul.f32 0.5, %v1310
    %v1312 = vsub.f32 1.5, %v1311
    %v1313 = vmul.f32 %v1308, %v1312
    %vm1314 = vweird.f32 %v1306
    %vm1315 = vweird.f32 %v1308
    %vm1316 = vmor %vm1314, %vm1315
    %v1317 = vsel %vm1316, %v1308, %v1313
    %v1318 = vrsqrt.pop %v1307
    %v1319 = vmul.f32 %v1318, %v1307
    %v1320 = vmul.f32 %v1319, %v1318
    %v1321 = vmul.f32 0.5, %v1320
    %v1322 = vsub.f32 1.5, %v1321
    %v1323 = vmul.f32 %v1318, %v1322
    %vm1324 = vweird.f32 %v1307
    %vm1325 = vweird.f32 %v1318
    %vm1326 = vmor %vm1324, %vm1325
    %v1327 = vsel %vm1326, %v1318, %v1323
    %v1328 = vmul.f32 %v1294, %v1317
    %v1329 = vmul.f32 %v1295, %v1327
    %v1330 = vperm.slane %v1285, 0
    %v1331 = vmul.f32 %v1328, %v1330
    %v1332 = vmul.f32 %v1329, %v1330
    %v1333 = vperm.slane %v1285, 1
    %v1334 = vadd.f32 %v1331, %v1333
    %v1335 = vadd.f32 %v1332, %v1333
    %s1336 = scalar_lea.vmem %s19, 32
    %v1337 = vld [vmem:[%s1336] sm:$0xff]
    %v1338 = vld [vmem:[%s1336 + $0x8] sm:$0xff]
    %v1339 = vld [vmem:[%s1336 + $0x10] sm:$0xff]
    %v1340 = vld [vmem:[%s1336 + $0x18] sm:$0xff]
    %s1341 = scalar_lea.vmem %s21, 1
    %v1342 = vld [vmem:[%s1341] sm:$0x1]
    %s1343 = scalar_lea.vmem %s23, 64
    %v1344 = vld [vmem:[%s1343] sm:$0xff]
    %v1345 = vld [vmem:[%s1343 + $0x8] sm:$0xff]
    %v1346 = vld [vmem:[%s1343 + $0x10] sm:$0xff]
    %v1347 = vld [vmem:[%s1343 + $0x18] sm:$0xff]
    %v1348 = vld [vmem:[%s1343 + $0x20] sm:$0xff]
    %v1349 = vld [vmem:[%s1343 + $0x28] sm:$0xff]
    %v1350 = vld [vmem:[%s1343 + $0x30] sm:$0xff]
    %v1351 = vld [vmem:[%s1343 + $0x38] sm:$0xff]
    %s1352 = scalar_lea.vmem %s25, 1
    %v1353 = vld [vmem:[%s1352] sm:$0x1]
    %v1355 = vperm.slane %v1342, 0
    %v1358 = vsel %vm165, %v1334, 0
    %v1361 = vsel %vm165, %v1335, 0
    %1363 = vmatpush.msra.mxu0 0.0
    %1364 = vmatpush.msra.mxu0 0.0
    %1365 = vmatpush.msra.mxu0 0.0
    %1366 = vmatpush.msra.mxu0 0.0
    %1367 = vmatpush.msra.mxu0 0.0
    %1368 = vmatpush.msra.mxu0 0.0
    %1369 = vmatpush.msra.mxu0 0.0
    %1370 = vmatpush.msra.mxu0 0.0
    %1371 = vmatpush.msra.mxu0 0.0
    %1372 = vmatpush.msra.mxu0 0.0
    %1373 = vmatpush.msra.mxu0 0.0
    %1374 = vmatpush.msra.mxu0 0.0
    %1375 = vmatpush.msra.mxu0 %v1340
    %1376 = vmatpush.msra.mxu0 %v1339
    %1377 = vmatpush.msra.mxu0 %v1338
    %1378 = vmatpush.msra.mxu0 %v1337
    %1379 = vmatmul.f32.gmra.mxu0 %v1358
    %v1380 = vpop.f32.mrf.mxu0
    %v1381 = vadd.f32 %v1355, %v1380
    %1382 = vmatmul.f32.gmra.mxu0 %v1361
    %v1383 = vpop.f32.mrf.mxu0
    %v1384 = vadd.f32 %v1355, %v1383
    %1385 = vdwg.mxu0
    %v1386 = vmax.f32 %v1381, 0.0
    %v1387 = vmax.f32 %v1384, 0.0
    %v1389 = vperm.slane %v1353, 0
    %v1392 = vsel %vm734, %v1386, 0
    %v1395 = vsel %vm734, %v1387, 0
    %1397 = vmatpush.msra.mxu0 0.0
    %1398 = vmatpush.msra.mxu0 0.0
    %1399 = vmatpush.msra.mxu0 0.0
    %1400 = vmatpush.msra.mxu0 0.0
    %1401 = vmatpush.msra.mxu0 0.0
    %1402 = vmatpush.msra.mxu0 0.0
    %1403 = vmatpush.msra.mxu0 0.0
    %1404 = vmatpush.msra.mxu0 0.0
    %1405 = vmatpush.msra.mxu0 %v1351
    %1406 = vmatpush.msra.mxu0 %v1350
    %1407 = vmatpush.msra.mxu0 %v1349
    %1408 = vmatpush.msra.mxu0 %v1348
    %1409 = vmatpush.msra.mxu0 %v1347
    %1410 = vmatpush.msra.mxu0 %v1346
    %1411 = vmatpush.msra.mxu0 %v1345
    %1412 = vmatpush.msra.mxu0 %v1344
    %1413 = vmatmul.f32.gmra.mxu0 %v1392
    %v1414 = vpop.f32.mrf.mxu0
    %v1415 = vadd.f32 %v1389, %v1414
    %1416 = vmatmul.f32.gmra.mxu0 %v1395
    %v1417 = vpop.f32.mrf.mxu0
    %v1418 = vadd.f32 %v1389, %v1417
    %1419 = vdwg.mxu0
    %v1420 = vadd.f32 %v1334, %v1415
    %v1421 = vadd.f32 %v1335, %v1418
    %s1422 = scalar_lea.vmem %s27, 2
    %v1423 = vld [vmem:[%s1422] sm:$0x3]
    %v1424 = vsel %vm165, %v1420, 0.0
    %1425 = vadd.xlane.f32.xlu0 %v1424
    %v1426 = vpop.xlane.xlu0 %1425
    %v1427 = vsel %vm165, %v1421, 0.0
    %1428 = vadd.xlane.f32.xlu0 %v1427
    %v1429 = vpop.xlane.xlu0 %1428
    %v1430 = vmul.f32 %v1426, %v638
    %v1431 = vmul.f32 %v1429, %v638
    %v1432 = vsub.f32 %v1420, %v1430
    %v1433 = vsub.f32 %v1421, %v1431
    %v1434 = vmul.f32 %v1432, %v1432
    %v1435 = vmul.f32 %v1433, %v1433
    %v1436 = vsel %vm165, %v1434, 0.0
    %1437 = vadd.xlane.f32.xlu0 %v1436
    %v1438 = vpop.xlane.xlu0 %1437
    %v1439 = vsel %vm165, %v1435, 0.0
    %1440 = vadd.xlane.f32.xlu0 %v1439
    %v1441 = vpop.xlane.xlu0 %1440
    %v1442 = vmul.f32 %v1438, %v638
    %v1443 = vmul.f32 %v1441, %v638
    %v1444 = vadd.f32 %v1442, 1e-05
    %v1445 = vadd.f32 %v1443, 1e-05
    %v1446 = vrsqrt.pop %v1444
    %v1447 = vmul.f32 %v1446, %v1444
    %v1448 = vmul.f32 %v1447, %v1446
    %v1449 = vmul.f32 0.5, %v1448
    %v1450 = vsub.f32 1.5, %v1449
    %v1451 = vmul.f32 %v1446, %v1450
    %vm1452 = vweird.f32 %v1444
    %vm1453 = vweird.f32 %v1446
    %vm1454 = vmor %vm1452, %vm1453
    %v1455 = vsel %vm1454, %v1446, %v1451
    %v1456 = vrsqrt.pop %v1445
    %v1457 = vmul.f32 %v1456, %v1445
    %v1458 = vmul.f32 %v1457, %v1456
    %v1459 = vmul.f32 0.5, %v1458
    %v1460 = vsub.f32 1.5, %v1459
    %v1461 = vmul.f32 %v1456, %v1460
    %vm1462 = vweird.f32 %v1445
    %vm1463 = vweird.f32 %v1456
    %vm1464 = vmor %vm1462, %vm1463
    %v1465 = vsel %vm1464, %v1456, %v1461
    %v1466 = vmul.f32 %v1432, %v1455
    %v1467 = vmul.f32 %v1433, %v1465
    %v1468 = vperm.slane %v1423, 0
    %v1469 = vmul.f32 %v1466, %v1468
    %v1470 = vmul.f32 %v1467, %v1468
    %v1471 = vperm.slane %v1423, 1
    %v1472 = vadd.f32 %v1469, %v1471
    %v1473 = vadd.f32 %v1470, %v1471
    %v1474 = vld [vmem:[%s3] sm:$0xff]
    %v1475 = vld [vmem:[%s3 + $0x8] sm:$0xff]
    %v1476 = vld [vmem:[%s29] sm:$0xff]
    %v1477 = vld [vmem:[%s29 + $0x8] sm:$0xff]
    %v1478 = vld [vmem:[%s29 + $0x10] sm:$0xff]
    %v1479 = vld [vmem:[%s29 + $0x18] sm:$0xff]
    %v1480 = vld [vmem:[%s31] sm:$0x1]
    %v1482 = vperm.slane %v1480, 0
    %v1485 = vsel %vm165, %v1474, 0
    %v1488 = vsel %vm165, %v1475, 0
    %1490 = vmatpush.msra.mxu0 0.0
    %1491 = vmatpush.msra.mxu0 0.0
    %1492 = vmatpush.msra.mxu0 0.0
    %1493 = vmatpush.msra.mxu0 0.0
    %1494 = vmatpush.msra.mxu0 0.0
    %1495 = vmatpush.msra.mxu0 0.0
    %1496 = vmatpush.msra.mxu0 0.0
    %1497 = vmatpush.msra.mxu0 0.0
    %1498 = vmatpush.msra.mxu0 0.0
    %1499 = vmatpush.msra.mxu0 0.0
    %1500 = vmatpush.msra.mxu0 0.0
    %1501 = vmatpush.msra.mxu0 0.0
    %1502 = vmatpush.msra.mxu0 %v1479
    %1503 = vmatpush.msra.mxu0 %v1478
    %1504 = vmatpush.msra.mxu0 %v1477
    %1505 = vmatpush.msra.mxu0 %v1476
    %1506 = vmatmul.f32.gmra.mxu0 %v1485
    %v1507 = vpop.f32.mrf.mxu0
    %v1508 = vadd.f32 %v1482, %v1507
    %1509 = vmatmul.f32.gmra.mxu0 %v1488
    %v1510 = vpop.f32.mrf.mxu0
    %v1511 = vadd.f32 %v1482, %v1510
    %1512 = vdwg.mxu0
    %v1513 = vld [vmem:[%s33] sm:$0xff]
    %v1514 = vld [vmem:[%s33 + $0x8] sm:$0xff]
    %v1515 = vld [vmem:[%s33 + $0x10] sm:$0xff]
    %v1516 = vld [vmem:[%s33 + $0x18] sm:$0xff]
    %v1517 = vld [vmem:[%s35] sm:$0x1]
    %1519 = vrot.lane.b32.xlu0 %v1508, 96
    %v1520 = vpop.permute.xlu0 %1519
    %v1521 = vsel %vm203, %v1508, 0
    %v1523 = vsel %vm203, %v1520, 0
    %1525 = vmatpush.xpose.msra.mxu0 0.0
    %1526 = vmatpush.xpose.msra.mxu0 0.0
    %1527 = vmatpush.xpose.msra.mxu0 0.0
    %1528 = vmatpush.xpose.msra.mxu0 0.0
    %1529 = vmatpush.xpose.msra.mxu0 0.0
    %1530 = vmatpush.xpose.msra.mxu0 0.0
    %1531 = vmatpush.xpose.msra.mxu0 0.0
    %1532 = vmatpush.xpose.msra.mxu0 0.0
    %1533 = vmatpush.xpose.msra.mxu0 0.0
    %1534 = vmatpush.xpose.msra.mxu0 0.0
    %1535 = vmatpush.xpose.msra.mxu0 0.0
    %1536 = vmatpush.xpose.msra.mxu0 0.0
    %1537 = vmatpush.xpose.msra.mxu0 0.0
    %1538 = vmatpush.xpose.msra.mxu0 0.0
    %1539 = vmatpush.xpose.msra.mxu0 0.0
    %1540 = vmatpush.xpose.msra.mxu0 %v1523
    %1541 = vmatmul.f32.gmra.mxu0 %v1521
    %v1542 = vpop.f32.mrf.mxu0
    %v1543 = vadd.f32 0.0, %v1542
    %1544 = vdwg.mxu0
    %v1545 = vmul.f32 %v1543, 0.25
    %v1546 = vadd.f32 %v1545, %v152
    %v1547 = vsel %vm231, %v1546, -inf
    %1548 = vmax.xlane.f32.xlu0 %v1547
    %v1549 = vpop.xlane.xlu0 %1548
    %v1550 = vsub.f32 %v1546, %v1549
    %v1551 = vmul.f32 %v1550, 1.442695
    %v1552 = vpow.pop %v1551
    %v1553 = vsel %vm231, %v1552, 0.0
    %1554 = vadd.xlane.f32.xlu0 %v1553
    %v1555 = vpop.xlane.xlu0 %1554
    %v1556 = vrcp.pop %v1555
    %v1557 = vmul.f32 %v1555, %v1556
    %v1558 = vsub.f32 1.0, %v1557
    %v1559 = vmul.f32 %v1556, %v1558
    %v1560 = vadd.f32 %v1556, %v1559
    %vm1561 = vweird.f32 %v1555
    %vm1562 = vweird.f32 %v1556
    %vm1563 = vmor %vm1561, %vm1562
    %v1564 = vsel %vm1563, %v1556, %v1560
    %v1565 = vand.u32 2147483647, %v1555
    %vm1566 = vcmp.eq.f32.partialorder %v1565, 8.507059e+37
    %v1567 = vand.u32 %v1555, 2147483648
    %v1568 = vor.u32 1.1754944e-38, %v1567
    %v1569 = vsel %vm1566, %v1568, %v1564
    %v1570 = vmul.f32 %v1552, %v1569
    %1571 = vrot.lane.b32.xlu0 %v1508, 64
    %v1572 = vpop.permute.xlu0 %1571
    %v1575 = vsel %vm231, %v1570, 0
    %1577 = vmatpush.msra.mxu0 0.0
    %1578 = vmatpush.msra.mxu0 0.0
    %1579 = vmatpush.msra.mxu0 0.0
    %1580 = vmatpush.msra.mxu0 0.0
    %1581 = vmatpush.msra.mxu0 0.0
    %1582 = vmatpush.msra.mxu0 0.0
    %1583 = vmatpush.msra.mxu0 0.0
    %1584 = vmatpush.msra.mxu0 0.0
    %1585 = vmatpush.msra.mxu0 0.0
    %1586 = vmatpush.msra.mxu0 0.0
    %1587 = vmatpush.msra.mxu0 0.0
    %1588 = vmatpush.msra.mxu0 0.0
    %1589 = vmatpush.msra.mxu0 0.0
    %1590 = vmatpush.msra.mxu0 0.0
    %1591 = vmatpush.msra.mxu0 0.0
    %1592 = vmatpush.msra.mxu0 %v1572
    %1593 = vmatmul.f32.gmra.mxu0 %v1575
    %v1594 = vpop.f32.mrf.mxu0
    %v1595 = vadd.f32 0.0, %v1594
    %1596 = vdwg.mxu0
    %1597 = vrot.lane.b32.xlu0 %v1508, 112
    %v1598 = vpop.permute.xlu0 %1597
    %1599 = vrot.lane.b32.xlu0 %v1508, 80
    %v1600 = vpop.permute.xlu0 %1599
    %v1601 = vsel %vm203, %v1598, 0
    %v1603 = vsel %vm203, %v1600, 0
    %1605 = vmatpush.xpose.msra.mxu0 0.0
    %1606 = vmatpush.xpose.msra.mxu0 0.0
    %1607 = vmatpush.xpose.msra.mxu0 0.0
    %1608 = vmatpush.xpose.msra.mxu0 0.0
    %1609 = vmatpush.xpose.msra.mxu0 0.0
    %1610 = vmatpush.xpose.msra.mxu0 0.0
    %1611 = vmatpush.xpose.msra.mxu0 0.0
    %1612 = vmatpush.xpose.msra.mxu0 0.0
    %1613 = vmatpush.xpose.msra.mxu0 0.0
    %1614 = vmatpush.xpose.msra.mxu0 0.0
    %1615 = vmatpush.xpose.msra.mxu0 0.0
    %1616 = vmatpush.xpose.msra.mxu0 0.0
    %1617 = vmatpush.xpose.msra.mxu0 0.0
    %1618 = vmatpush.xpose.msra.mxu0 0.0
    %1619 = vmatpush.xpose.msra.mxu0 0.0
    %1620 = vmatpush.xpose.msra.mxu0 %v1603
    %1621 = vmatmul.f32.gmra.mxu0 %v1601
    %v1622 = vpop.f32.mrf.mxu0
    %v1623 = vadd.f32 0.0, %v1622
    %1624 = vdwg.mxu0
    %v1625 = vmul.f32 %v1623, 0.25
    %v1626 = vadd.f32 %v1625, %v152
    %v1627 = vsel %vm231, %v1626, -inf
    %1628 = vmax.xlane.f32.xlu0 %v1627
    %v1629 = vpop.xlane.xlu0 %1628
    %v1630 = vsub.f32 %v1626, %v1629
    %v1631 = vmul.f32 %v1630, 1.442695
    %v1632 = vpow.pop %v1631
    %v1633 = vsel %vm231, %v1632, 0.0
    %1634 = vadd.xlane.f32.xlu0 %v1633
    %v1635 = vpop.xlane.xlu0 %1634
    %v1636 = vrcp.pop %v1635
    %v1637 = vmul.f32 %v1635, %v1636
    %v1638 = vsub.f32 1.0, %v1637
    %v1639 = vmul.f32 %v1636, %v1638
    %v1640 = vadd.f32 %v1636, %v1639
    %vm1641 = vweird.f32 %v1635
    %vm1642 = vweird.f32 %v1636
    %vm1643 = vmor %vm1641, %vm1642
    %v1644 = vsel %vm1643, %v1636, %v1640
    %v1645 = vand.u32 2147483647, %v1635
    %vm1646 = vcmp.eq.f32.partialorder %v1645, 8.507059e+37
    %v1647 = vand.u32 %v1635, 2147483648
    %v1648 = vor.u32 1.1754944e-38, %v1647
    %v1649 = vsel %vm1646, %v1648, %v1644
    %v1650 = vmul.f32 %v1632, %v1649
    %1651 = vrot.lane.b32.xlu0 %v1508, 48
    %v1652 = vpop.permute.xlu0 %1651
    %v1655 = vsel %vm231, %v1650, 0
    %1657 = vmatpush.msra.mxu0 0.0
    %1658 = vmatpush.msra.mxu0 0.0
    %1659 = vmatpush.msra.mxu0 0.0
    %1660 = vmatpush.msra.mxu0 0.0
    %1661 = vmatpush.msra.mxu0 0.0
    %1662 = vmatpush.msra.mxu0 0.0
    %1663 = vmatpush.msra.mxu0 0.0
    %1664 = vmatpush.msra.mxu0 0.0
    %1665 = vmatpush.msra.mxu0 0.0
    %1666 = vmatpush.msra.mxu0 0.0
    %1667 = vmatpush.msra.mxu0 0.0
    %1668 = vmatpush.msra.mxu0 0.0
    %1669 = vmatpush.msra.mxu0 0.0
    %1670 = vmatpush.msra.mxu0 0.0
    %1671 = vmatpush.msra.mxu0 0.0
    %1672 = vmatpush.msra.mxu0 %v1652
    %1673 = vmatmul.f32.gmra.mxu0 %v1655
    %v1674 = vpop.f32.mrf.mxu0
    %v1675 = vadd.f32 0.0, %v1674
    %1676 = vdwg.mxu0
    %v1678 = vsel %vm203, %v1675, 0
    %1680 = vmatpush.msra.mxu0 0.0
    %1681 = vmatpush.msra.mxu0 0.0
    %1682 = vmatpush.msra.mxu0 0.0
    %1683 = vmatpush.msra.mxu0 0.0
    %1684 = vmatpush.msra.mxu0 0.0
    %1685 = vmatpush.msra.mxu0 0.0
    %1686 = vmatpush.msra.mxu0 0.0
    %1687 = vmatpush.msra.mxu0 0.0
    %1688 = vmatpush.msra.mxu0 0.0
    %1689 = vmatpush.msra.mxu0 0.0
    %1690 = vmatpush.msra.mxu0 0.0
    %1691 = vmatpush.msra.mxu0 0.0
    %1692 = vmatpush.msra.mxu0 0.0
    %1693 = vmatpush.msra.mxu0 0.0
    %1694 = vmatpush.msra.mxu0 %v1516
    %1695 = vmatpush.msra.mxu0 %v1515
    %1696 = vmatmul.f32.gmra.mxu0 %v1678
    %v1697 = vpop.f32.mrf.mxu0
    %v1698 = vadd.f32 0.0, %v1697
    %1699 = vdwg.mxu0
    %v1701 = vsel %vm203, %v1595, 0
    %1703 = vmatpush.msra.mxu0 0.0
    %1704 = vmatpush.msra.mxu0 0.0
    %1705 = vmatpush.msra.mxu0 0.0
    %1706 = vmatpush.msra.mxu0 0.0
    %1707 = vmatpush.msra.mxu0 0.0
    %1708 = vmatpush.msra.mxu0 0.0
    %1709 = vmatpush.msra.mxu0 0.0
    %1710 = vmatpush.msra.mxu0 0.0
    %1711 = vmatpush.msra.mxu0 0.0
    %1712 = vmatpush.msra.mxu0 0.0
    %1713 = vmatpush.msra.mxu0 0.0
    %1714 = vmatpush.msra.mxu0 0.0
    %1715 = vmatpush.msra.mxu0 0.0
    %1716 = vmatpush.msra.mxu0 0.0
    %1717 = vmatpush.msra.mxu0 %v1514
    %1718 = vmatpush.msra.mxu0 %v1513
    %1719 = vmatmul.f32.gmra.mxu0 %v1701
    %v1720 = vpop.f32.mrf.mxu0
    %v1721 = vadd.f32 %v1698, %v1720
    %1722 = vdwg.mxu0
    %v1724 = vperm.slane %v1517, 0
    %v1726 = vadd.f32 %v1721, %v1724
    %1727 = vst.msk [vmem:[#allocation2] sm:$0xff] %vm165, %v1726
    %1729 = vrot.lane.b32.xlu0 %v1511, 96
    %v1730 = vpop.permute.xlu0 %1729
    %v1731 = vsel %vm203, %v1511, 0
    %v1733 = vsel %vm203, %v1730, 0
    %1735 = vmatpush.xpose.msra.mxu0 0.0
    %1736 = vmatpush.xpose.msra.mxu0 0.0
    %1737 = vmatpush.xpose.msra.mxu0 0.0
    %1738 = vmatpush.xpose.msra.mxu0 0.0
    %1739 = vmatpush.xpose.msra.mxu0 0.0
    %1740 = vmatpush.xpose.msra.mxu0 0.0
    %1741 = vmatpush.xpose.msra.mxu0 0.0
    %1742 = vmatpush.xpose.msra.mxu0 0.0
    %1743 = vmatpush.xpose.msra.mxu0 0.0
    %1744 = vmatpush.xpose.msra.mxu0 0.0
    %1745 = vmatpush.xpose.msra.mxu0 0.0
    %1746 = vmatpush.xpose.msra.mxu0 0.0
    %1747 = vmatpush.xpose.msra.mxu0 0.0
    %1748 = vmatpush.xpose.msra.mxu0 0.0
    %1749 = vmatpush.xpose.msra.mxu0 0.0
    %1750 = vmatpush.xpose.msra.mxu0 %v1733
    %1751 = vmatmul.f32.gmra.mxu0 %v1731
    %v1752 = vpop.f32.mrf.mxu0
    %v1753 = vadd.f32 0.0, %v1752
    %1754 = vdwg.mxu0
    %v1755 = vmul.f32 %v1753, 0.25
    %v1756 = vadd.f32 %v1755, %v154
    %v1757 = vsel %vm231, %v1756, -inf
    %1758 = vmax.xlane.f32.xlu0 %v1757
    %v1759 = vpop.xlane.xlu0 %1758
    %v1760 = vsub.f32 %v1756, %v1759
    %v1761 = vmul.f32 %v1760, 1.442695
    %v1762 = vpow.pop %v1761
    %v1763 = vsel %vm231, %v1762, 0.0
    %1764 = vadd.xlane.f32.xlu0 %v1763
    %v1765 = vpop.xlane.xlu0 %1764
    %v1766 = vrcp.pop %v1765
    %v1767 = vmul.f32 %v1765, %v1766
    %v1768 = vsub.f32 1.0, %v1767
    %v1769 = vmul.f32 %v1766, %v1768
    %v1770 = vadd.f32 %v1766, %v1769
    %vm1771 = vweird.f32 %v1765
    %vm1772 = vweird.f32 %v1766
    %vm1773 = vmor %vm1771, %vm1772
    %v1774 = vsel %vm1773, %v1766, %v1770
    %v1775 = vand.u32 2147483647, %v1765
    %vm1776 = vcmp.eq.f32.partialorder %v1775, 8.507059e+37
    %v1777 = vand.u32 %v1765, 2147483648
    %v1778 = vor.u32 1.1754944e-38, %v1777
    %v1779 = vsel %vm1776, %v1778, %v1774
    %v1780 = vmul.f32 %v1762, %v1779
    %1781 = vrot.lane.b32.xlu0 %v1511, 64
    %v1782 = vpop.permute.xlu0 %1781
    %v1785 = vsel %vm231, %v1780, 0
    %1787 = vmatpush.msra.mxu0 0.0
    %1788 = vmatpush.msra.mxu0 0.0
    %1789 = vmatpush.msra.mxu0 0.0
    %1790 = vmatpush.msra.mxu0 0.0
    %1791 = vmatpush.msra.mxu0 0.0
    %1792 = vmatpush.msra.mxu0 0.0
    %1793 = vmatpush.msra.mxu0 0.0
    %1794 = vmatpush.msra.mxu0 0.0
    %1795 = vmatpush.msra.mxu0 0.0
    %1796 = vmatpush.msra.mxu0 0.0
    %1797 = vmatpush.msra.mxu0 0.0
    %1798 = vmatpush.msra.mxu0 0.0
    %1799 = vmatpush.msra.mxu0 0.0
    %1800 = vmatpush.msra.mxu0 0.0
    %1801 = vmatpush.msra.mxu0 0.0
    %1802 = vmatpush.msra.mxu0 %v1782
    %1803 = vmatmul.f32.gmra.mxu0 %v1785
    %v1804 = vpop.f32.mrf.mxu0
    %v1805 = vadd.f32 0.0, %v1804
    %1806 = vdwg.mxu0
    %1807 = vrot.lane.b32.xlu0 %v1511, 112
    %v1808 = vpop.permute.xlu0 %1807
    %1809 = vrot.lane.b32.xlu0 %v1511, 80
    %v1810 = vpop.permute.xlu0 %1809
    %v1811 = vsel %vm203, %v1808, 0
    %v1813 = vsel %vm203, %v1810, 0
    %1815 = vmatpush.xpose.msra.mxu0 0.0
    %1816 = vmatpush.xpose.msra.mxu0 0.0
    %1817 = vmatpush.xpose.msra.mxu0 0.0
    %1818 = vmatpush.xpose.msra.mxu0 0.0
    %1819 = vmatpush.xpose.msra.mxu0 0.0
    %1820 = vmatpush.xpose.msra.mxu0 0.0
    %1821 = vmatpush.xpose.msra.mxu0 0.0
    %1822 = vmatpush.xpose.msra.mxu0 0.0
    %1823 = vmatpush.xpose.msra.mxu0 0.0
    %1824 = vmatpush.xpose.msra.mxu0 0.0
    %1825 = vmatpush.xpose.msra.mxu0 0.0
    %1826 = vmatpush.xpose.msra.mxu0 0.0
    %1827 = vmatpush.xpose.msra.mxu0 0.0
    %1828 = vmatpush.xpose.msra.mxu0 0.0
    %1829 = vmatpush.xpose.msra.mxu0 0.0
    %1830 = vmatpush.xpose.msra.mxu0 %v1813
    %1831 = vmatmul.f32.gmra.mxu0 %v1811
    %v1832 = vpop.f32.mrf.mxu0
    %v1833 = vadd.f32 0.0, %v1832
    %1834 = vdwg.mxu0
    %v1835 = vmul.f32 %v1833, 0.25
    %v1836 = vadd.f32 %v1835, %v154
    %v1837 = vsel %vm231, %v1836, -inf
    %1838 = vmax.xlane.f32.xlu0 %v1837
    %v1839 = vpop.xlane.xlu0 %1838
    %v1840 = vsub.f32 %v1836, %v1839
    %v1841 = vmul.f32 %v1840, 1.442695
    %v1842 = vpow.pop %v1841
    %v1843 = vsel %vm231, %v1842, 0.0
    %1844 = vadd.xlane.f32.xlu0 %v1843
    %v1845 = vpop.xlane.xlu0 %1844
    %v1846 = vrcp.pop %v1845
    %v1847 = vmul.f32 %v1845, %v1846
    %v1848 = vsub.f32 1.0, %v1847
    %v1849 = vmul.f32 %v1846, %v1848
    %v1850 = vadd.f32 %v1846, %v1849
    %vm1851 = vweird.f32 %v1845
    %vm1852 = vweird.f32 %v1846
    %vm1853 = vmor %vm1851, %vm1852
    %v1854 = vsel %vm1853, %v1846, %v1850
    %v1855 = vand.u32 2147483647, %v1845
    %vm1856 = vcmp.eq.f32.partialorder %v1855, 8.507059e+37
    %v1857 = vand.u32 %v1845, 2147483648
    %v1858 = vor.u32 1.1754944e-38, %v1857
    %v1859 = vsel %vm1856, %v1858, %v1854
    %v1860 = vmul.f32 %v1842, %v1859
    %1861 = vrot.lane.b32.xlu0 %v1511, 48
    %v1862 = vpop.permute.xlu0 %1861
    %v1865 = vsel %vm231, %v1860, 0
    %1867 = vmatpush.msra.mxu0 0.0
    %1868 = vmatpush.msra.mxu0 0.0
    %1869 = vmatpush.msra.mxu0 0.0
    %1870 = vmatpush.msra.mxu0 0.0
    %1871 = vmatpush.msra.mxu0 0.0
    %1872 = vmatpush.msra.mxu0 0.0
    %1873 = vmatpush.msra.mxu0 0.0
    %1874 = vmatpush.msra.mxu0 0.0
    %1875 = vmatpush.msra.mxu0 0.0
    %1876 = vmatpush.msra.mxu0 0.0
    %1877 = vmatpush.msra.mxu0 0.0
    %1878 = vmatpush.msra.mxu0 0.0
    %1879 = vmatpush.msra.mxu0 0.0
    %1880 = vmatpush.msra.mxu0 0.0
    %1881 = vmatpush.msra.mxu0 0.0
    %1882 = vmatpush.msra.mxu0 %v1862
    %1883 = vmatmul.f32.gmra.mxu0 %v1865
    %v1884 = vpop.f32.mrf.mxu0
    %v1885 = vadd.f32 0.0, %v1884
    %1886 = vdwg.mxu0
    %v1888 = vsel %vm203, %v1885, 0
    %1890 = vmatpush.msra.mxu0 0.0
    %1891 = vmatpush.msra.mxu0 0.0
    %1892 = vmatpush.msra.mxu0 0.0
    %1893 = vmatpush.msra.mxu0 0.0
    %1894 = vmatpush.msra.mxu0 0.0
    %1895 = vmatpush.msra.mxu0 0.0
    %1896 = vmatpush.msra.mxu0 0.0
    %1897 = vmatpush.msra.mxu0 0.0
    %1898 = vmatpush.msra.mxu0 0.0
    %1899 = vmatpush.msra.mxu0 0.0
    %1900 = vmatpush.msra.mxu0 0.0
    %1901 = vmatpush.msra.mxu0 0.0
    %1902 = vmatpush.msra.mxu0 0.0
    %1903 = vmatpush.msra.mxu0 0.0
    %1904 = vmatpush.msra.mxu0 %v1516
    %1905 = vmatpush.msra.mxu0 %v1515
    %1906 = vmatmul.f32.gmra.mxu0 %v1888
    %v1907 = vpop.f32.mrf.mxu0
    %v1908 = vadd.f32 0.0, %v1907
    %1909 = vdwg.mxu0
    %v1911 = vsel %vm203, %v1805, 0
    %1913 = vmatpush.msra.mxu0 0.0
    %1914 = vmatpush.msra.mxu0 0.0
    %1915 = vmatpush.msra.mxu0 0.0
    %1916 = vmatpush.msra.mxu0 0.0
    %1917 = vmatpush.msra.mxu0 0.0
    %1918 = vmatpush.msra.mxu0 0.0
    %1919 = vmatpush.msra.mxu0 0.0
    %1920 = vmatpush.msra.mxu0 0.0
    %1921 = vmatpush.msra.mxu0 0.0
    %1922 = vmatpush.msra.mxu0 0.0
    %1923 = vmatpush.msra.mxu0 0.0
    %1924 = vmatpush.msra.mxu0 0.0
    %1925 = vmatpush.msra.mxu0 0.0
    %1926 = vmatpush.msra.mxu0 0.0
    %1927 = vmatpush.msra.mxu0 %v1514
    %1928 = vmatpush.msra.mxu0 %v1513
    %1929 = vmatmul.f32.gmra.mxu0 %v1911
    %v1930 = vpop.f32.mrf.mxu0
    %v1931 = vadd.f32 %v1908, %v1930
    %1932 = vdwg.mxu0
    %v1933 = vadd.f32 %v1931, %v1724
    %1934 = vst.msk [vmem:[#allocation2 + $0x8] sm:$0xff] %vm165, %v1933
    %v1935 = vld [vmem:[#allocation2] sm:$0xff]
    %v1936 = vld [vmem:[#allocation2 + $0x8] sm:$0xff]
    %v1937 = vadd.f32 %v1474, %v1935
    %v1938 = vadd.f32 %v1475, %v1936
    %v1939 = vld [vmem:[%s37] sm:$0x3]
    %v1940 = vsel %vm165, %v1937, 0.0
    %1941 = vadd.xlane.f32.xlu0 %v1940
    %v1942 = vpop.xlane.xlu0 %1941
    %v1943 = vsel %vm165, %v1938, 0.0
    %1944 = vadd.xlane.f32.xlu0 %v1943
    %v1945 = vpop.xlane.xlu0 %1944
    %v1946 = vmul.f32 %v1942, %v638
    %v1947 = vmul.f32 %v1945, %v638
    %v1948 = vsub.f32 %v1937, %v1946
    %v1949 = vsub.f32 %v1938, %v1947
    %v1950 = vmul.f32 %v1948, %v1948
    %v1951 = vmul.f32 %v1949, %v1949
    %v1952 = vsel %vm165, %v1950, 0.0
    %1953 = vadd.xlane.f32.xlu0 %v1952
    %v1954 = vpop.xlane.xlu0 %1953
    %v1955 = vsel %vm165, %v1951, 0.0
    %1956 = vadd.xlane.f32.xlu0 %v1955
    %v1957 = vpop.xlane.xlu0 %1956
    %v1958 = vmul.f32 %v1954, %v638
    %v1959 = vmul.f32 %v1957, %v638
    %v1960 = vadd.f32 %v1958, 1e-05
    %v1961 = vadd.f32 %v1959, 1e-05
    %v1962 = vrsqrt.pop %v1960
    %v1963 = vmul.f32 %v1962, %v1960
    %v1964 = vmul.f32 %v1963, %v1962
    %v1965 = vmul.f32 0.5, %v1964
    %v1966 = vsub.f32 1.5, %v1965
    %v1967 = vmul.f32 %v1962, %v1966
    %vm1968 = vweird.f32 %v1960
    %vm1969 = vweird.f32 %v1962
    %vm1970 = vmor %vm1968, %vm1969
    %v1971 = vsel %vm1970, %v1962, %v1967
    %v1972 = vrsqrt.pop %v1961
    %v1973 = vmul.f32 %v1972, %v1961
    %v1974 = vmul.f32 %v1973, %v1972
    %v1975 = vmul.f32 0.5, %v1974
    %v1976 = vsub.f32 1.5, %v1975
    %v1977 = vmul.f32 %v1972, %v1976
    %vm1978 = vweird.f32 %v1961
    %vm1979 = vweird.f32 %v1972
    %vm1980 = vmor %vm1978, %vm1979
    %v1981 = vsel %vm1980, %v1972, %v1977
    %v1982 = vmul.f32 %v1948, %v1971
    %v1983 = vmul.f32 %v1949, %v1981
    %v1984 = vperm.slane %v1939, 0
    %v1985 = vmul.f32 %v1982, %v1984
    %v1986 = vmul.f32 %v1983, %v1984
    %v1987 = vperm.slane %v1939, 1
    %v1988 = vadd.f32 %v1985, %v1987
    %v1989 = vadd.f32 %v1986, %v1987
    %v1990 = vld [vmem:[%s39] sm:$0xff]
    %v1991 = vld [vmem:[%s39 + $0x8] sm:$0xff]
    %v1992 = vld [vmem:[%s39 + $0x10] sm:$0xff]
    %v1993 = vld [vmem:[%s39 + $0x18] sm:$0xff]
    %v1994 = vld [vmem:[%s41] sm:$0x1]
    %v1996 = vperm.slane %v1994, 0
    %v1999 = vsel %vm165, %v1988, 0
    %v2002 = vsel %vm165, %v1989, 0
    %2004 = vmatpush.msra.mxu0 0.0
    %2005 = vmatpush.msra.mxu0 0.0
    %2006 = vmatpush.msra.mxu0 0.0
    %2007 = vmatpush.msra.mxu0 0.0
    %2008 = vmatpush.msra.mxu0 0.0
    %2009 = vmatpush.msra.mxu0 0.0
    %2010 = vmatpush.msra.mxu0 0.0
    %2011 = vmatpush.msra.mxu0 0.0
    %2012 = vmatpush.msra.mxu0 0.0
    %2013 = vmatpush.msra.mxu0 0.0
    %2014 = vmatpush.msra.mxu0 0.0
    %2015 = vmatpush.msra.mxu0 0.0
    %2016 = vmatpush.msra.mxu0 %v1993
    %2017 = vmatpush.msra.mxu0 %v1992
    %2018 = vmatpush.msra.mxu0 %v1991
    %2019 = vmatpush.msra.mxu0 %v1990
    %2020 = vmatmul.f32.gmra.mxu0 %v1999
    %v2021 = vpop.f32.mrf.mxu0
    %v2022 = vadd.f32 %v1996, %v2021
    %2023 = vmatmul.f32.gmra.mxu0 %v2002
    %v2024 = vpop.f32.mrf.mxu0
    %v2025 = vadd.f32 %v1996, %v2024
    %2026 = vdwg.mxu0
    %v2027 = vld [vmem:[%s43] sm:$0xff]
    %v2028 = vld [vmem:[%s43 + $0x8] sm:$0xff]
    %v2029 = vld [vmem:[%s43 + $0x10] sm:$0xff]
    %v2030 = vld [vmem:[%s43 + $0x18] sm:$0xff]
    %v2031 = vld [vmem:[%s45] sm:$0x1]
    %v2033 = vperm.slane %v2031, 0
    %v2036 = vsel %vm165, %v1472, 0
    %v2039 = vsel %vm165, %v1473, 0
    %2041 = vmatpush.msra.mxu0 0.0
    %2042 = vmatpush.msra.mxu0 0.0
    %2043 = vmatpush.msra.mxu0 0.0
    %2044 = vmatpush.msra.mxu0 0.0
    %2045 = vmatpush.msra.mxu0 0.0
    %2046 = vmatpush.msra.mxu0 0.0
    %2047 = vmatpush.msra.mxu0 0.0
    %2048 = vmatpush.msra.mxu0 0.0
    %2049 = vmatpush.msra.mxu0 0.0
    %2050 = vmatpush.msra.mxu0 0.0
    %2051 = vmatpush.msra.mxu0 0.0
    %2052 = vmatpush.msra.mxu0 0.0
    %2053 = vmatpush.msra.mxu0 %v2030
    %2054 = vmatpush.msra.mxu0 %v2029
    %2055 = vmatpush.msra.mxu0 %v2028
    %2056 = vmatpush.msra.mxu0 %v2027
    %2057 = vmatmul.f32.gmra.mxu0 %v2036
    %v2058 = vpop.f32.mrf.mxu0
    %v2059 = vadd.f32 %v2033, %v2058
    %2060 = vmatmul.f32.gmra.mxu0 %v2039
    %v2061 = vpop.f32.mrf.mxu0
    %v2062 = vadd.f32 %v2033, %v2061
    %2063 = vdwg.mxu0
    %v2064 = vld [vmem:[%s47] sm:$0xff]
    %v2065 = vld [vmem:[%s47 + $0x8] sm:$0xff]
    %v2066 = vld [vmem:[%s47 + $0x10] sm:$0xff]
    %v2067 = vld [vmem:[%s47 + $0x18] sm:$0xff]
    %v2068 = vld [vmem:[%s49] sm:$0x1]
    %v2070 = vsel %vm203, %v2022, 0
    %v2073 = vsel %vm203, %v2059, 0
    %2075 = vmatpush.xpose.msra.mxu0 0.0
    %2076 = vmatpush.xpose.msra.mxu0 0.0
    %2077 = vmatpush.xpose.msra.mxu0 0.0
    %2078 = vmatpush.xpose.msra.mxu0 0.0
    %2079 = vmatpush.xpose.msra.mxu0 0.0
    %2080 = vmatpush.xpose.msra.mxu0 0.0
    %2081 = vmatpush.xpose.msra.mxu0 0.0
    %2082 = vmatpush.xpose.msra.mxu0 0.0
    %2083 = vmatpush.xpose.msra.mxu0 0.0
    %2084 = vmatpush.xpose.msra.mxu0 0.0
    %2085 = vmatpush.xpose.msra.mxu0 0.0
    %2086 = vmatpush.xpose.msra.mxu0 0.0
    %2087 = vmatpush.xpose.msra.mxu0 0.0
    %2088 = vmatpush.xpose.msra.mxu0 0.0
    %2089 = vmatpush.xpose.msra.mxu0 0.0
    %2090 = vmatpush.xpose.msra.mxu0 %v2073
    %2091 = vmatmul.f32.gmra.mxu0 %v2070
    %v2092 = vpop.f32.mrf.mxu0
    %v2093 = vadd.f32 0.0, %v2092
    %2094 = vdwg.mxu0
    %v2095 = vmul.f32 %v2093, 0.25
    %v2096 = vadd.f32 %v2095, %v229
    %v2097 = vsel %vm231, %v2096, -inf
    %2098 = vmax.xlane.f32.xlu0 %v2097
    %v2099 = vpop.xlane.xlu0 %2098
    %v2100 = vsub.f32 %v2096, %v2099
    %v2101 = vmul.f32 %v2100, 1.442695
    %v2102 = vpow.pop %v2101
    %v2103 = vsel %vm231, %v2102, 0.0
    %2104 = vadd.xlane.f32.xlu0 %v2103
    %v2105 = vpop.xlane.xlu0 %2104
    %v2106 = vrcp.pop %v2105
    %v2107 = vmul.f32 %v2105, %v2106
    %v2108 = vsub.f32 1.0, %v2107
    %v2109 = vmul.f32 %v2106, %v2108
    %v2110 = vadd.f32 %v2106, %v2109
    %vm2111 = vweird.f32 %v2105
    %vm2112 = vweird.f32 %v2106
    %vm2113 = vmor %vm2111, %vm2112
    %v2114 = vsel %vm2113, %v2106, %v2110
    %v2115 = vand.u32 2147483647, %v2105
    %vm2116 = vcmp.eq.f32.partialorder %v2115, 8.507059e+37
    %v2117 = vand.u32 %v2105, 2147483648
    %v2118 = vor.u32 1.1754944e-38, %v2117
    %v2119 = vsel %vm2116, %v2118, %v2114
    %v2120 = vmul.f32 %v2102, %v2119
    %2121 = vrot.lane.b32.xlu0 %v2059, 96
    %v2122 = vpop.permute.xlu0 %2121
    %v2125 = vsel %vm231, %v2120, 0
    %2127 = vmatpush.msra.mxu0 0.0
    %2128 = vmatpush.msra.mxu0 0.0
    %2129 = vmatpush.msra.mxu0 0.0
    %2130 = vmatpush.msra.mxu0 0.0
    %2131 = vmatpush.msra.mxu0 0.0
    %2132 = vmatpush.msra.mxu0 0.0
    %2133 = vmatpush.msra.mxu0 0.0
    %2134 = vmatpush.msra.mxu0 0.0
    %2135 = vmatpush.msra.mxu0 0.0
    %2136 = vmatpush.msra.mxu0 0.0
    %2137 = vmatpush.msra.mxu0 0.0
    %2138 = vmatpush.msra.mxu0 0.0
    %2139 = vmatpush.msra.mxu0 0.0
    %2140 = vmatpush.msra.mxu0 0.0
    %2141 = vmatpush.msra.mxu0 0.0
    %2142 = vmatpush.msra.mxu0 %v2122
    %2143 = vmatmul.f32.gmra.mxu0 %v2125
    %v2144 = vpop.f32.mrf.mxu0
    %v2145 = vadd.f32 0.0, %v2144
    %2146 = vdwg.mxu0
    %2147 = vrot.lane.b32.xlu0 %v2022, 112
    %v2148 = vpop.permute.xlu0 %2147
    %2149 = vrot.lane.b32.xlu0 %v2059, 112
    %v2150 = vpop.permute.xlu0 %2149
    %v2151 = vsel %vm203, %v2148, 0
    %v2153 = vsel %vm203, %v2150, 0
    %2155 = vmatpush.xpose.msra.mxu0 0.0
    %2156 = vmatpush.xpose.msra.mxu0 0.0
    %2157 = vmatpush.xpose.msra.mxu0 0.0
    %2158 = vmatpush.xpose.msra.mxu0 0.0
    %2159 = vmatpush.xpose.msra.mxu0 0.0
    %2160 = vmatpush.xpose.msra.mxu0 0.0
    %2161 = vmatpush.xpose.msra.mxu0 0.0
    %2162 = vmatpush.xpose.msra.mxu0 0.0
    %2163 = vmatpush.xpose.msra.mxu0 0.0
    %2164 = vmatpush.xpose.msra.mxu0 0.0
    %2165 = vmatpush.xpose.msra.mxu0 0.0
    %2166 = vmatpush.xpose.msra.mxu0 0.0
    %2167 = vmatpush.xpose.msra.mxu0 0.0
    %2168 = vmatpush.xpose.msra.mxu0 0.0
    %2169 = vmatpush.xpose.msra.mxu0 0.0
    %2170 = vmatpush.xpose.msra.mxu0 %v2153
    %2171 = vmatmul.f32.gmra.mxu0 %v2151
    %v2172 = vpop.f32.mrf.mxu0
    %v2173 = vadd.f32 0.0, %v2172
    %2174 = vdwg.mxu0
    %v2175 = vmul.f32 %v2173, 0.25
    %v2176 = vadd.f32 %v2175, %v229
    %v2177 = vsel %vm231, %v2176, -inf
    %2178 = vmax.xlane.f32.xlu0 %v2177
    %v2179 = vpop.xlane.xlu0 %2178
    %v2180 = vsub.f32 %v2176, %v2179
    %v2181 = vmul.f32 %v2180, 1.442695
    %v2182 = vpow.pop %v2181
    %v2183 = vsel %vm231, %v2182, 0.0
    %2184 = vadd.xlane.f32.xlu0 %v2183
    %v2185 = vpop.xlane.xlu0 %2184
    %v2186 = vrcp.pop %v2185
    %v2187 = vmul.f32 %v2185, %v2186
    %v2188 = vsub.f32 1.0, %v2187
    %v2189 = vmul.f32 %v2186, %v2188
    %v2190 = vadd.f32 %v2186, %v2189
    %vm2191 = vweird.f32 %v2185
    %vm2192 = vweird.f32 %v2186
    %vm2193 = vmor %vm2191, %vm2192
    %v2194 = vsel %vm2193, %v2186, %v2190
    %v2195 = vand.u32 2147483647, %v2185
    %vm2196 = vcmp.eq.f32.partialorder %v2195, 8.507059e+37
    %v2197 = vand.u32 %v2185, 2147483648
    %v2198 = vor.u32 1.1754944e-38, %v2197
    %v2199 = vsel %vm2196, %v2198, %v2194
    %v2200 = vmul.f32 %v2182, %v2199
    %2201 = vrot.lane.b32.xlu0 %v2059, 80
    %v2202 = vpop.permute.xlu0 %2201
    %v2205 = vsel %vm231, %v2200, 0
    %2207 = vmatpush.msra.mxu0 0.0
    %2208 = vmatpush.msra.mxu0 0.0
    %2209 = vmatpush.msra.mxu0 0.0
    %2210 = vmatpush.msra.mxu0 0.0
    %2211 = vmatpush.msra.mxu0 0.0
    %2212 = vmatpush.msra.mxu0 0.0
    %2213 = vmatpush.msra.mxu0 0.0
    %2214 = vmatpush.msra.mxu0 0.0
    %2215 = vmatpush.msra.mxu0 0.0
    %2216 = vmatpush.msra.mxu0 0.0
    %2217 = vmatpush.msra.mxu0 0.0
    %2218 = vmatpush.msra.mxu0 0.0
    %2219 = vmatpush.msra.mxu0 0.0
    %2220 = vmatpush.msra.mxu0 0.0
    %2221 = vmatpush.msra.mxu0 0.0
    %2222 = vmatpush.msra.mxu0 %v2202
    %2223 = vmatmul.f32.gmra.mxu0 %v2205
    %v2224 = vpop.f32.mrf.mxu0
    %v2225 = vadd.f32 0.0, %v2224
    %2226 = vdwg.mxu0
    %v2228 = vsel %vm203, %v2225, 0
    %2230 = vmatpush.msra.mxu0 0.0
    %2231 = vmatpush.msra.mxu0 0.0
    %2232 = vmatpush.msra.mxu0 0.0
    %2233 = vmatpush.msra.mxu0 0.0
    %2234 = vmatpush.msra.mxu0 0.0
    %2235 = vmatpush.msra.mxu0 0.0
    %2236 = vmatpush.msra.mxu0 0.0
    %2237 = vmatpush.msra.mxu0 0.0
    %2238 = vmatpush.msra.mxu0 0.0
    %2239 = vmatpush.msra.mxu0 0.0
    %2240 = vmatpush.msra.mxu0 0.0
    %2241 = vmatpush.msra.mxu0 0.0
    %2242 = vmatpush.msra.mxu0 0.0
    %2243 = vmatpush.msra.mxu0 0.0
    %2244 = vmatpush.msra.mxu0 %v2067
    %2245 = vmatpush.msra.mxu0 %v2066
    %2246 = vmatmul.f32.gmra.mxu0 %v2228
    %v2247 = vpop.f32.mrf.mxu0
    %v2248 = vadd.f32 0.0, %v2247
    %2249 = vdwg.mxu0
    %v2251 = vsel %vm203, %v2145, 0
    %2253 = vmatpush.msra.mxu0 0.0
    %2254 = vmatpush.msra.mxu0 0.0
    %2255 = vmatpush.msra.mxu0 0.0
    %2256 = vmatpush.msra.mxu0 0.0
    %2257 = vmatpush.msra.mxu0 0.0
    %2258 = vmatpush.msra.mxu0 0.0
    %2259 = vmatpush.msra.mxu0 0.0
    %2260 = vmatpush.msra.mxu0 0.0
    %2261 = vmatpush.msra.mxu0 0.0
    %2262 = vmatpush.msra.mxu0 0.0
    %2263 = vmatpush.msra.mxu0 0.0
    %2264 = vmatpush.msra.mxu0 0.0
    %2265 = vmatpush.msra.mxu0 0.0
    %2266 = vmatpush.msra.mxu0 0.0
    %2267 = vmatpush.msra.mxu0 %v2065
    %2268 = vmatpush.msra.mxu0 %v2064
    %2269 = vmatmul.f32.gmra.mxu0 %v2251
    %v2270 = vpop.f32.mrf.mxu0
    %v2271 = vadd.f32 %v2248, %v2270
    %2272 = vdwg.mxu0
    %v2274 = vperm.slane %v2068, 0
    %v2276 = vadd.f32 %v2271, %v2274
    %2277 = vst.msk [vmem:[#allocation2] sm:$0xff] %vm165, %v2276
    %v2279 = vsel %vm203, %v2025, 0
    %v2282 = vsel %vm203, %v2062, 0
    %2284 = vmatpush.xpose.msra.mxu0 0.0
    %2285 = vmatpush.xpose.msra.mxu0 0.0
    %2286 = vmatpush.xpose.msra.mxu0 0.0
    %2287 = vmatpush.xpose.msra.mxu0 0.0
    %2288 = vmatpush.xpose.msra.mxu0 0.0
    %2289 = vmatpush.xpose.msra.mxu0 0.0
    %2290 = vmatpush.xpose.msra.mxu0 0.0
    %2291 = vmatpush.xpose.msra.mxu0 0.0
    %2292 = vmatpush.xpose.msra.mxu0 0.0
    %2293 = vmatpush.xpose.msra.mxu0 0.0
    %2294 = vmatpush.xpose.msra.mxu0 0.0
    %2295 = vmatpush.xpose.msra.mxu0 0.0
    %2296 = vmatpush.xpose.msra.mxu0 0.0
    %2297 = vmatpush.xpose.msra.mxu0 0.0
    %2298 = vmatpush.xpose.msra.mxu0 0.0
    %2299 = vmatpush.xpose.msra.mxu0 %v2282
    %2300 = vmatmul.f32.gmra.mxu0 %v2279
    %v2301 = vpop.f32.mrf.mxu0
    %v2302 = vadd.f32 0.0, %v2301
    %2303 = vdwg.mxu0
    %v2304 = vmul.f32 %v2302, 0.25
    %v2305 = vadd.f32 %v2304, %v441
    %v2306 = vsel %vm231, %v2305, -inf
    %2307 = vmax.xlane.f32.xlu0 %v2306
    %v2308 = vpop.xlane.xlu0 %2307
    %v2309 = vsub.f32 %v2305, %v2308
    %v2310 = vmul.f32 %v2309, 1.442695
    %v2311 = vpow.pop %v2310
    %v2312 = vsel %vm231, %v2311, 0.0
    %2313 = vadd.xlane.f32.xlu0 %v2312
    %v2314 = vpop.xlane.xlu0 %2313
    %v2315 = vrcp.pop %v2314
    %v2316 = vmul.f32 %v2314, %v2315
    %v2317 = vsub.f32 1.0, %v2316
    %v2318 = vmul.f32 %v2315, %v2317
    %v2319 = vadd.f32 %v2315, %v2318
    %vm2320 = vweird.f32 %v2314
    %vm2321 = vweird.f32 %v2315
    %vm2322 = vmor %vm2320, %vm2321
    %v2323 = vsel %vm2322, %v2315, %v2319
    %v2324 = vand.u32 2147483647, %v2314
    %vm2325 = vcmp.eq.f32.partialorder %v2324, 8.507059e+37
    %v2326 = vand.u32 %v2314, 2147483648
    %v2327 = vor.u32 1.1754944e-38, %v2326
    %v2328 = vsel %vm2325, %v2327, %v2323
    %v2329 = vmul.f32 %v2311, %v2328
    %2330 = vrot.lane.b32.xlu0 %v2062, 96
    %v2331 = vpop.permute.xlu0 %2330
    %v2334 = vsel %vm231, %v2329, 0
    %2336 = vmatpush.msra.mxu0 0.0
    %2337 = vmatpush.msra.mxu0 0.0
    %2338 = vmatpush.msra.mxu0 0.0
    %2339 = vmatpush.msra.mxu0 0.0
    %2340 = vmatpush.msra.mxu0 0.0
    %2341 = vmatpush.msra.mxu0 0.0
    %2342 = vmatpush.msra.mxu0 0.0
    %2343 = vmatpush.msra.mxu0 0.0
    %2344 = vmatpush.msra.mxu0 0.0
    %2345 = vmatpush.msra.mxu0 0.0
    %2346 = vmatpush.msra.mxu0 0.0
    %2347 = vmatpush.msra.mxu0 0.0
    %2348 = vmatpush.msra.mxu0 0.0
    %2349 = vmatpush.msra.mxu0 0.0
    %2350 = vmatpush.msra.mxu0 0.0
    %2351 = vmatpush.msra.mxu0 %v2331
    %2352 = vmatmul.f32.gmra.mxu0 %v2334
    %v2353 = vpop.f32.mrf.mxu0
    %v2354 = vadd.f32 0.0, %v2353
    %2355 = vdwg.mxu0
    %2356 = vrot.lane.b32.xlu0 %v2025, 112
    %v2357 = vpop.permute.xlu0 %2356
    %2358 = vrot.lane.b32.xlu0 %v2062, 112
    %v2359 = vpop.permute.xlu0 %2358
    %v2360 = vsel %vm203, %v2357, 0
    %v2362 = vsel %vm203, %v2359, 0
    %2364 = vmatpush.xpose.msra.mxu0 0.0
    %2365 = vmatpush.xpose.msra.mxu0 0.0
    %2366 = vmatpush.xpose.msra.mxu0 0.0
    %2367 = vmatpush.xpose.msra.mxu0 0.0
    %2368 = vmatpush.xpose.msra.mxu0 0.0
    %2369 = vmatpush.xpose.msra.mxu0 0.0
    %2370 = vmatpush.xpose.msra.mxu0 0.0
    %2371 = vmatpush.xpose.msra.mxu0 0.0
    %2372 = vmatpush.xpose.msra.mxu0 0.0
    %2373 = vmatpush.xpose.msra.mxu0 0.0
    %2374 = vmatpush.xpose.msra.mxu0 0.0
    %2375 = vmatpush.xpose.msra.mxu0 0.0
    %2376 = vmatpush.xpose.msra.mxu0 0.0
    %2377 = vmatpush.xpose.msra.mxu0 0.0
    %2378 = vmatpush.xpose.msra.mxu0 0.0
    %2379 = vmatpush.xpose.msra.mxu0 %v2362
    %2380 = vmatmul.f32.gmra.mxu0 %v2360
    %v2381 = vpop.f32.mrf.mxu0
    %v2382 = vadd.f32 0.0, %v2381
    %2383 = vdwg.mxu0
    %v2384 = vmul.f32 %v2382, 0.25
    %v2385 = vadd.f32 %v2384, %v441
    %v2386 = vsel %vm231, %v2385, -inf
    %2387 = vmax.xlane.f32.xlu0 %v2386
    %v2388 = vpop.xlane.xlu0 %2387
    %v2389 = vsub.f32 %v2385, %v2388
    %v2390 = vmul.f32 %v2389, 1.442695
    %v2391 = vpow.pop %v2390
    %v2392 = vsel %vm231, %v2391, 0.0
    %2393 = vadd.xlane.f32.xlu0 %v2392
    %v2394 = vpop.xlane.xlu0 %2393
    %v2395 = vrcp.pop %v2394
    %v2396 = vmul.f32 %v2394, %v2395
    %v2397 = vsub.f32 1.0, %v2396
    %v2398 = vmul.f32 %v2395, %v2397
    %v2399 = vadd.f32 %v2395, %v2398
    %vm2400 = vweird.f32 %v2394
    %vm2401 = vweird.f32 %v2395
    %vm2402 = vmor %vm2400, %vm2401
    %v2403 = vsel %vm2402, %v2395, %v2399
    %v2404 = vand.u32 2147483647, %v2394
    %vm2405 = vcmp.eq.f32.partialorder %v2404, 8.507059e+37
    %v2406 = vand.u32 %v2394, 2147483648
    %v2407 = vor.u32 1.1754944e-38, %v2406
    %v2408 = vsel %vm2405, %v2407, %v2403
    %v2409 = vmul.f32 %v2391, %v2408
    %2410 = vrot.lane.b32.xlu0 %v2062, 80
    %v2411 = vpop.permute.xlu0 %2410
    %v2414 = vsel %vm231, %v2409, 0
    %2416 = vmatpush.msra.mxu0 0.0
    %2417 = vmatpush.msra.mxu0 0.0
    %2418 = vmatpush.msra.mxu0 0.0
    %2419 = vmatpush.msra.mxu0 0.0
    %2420 = vmatpush.msra.mxu0 0.0
    %2421 = vmatpush.msra.mxu0 0.0
    %2422 = vmatpush.msra.mxu0 0.0
    %2423 = vmatpush.msra.mxu0 0.0
    %2424 = vmatpush.msra.mxu0 0.0
    %2425 = vmatpush.msra.mxu0 0.0
    %2426 = vmatpush.msra.mxu0 0.0
    %2427 = vmatpush.msra.mxu0 0.0
    %2428 = vmatpush.msra.mxu0 0.0
    %2429 = vmatpush.msra.mxu0 0.0
    %2430 = vmatpush.msra.mxu0 0.0
    %2431 = vmatpush.msra.mxu0 %v2411
    %2432 = vmatmul.f32.gmra.mxu0 %v2414
    %v2433 = vpop.f32.mrf.mxu0
    %v2434 = vadd.f32 0.0, %v2433
    %2435 = vdwg.mxu0
    %v2437 = vsel %vm203, %v2434, 0
    %2439 = vmatpush.msra.mxu0 0.0
    %2440 = vmatpush.msra.mxu0 0.0
    %2441 = vmatpush.msra.mxu0 0.0
    %2442 = vmatpush.msra.mxu0 0.0
    %2443 = vmatpush.msra.mxu0 0.0
    %2444 = vmatpush.msra.mxu0 0.0
    %2445 = vmatpush.msra.mxu0 0.0
    %2446 = vmatpush.msra.mxu0 0.0
    %2447 = vmatpush.msra.mxu0 0.0
    %2448 = vmatpush.msra.mxu0 0.0
    %2449 = vmatpush.msra.mxu0 0.0
    %2450 = vmatpush.msra.mxu0 0.0
    %2451 = vmatpush.msra.mxu0 0.0
    %2452 = vmatpush.msra.mxu0 0.0
    %2453 = vmatpush.msra.mxu0 %v2067
    %2454 = vmatpush.msra.mxu0 %v2066
    %2455 = vmatmul.f32.gmra.mxu0 %v2437
    %v2456 = vpop.f32.mrf.mxu0
    %v2457 = vadd.f32 0.0, %v2456
    %2458 = vdwg.mxu0
    %v2460 = vsel %vm203, %v2354, 0
    %2462 = vmatpush.msra.mxu0 0.0
    %2463 = vmatpush.msra.mxu0 0.0
    %2464 = vmatpush.msra.mxu0 0.0
    %2465 = vmatpush.msra.mxu0 0.0
    %2466 = vmatpush.msra.mxu0 0.0
    %2467 = vmatpush.msra.mxu0 0.0
    %2468 = vmatpush.msra.mxu0 0.0
    %2469 = vmatpush.msra.mxu0 0.0
    %2470 = vmatpush.msra.mxu0 0.0
    %2471 = vmatpush.msra.mxu0 0.0
    %2472 = vmatpush.msra.mxu0 0.0
    %2473 = vmatpush.msra.mxu0 0.0
    %2474 = vmatpush.msra.mxu0 0.0
    %2475 = vmatpush.msra.mxu0 0.0
    %2476 = vmatpush.msra.mxu0 %v2065
    %2477 = vmatpush.msra.mxu0 %v2064
    %2478 = vmatmul.f32.gmra.mxu0 %v2460
    %v2479 = vpop.f32.mrf.mxu0
    %v2480 = vadd.f32 %v2457, %v2479
    %2481 = vdwg.mxu0
    %v2482 = vadd.f32 %v2480, %v2274
    %2483 = vst.msk [vmem:[#allocation2 + $0x8] sm:$0xff] %vm165, %v2482
    %v2484 = vld [vmem:[#allocation2] sm:$0xff]
    %v2485 = vld [vmem:[#allocation2 + $0x8] sm:$0xff]
    %v2486 = vadd.f32 %v1988, %v2484
    %v2487 = vadd.f32 %v1989, %v2485
    %v2488 = vld [vmem:[%s51] sm:$0x3]
    %v2489 = vsel %vm165, %v2486, 0.0
    %2490 = vadd.xlane.f32.xlu0 %v2489
    %v2491 = vpop.xlane.xlu0 %2490
    %v2492 = vsel %vm165, %v2487, 0.0
    %2493 = vadd.xlane.f32.xlu0 %v2492
    %v2494 = vpop.xlane.xlu0 %2493
    %v2495 = vmul.f32 %v2491, %v638
    %v2496 = vmul.f32 %v2494, %v638
    %v2497 = vsub.f32 %v2486, %v2495
    %v2498 = vsub.f32 %v2487, %v2496
    %v2499 = vmul.f32 %v2497, %v2497
    %v2500 = vmul.f32 %v2498, %v2498
    %v2501 = vsel %vm165, %v2499, 0.0
    %2502 = vadd.xlane.f32.xlu0 %v2501
    %v2503 = vpop.xlane.xlu0 %2502
    %v2504 = vsel %vm165, %v2500, 0.0
    %2505 = vadd.xlane.f32.xlu0 %v2504
    %v2506 = vpop.xlane.xlu0 %2505
    %v2507 = vmul.f32 %v2503, %v638
    %v2508 = vmul.f32 %v2506, %v638
    %v2509 = vadd.f32 %v2507, 1e-05
    %v2510 = vadd.f32 %v2508, 1e-05
    %v2511 = vrsqrt.pop %v2509
    %v2512 = vmul.f32 %v2511, %v2509
    %v2513 = vmul.f32 %v2512, %v2511
    %v2514 = vmul.f32 0.5, %v2513
    %v2515 = vsub.f32 1.5, %v2514
    %v2516 = vmul.f32 %v2511, %v2515
    %vm2517 = vweird.f32 %v2509
    %vm2518 = vweird.f32 %v2511
    %vm2519 = vmor %vm2517, %vm2518
    %v2520 = vsel %vm2519, %v2511, %v2516
    %v2521 = vrsqrt.pop %v2510
    %v2522 = vmul.f32 %v2521, %v2510
    %v2523 = vmul.f32 %v2522, %v2521
    %v2524 = vmul.f32 0.5, %v2523
    %v2525 = vsub.f32 1.5, %v2524
    %v2526 = vmul.f32 %v2521, %v2525
    %vm2527 = vweird.f32 %v2510
    %vm2528 = vweird.f32 %v2521
    %vm2529 = vmor %vm2527, %vm2528
    %v2530 = vsel %vm2529, %v2521, %v2526
    %v2531 = vmul.f32 %v2497, %v2520
    %v2532 = vmul.f32 %v2498, %v2530
    %v2533 = vperm.slane %v2488, 0
    %v2534 = vmul.f32 %v2531, %v2533
    %v2535 = vmul.f32 %v2532, %v2533
    %v2536 = vperm.slane %v2488, 1
    %v2537 = vadd.f32 %v2534, %v2536
    %v2538 = vadd.f32 %v2535, %v2536
    %v2539 = vld [vmem:[%s53] sm:$0xff]
    %v2540 = vld [vmem:[%s53 + $0x8] sm:$0xff]
    %v2541 = vld [vmem:[%s53 + $0x10] sm:$0xff]
    %v2542 = vld [vmem:[%s53 + $0x18] sm:$0xff]
    %v2543 = vld [vmem:[%s55] sm:$0x1]
    %v2544 = vld [vmem:[%s57] sm:$0xff]
    %v2545 = vld [vmem:[%s57 + $0x8] sm:$0xff]
    %v2546 = vld [vmem:[%s57 + $0x10] sm:$0xff]
    %v2547 = vld [vmem:[%s57 + $0x18] sm:$0xff]
    %v2548 = vld [vmem:[%s57 + $0x20] sm:$0xff]
    %v2549 = vld [vmem:[%s57 + $0x28] sm:$0xff]
    %v2550 = vld [vmem:[%s57 + $0x30] sm:$0xff]
    %v2551 = vld [vmem:[%s57 + $0x38] sm:$0xff]
    %v2552 = vld [vmem:[%s59] sm:$0x1]
    %v2554 = vperm.slane %v2543, 0
    %v2557 = vsel %vm165, %v2537, 0
    %v2560 = vsel %vm165, %v2538, 0
    %2562 = vmatpush.msra.mxu0 0.0
    %2563 = vmatpush.msra.mxu0 0.0
    %2564 = vmatpush.msra.mxu0 0.0
    %2565 = vmatpush.msra.mxu0 0.0
    %2566 = vmatpush.msra.mxu0 0.0
    %2567 = vmatpush.msra.mxu0 0.0
    %2568 = vmatpush.msra.mxu0 0.0
    %2569 = vmatpush.msra.mxu0 0.0
    %2570 = vmatpush.msra.mxu0 0.0
    %2571 = vmatpush.msra.mxu0 0.0
    %2572 = vmatpush.msra.mxu0 0.0
    %2573 = vmatpush.msra.mxu0 0.0
    %2574 = vmatpush.msra.mxu0 %v2542
    %2575 = vmatpush.msra.mxu0 %v2541
    %2576 = vmatpush.msra.mxu0 %v2540
    %2577 = vmatpush.msra.mxu0 %v2539
    %2578 = vmatmul.f32.gmra.mxu0 %v2557
    %v2579 = vpop.f32.mrf.mxu0
    %v2580 = vadd.f32 %v2554, %v2579
    %2581 = vmatmul.f32.gmra.mxu0 %v2560
    %v2582 = vpop.f32.mrf.mxu0
    %v2583 = vadd.f32 %v2554, %v2582
    %2584 = vdwg.mxu0
    %v2585 = vmax.f32 %v2580, 0.0
    %v2586 = vmax.f32 %v2583, 0.0
    %v2588 = vperm.slane %v2552, 0
    %v2591 = vsel %vm734, %v2585, 0
    %v2594 = vsel %vm734, %v2586, 0
    %2596 = vmatpush.msra.mxu0 0.0
    %2597 = vmatpush.msra.mxu0 0.0
    %2598 = vmatpush.msra.mxu0 0.0
    %2599 = vmatpush.msra.mxu0 0.0
    %2600 = vmatpush.msra.mxu0 0.0
    %2601 = vmatpush.msra.mxu0 0.0
    %2602 = vmatpush.msra.mxu0 0.0
    %2603 = vmatpush.msra.mxu0 0.0
    %2604 = vmatpush.msra.mxu0 %v2551
    %2605 = vmatpush.msra.mxu0 %v2550
    %2606 = vmatpush.msra.mxu0 %v2549
    %2607 = vmatpush.msra.mxu0 %v2548
    %2608 = vmatpush.msra.mxu0 %v2547
    %2609 = vmatpush.msra.mxu0 %v2546
    %2610 = vmatpush.msra.mxu0 %v2545
    %2611 = vmatpush.msra.mxu0 %v2544
    %2612 = vmatmul.f32.gmra.mxu0 %v2591
    %v2613 = vpop.f32.mrf.mxu0
    %v2614 = vadd.f32 %v2588, %v2613
    %2615 = vmatmul.f32.gmra.mxu0 %v2594
    %v2616 = vpop.f32.mrf.mxu0
    %v2617 = vadd.f32 %v2588, %v2616
    %2618 = vdwg.mxu0
    %v2619 = vadd.f32 %v2537, %v2614
    %v2620 = vadd.f32 %v2538, %v2617
    %v2621 = vld [vmem:[%s61] sm:$0x3]
    %v2622 = vsel %vm165, %v2619, 0.0
    %2623 = vadd.xlane.f32.xlu0 %v2622
    %v2624 = vpop.xlane.xlu0 %2623
    %v2625 = vsel %vm165, %v2620, 0.0
    %2626 = vadd.xlane.f32.xlu0 %v2625
    %v2627 = vpop.xlane.xlu0 %2626
    %v2628 = vmul.f32 %v2624, %v638
    %v2629 = vmul.f32 %v2627, %v638
    %v2630 = vsub.f32 %v2619, %v2628
    %v2631 = vsub.f32 %v2620, %v2629
    %v2632 = vmul.f32 %v2630, %v2630
    %v2633 = vmul.f32 %v2631, %v2631
    %v2634 = vsel %vm165, %v2632, 0.0
    %2635 = vadd.xlane.f32.xlu0 %v2634
    %v2636 = vpop.xlane.xlu0 %2635
    %v2637 = vsel %vm165, %v2633, 0.0
    %2638 = vadd.xlane.f32.xlu0 %v2637
    %v2639 = vpop.xlane.xlu0 %2638
    %v2640 = vmul.f32 %v2636, %v638
    %v2641 = vmul.f32 %v2639, %v638
    %v2642 = vadd.f32 %v2640, 1e-05
    %v2643 = vadd.f32 %v2641, 1e-05
    %v2644 = vrsqrt.pop %v2642
    %v2645 = vmul.f32 %v2644, %v2642
    %v2646 = vmul.f32 %v2645, %v2644
    %v2647 = vmul.f32 0.5, %v2646
    %v2648 = vsub.f32 1.5, %v2647
    %v2649 = vmul.f32 %v2644, %v2648
    %vm2650 = vweird.f32 %v2642
    %vm2651 = vweird.f32 %v2644
    %vm2652 = vmor %vm2650, %vm2651
    %v2653 = vsel %vm2652, %v2644, %v2649
    %v2654 = vrsqrt.pop %v2643
    %v2655 = vmul.f32 %v2654, %v2643
    %v2656 = vmul.f32 %v2655, %v2654
    %v2657 = vmul.f32 0.5, %v2656
    %v2658 = vsub.f32 1.5, %v2657
    %v2659 = vmul.f32 %v2654, %v2658
    %vm2660 = vweird.f32 %v2643
    %vm2661 = vweird.f32 %v2654
    %vm2662 = vmor %vm2660, %vm2661
    %v2663 = vsel %vm2662, %v2654, %v2659
    %v2664 = vmul.f32 %v2630, %v2653
    %v2665 = vmul.f32 %v2631, %v2663
    %v2666 = vperm.slane %v2621, 0
    %v2667 = vmul.f32 %v2664, %v2666
    %v2668 = vmul.f32 %v2665, %v2666
    %v2669 = vperm.slane %v2621, 1
    %v2670 = vadd.f32 %v2667, %v2669
    %v2671 = vadd.f32 %v2668, %v2669
    %s2672 = scalar_lea.vmem %s29, 32
    %v2673 = vld [vmem:[%s2672] sm:$0xff]
    %v2674 = vld [vmem:[%s2672 + $0x8] sm:$0xff]
    %v2675 = vld [vmem:[%s2672 + $0x10] sm:$0xff]
    %v2676 = vld [vmem:[%s2672 + $0x18] sm:$0xff]
    %s2677 = scalar_lea.vmem %s31, 1
    %v2678 = vld [vmem:[%s2677] sm:$0x1]
    %v2680 = vperm.slane %v2678, 0
    %v2683 = vsel %vm165, %v2670, 0
    %v2686 = vsel %vm165, %v2671, 0
    %2688 = vmatpush.msra.mxu0 0.0
    %2689 = vmatpush.msra.mxu0 0.0
    %2690 = vmatpush.msra.mxu0 0.0
    %2691 = vmatpush.msra.mxu0 0.0
    %2692 = vmatpush.msra.mxu0 0.0
    %2693 = vmatpush.msra.mxu0 0.0
    %2694 = vmatpush.msra.mxu0 0.0
    %2695 = vmatpush.msra.mxu0 0.0
    %2696 = vmatpush.msra.mxu0 0.0
    %2697 = vmatpush.msra.mxu0 0.0
    %2698 = vmatpush.msra.mxu0 0.0
    %2699 = vmatpush.msra.mxu0 0.0
    %2700 = vmatpush.msra.mxu0 %v2676
    %2701 = vmatpush.msra.mxu0 %v2675
    %2702 = vmatpush.msra.mxu0 %v2674
    %2703 = vmatpush.msra.mxu0 %v2673
    %2704 = vmatmul.f32.gmra.mxu0 %v2683
    %v2705 = vpop.f32.mrf.mxu0
    %v2706 = vadd.f32 %v2680, %v2705
    %2707 = vmatmul.f32.gmra.mxu0 %v2686
    %v2708 = vpop.f32.mrf.mxu0
    %v2709 = vadd.f32 %v2680, %v2708
    %2710 = vdwg.mxu0
    %s2711 = scalar_lea.vmem %s33, 32
    %v2712 = vld [vmem:[%s2711] sm:$0xff]
    %v2713 = vld [vmem:[%s2711 + $0x8] sm:$0xff]
    %v2714 = vld [vmem:[%s2711 + $0x10] sm:$0xff]
    %v2715 = vld [vmem:[%s2711 + $0x18] sm:$0xff]
    %s2716 = scalar_lea.vmem %s35, 1
    %v2717 = vld [vmem:[%s2716] sm:$0x1]
    %2719 = vrot.lane.b32.xlu0 %v2706, 96
    %v2720 = vpop.permute.xlu0 %2719
    %v2721 = vsel %vm203, %v2706, 0
    %v2723 = vsel %vm203, %v2720, 0
    %2725 = vmatpush.xpose.msra.mxu0 0.0
    %2726 = vmatpush.xpose.msra.mxu0 0.0
    %2727 = vmatpush.xpose.msra.mxu0 0.0
    %2728 = vmatpush.xpose.msra.mxu0 0.0
    %2729 = vmatpush.xpose.msra.mxu0 0.0
    %2730 = vmatpush.xpose.msra.mxu0 0.0
    %2731 = vmatpush.xpose.msra.mxu0 0.0
    %2732 = vmatpush.xpose.msra.mxu0 0.0
    %2733 = vmatpush.xpose.msra.mxu0 0.0
    %2734 = vmatpush.xpose.msra.mxu0 0.0
    %2735 = vmatpush.xpose.msra.mxu0 0.0
    %2736 = vmatpush.xpose.msra.mxu0 0.0
    %2737 = vmatpush.xpose.msra.mxu0 0.0
    %2738 = vmatpush.xpose.msra.mxu0 0.0
    %2739 = vmatpush.xpose.msra.mxu0 0.0
    %2740 = vmatpush.xpose.msra.mxu0 %v2723
    %2741 = vmatmul.f32.gmra.mxu0 %v2721
    %v2742 = vpop.f32.mrf.mxu0
    %v2743 = vadd.f32 0.0, %v2742
    %2744 = vdwg.mxu0
    %v2745 = vmul.f32 %v2743, 0.25
    %v2746 = vadd.f32 %v2745, %v152
    %v2747 = vsel %vm231, %v2746, -inf
    %2748 = vmax.xlane.f32.xlu0 %v2747
    %v2749 = vpop.xlane.xlu0 %2748
    %v2750 = vsub.f32 %v2746, %v2749
    %v2751 = vmul.f32 %v2750, 1.442695
    %v2752 = vpow.pop %v2751
    %v2753 = vsel %vm231, %v2752, 0.0
    %2754 = vadd.xlane.f32.xlu0 %v2753
    %v2755 = vpop.xlane.xlu0 %2754
    %v2756 = vrcp.pop %v2755
    %v2757 = vmul.f32 %v2755, %v2756
    %v2758 = vsub.f32 1.0, %v2757
    %v2759 = vmul.f32 %v2756, %v2758
    %v2760 = vadd.f32 %v2756, %v2759
    %vm2761 = vweird.f32 %v2755
    %vm2762 = vweird.f32 %v2756
    %vm2763 = vmor %vm2761, %vm2762
    %v2764 = vsel %vm2763, %v2756, %v2760
    %v2765 = vand.u32 2147483647, %v2755
    %vm2766 = vcmp.eq.f32.partialorder %v2765, 8.507059e+37
    %v2767 = vand.u32 %v2755, 2147483648
    %v2768 = vor.u32 1.1754944e-38, %v2767
    %v2769 = vsel %vm2766, %v2768, %v2764
    %v2770 = vmul.f32 %v2752, %v2769
    %2771 = vrot.lane.b32.xlu0 %v2706, 64
    %v2772 = vpop.permute.xlu0 %2771
    %v2775 = vsel %vm231, %v2770, 0
    %2777 = vmatpush.msra.mxu0 0.0
    %2778 = vmatpush.msra.mxu0 0.0
    %2779 = vmatpush.msra.mxu0 0.0
    %2780 = vmatpush.msra.mxu0 0.0
    %2781 = vmatpush.msra.mxu0 0.0
    %2782 = vmatpush.msra.mxu0 0.0
    %2783 = vmatpush.msra.mxu0 0.0
    %2784 = vmatpush.msra.mxu0 0.0
    %2785 = vmatpush.msra.mxu0 0.0
    %2786 = vmatpush.msra.mxu0 0.0
    %2787 = vmatpush.msra.mxu0 0.0
    %2788 = vmatpush.msra.mxu0 0.0
    %2789 = vmatpush.msra.mxu0 0.0
    %2790 = vmatpush.msra.mxu0 0.0
    %2791 = vmatpush.msra.mxu0 0.0
    %2792 = vmatpush.msra.mxu0 %v2772
    %2793 = vmatmul.f32.gmra.mxu0 %v2775
    %v2794 = vpop.f32.mrf.mxu0
    %v2795 = vadd.f32 0.0, %v2794
    %2796 = vdwg.mxu0
    %2797 = vrot.lane.b32.xlu0 %v2706, 112
    %v2798 = vpop.permute.xlu0 %2797
    %2799 = vrot.lane.b32.xlu0 %v2706, 80
    %v2800 = vpop.permute.xlu0 %2799
    %v2801 = vsel %vm203, %v2798, 0
    %v2803 = vsel %vm203, %v2800, 0
    %2805 = vmatpush.xpose.msra.mxu0 0.0
    %2806 = vmatpush.xpose.msra.mxu0 0.0
    %2807 = vmatpush.xpose.msra.mxu0 0.0
    %2808 = vmatpush.xpose.msra.mxu0 0.0
    %2809 = vmatpush.xpose.msra.mxu0 0.0
    %2810 = vmatpush.xpose.msra.mxu0 0.0
    %2811 = vmatpush.xpose.msra.mxu0 0.0
    %2812 = vmatpush.xpose.msra.mxu0 0.0
    %2813 = vmatpush.xpose.msra.mxu0 0.0
    %2814 = vmatpush.xpose.msra.mxu0 0.0
    %2815 = vmatpush.xpose.msra.mxu0 0.0
    %2816 = vmatpush.xpose.msra.mxu0 0.0
    %2817 = vmatpush.xpose.msra.mxu0 0.0
    %2818 = vmatpush.xpose.msra.mxu0 0.0
    %2819 = vmatpush.xpose.msra.mxu0 0.0
    %2820 = vmatpush.xpose.msra.mxu0 %v2803
    %2821 = vmatmul.f32.gmra.mxu0 %v2801
    %v2822 = vpop.f32.mrf.mxu0
    %v2823 = vadd.f32 0.0, %v2822
    %2824 = vdwg.mxu0
    %v2825 = vmul.f32 %v2823, 0.25
    %v2826 = vadd.f32 %v2825, %v152
    %v2827 = vsel %vm231, %v2826, -inf
    %2828 = vmax.xlane.f32.xlu0 %v2827
    %v2829 = vpop.xlane.xlu0 %2828
    %v2830 = vsub.f32 %v2826, %v2829
    %v2831 = vmul.f32 %v2830, 1.442695
    %v2832 = vpow.pop %v2831
    %v2833 = vsel %vm231, %v2832, 0.0
    %2834 = vadd.xlane.f32.xlu0 %v2833
    %v2835 = vpop.xlane.xlu0 %2834
    %v2836 = vrcp.pop %v2835
    %v2837 = vmul.f32 %v2835, %v2836
    %v2838 = vsub.f32 1.0, %v2837
    %v2839 = vmul.f32 %v2836, %v2838
    %v2840 = vadd.f32 %v2836, %v2839
    %vm2841 = vweird.f32 %v2835
    %vm2842 = vweird.f32 %v2836
    %vm2843 = vmor %vm2841, %vm2842
    %v2844 = vsel %vm2843, %v2836, %v2840
    %v2845 = vand.u32 2147483647, %v2835
    %vm2846 = vcmp.eq.f32.partialorder %v2845, 8.507059e+37
    %v2847 = vand.u32 %v2835, 2147483648
    %v2848 = vor.u32 1.1754944e-38, %v2847
    %v2849 = vsel %vm2846, %v2848, %v2844
    %v2850 = vmul.f32 %v2832, %v2849
    %2851 = vrot.lane.b32.xlu0 %v2706, 48
    %v2852 = vpop.permute.xlu0 %2851
    %v2855 = vsel %vm231, %v2850, 0
    %2857 = vmatpush.msra.mxu0 0.0
    %2858 = vmatpush.msra.mxu0 0.0
    %2859 = vmatpush.msra.mxu0 0.0
    %2860 = vmatpush.msra.mxu0 0.0
    %2861 = vmatpush.msra.mxu0 0.0
    %2862 = vmatpush.msra.mxu0 0.0
    %2863 = vmatpush.msra.mxu0 0.0
    %2864 = vmatpush.msra.mxu0 0.0
    %2865 = vmatpush.msra.mxu0 0.0
    %2866 = vmatpush.msra.mxu0 0.0
    %2867 = vmatpush.msra.mxu0 0.0
    %2868 = vmatpush.msra.mxu0 0.0
    %2869 = vmatpush.msra.mxu0 0.0
    %2870 = vmatpush.msra.mxu0 0.0
    %2871 = vmatpush.msra.mxu0 0.0
    %2872 = vmatpush.msra.mxu0 %v2852
    %2873 = vmatmul.f32.gmra.mxu0 %v2855
    %v2874 = vpop.f32.mrf.mxu0
    %v2875 = vadd.f32 0.0, %v2874
    %2876 = vdwg.mxu0
    %v2878 = vsel %vm203, %v2875, 0
    %2880 = vmatpush.msra.mxu0 0.0
    %2881 = vmatpush.msra.mxu0 0.0
    %2882 = vmatpush.msra.mxu0 0.0
    %2883 = vmatpush.msra.mxu0 0.0
    %2884 = vmatpush.msra.mxu0 0.0
    %2885 = vmatpush.msra.mxu0 0.0
    %2886 = vmatpush.msra.mxu0 0.0
    %2887 = vmatpush.msra.mxu0 0.0
    %2888 = vmatpush.msra.mxu0 0.0
    %2889 = vmatpush.msra.mxu0 0.0
    %2890 = vmatpush.msra.mxu0 0.0
    %2891 = vmatpush.msra.mxu0 0.0
    %2892 = vmatpush.msra.mxu0 0.0
    %2893 = vmatpush.msra.mxu0 0.0
    %2894 = vmatpush.msra.mxu0 %v2715
    %2895 = vmatpush.msra.mxu0 %v2714
    %2896 = vmatmul.f32.gmra.mxu0 %v2878
    %v2897 = vpop.f32.mrf.mxu0
    %v2898 = vadd.f32 0.0, %v2897
    %2899 = vdwg.mxu0
    %v2901 = vsel %vm203, %v2795, 0
    %2903 = vmatpush.msra.mxu0 0.0
    %2904 = vmatpush.msra.mxu0 0.0
    %2905 = vmatpush.msra.mxu0 0.0
    %2906 = vmatpush.msra.mxu0 0.0
    %2907 = vmatpush.msra.mxu0 0.0
    %2908 = vmatpush.msra.mxu0 0.0
    %2909 = vmatpush.msra.mxu0 0.0
    %2910 = vmatpush.msra.mxu0 0.0
    %2911 = vmatpush.msra.mxu0 0.0
    %2912 = vmatpush.msra.mxu0 0.0
    %2913 = vmatpush.msra.mxu0 0.0
    %2914 = vmatpush.msra.mxu0 0.0
    %2915 = vmatpush.msra.mxu0 0.0
    %2916 = vmatpush.msra.mxu0 0.0
    %2917 = vmatpush.msra.mxu0 %v2713
    %2918 = vmatpush.msra.mxu0 %v2712
    %2919 = vmatmul.f32.gmra.mxu0 %v2901
    %v2920 = vpop.f32.mrf.mxu0
    %v2921 = vadd.f32 %v2898, %v2920
    %2922 = vdwg.mxu0
    %v2924 = vperm.slane %v2717, 0
    %v2926 = vadd.f32 %v2921, %v2924
    %2927 = vst.msk [vmem:[#allocation2] sm:$0xff] %vm165, %v2926
    %2929 = vrot.lane.b32.xlu0 %v2709, 96
    %v2930 = vpop.permute.xlu0 %2929
    %v2931 = vsel %vm203, %v2709, 0
    %v2933 = vsel %vm203, %v2930, 0
    %2935 = vmatpush.xpose.msra.mxu0 0.0
    %2936 = vmatpush.xpose.msra.mxu0 0.0
    %2937 = vmatpush.xpose.msra.mxu0 0.0
    %2938 = vmatpush.xpose.msra.mxu0 0.0
    %2939 = vmatpush.xpose.msra.mxu0 0.0
    %2940 = vmatpush.xpose.msra.mxu0 0.0
    %2941 = vmatpush.xpose.msra.mxu0 0.0
    %2942 = vmatpush.xpose.msra.mxu0 0.0
    %2943 = vmatpush.xpose.msra.mxu0 0.0
    %2944 = vmatpush.xpose.msra.mxu0 0.0
    %2945 = vmatpush.xpose.msra.mxu0 0.0
    %2946 = vmatpush.xpose.msra.mxu0 0.0
    %2947 = vmatpush.xpose.msra.mxu0 0.0
    %2948 = vmatpush.xpose.msra.mxu0 0.0
    %2949 = vmatpush.xpose.msra.mxu0 0.0
    %2950 = vmatpush.xpose.msra.mxu0 %v2933
    %2951 = vmatmul.f32.gmra.mxu0 %v2931
    %v2952 = vpop.f32.mrf.mxu0
    %v2953 = vadd.f32 0.0, %v2952
    %2954 = vdwg.mxu0
    %v2955 = vmul.f32 %v2953, 0.25
    %v2956 = vadd.f32 %v2955, %v154
    %v2957 = vsel %vm231, %v2956, -inf
    %2958 = vmax.xlane.f32.xlu0 %v2957
    %v2959 = vpop.xlane.xlu0 %2958
    %v2960 = vsub.f32 %v2956, %v2959
    %v2961 = vmul.f32 %v2960, 1.442695
    %v2962 = vpow.pop %v2961
    %v2963 = vsel %vm231, %v2962, 0.0
    %2964 = vadd.xlane.f32.xlu0 %v2963
    %v2965 = vpop.xlane.xlu0 %2964
    %v2966 = vrcp.pop %v2965
    %v2967 = vmul.f32 %v2965, %v2966
    %v2968 = vsub.f32 1.0, %v2967
    %v2969 = vmul.f32 %v2966, %v2968
    %v2970 = vadd.f32 %v2966, %v2969
    %vm2971 = vweird.f32 %v2965
    %vm2972 = vweird.f32 %v2966
    %vm2973 = vmor %vm2971, %vm2972
    %v2974 = vsel %vm2973, %v2966, %v2970
    %v2975 = vand.u32 2147483647, %v2965
    %vm2976 = vcmp.eq.f32.partialorder %v2975, 8.507059e+37
    %v2977 = vand.u32 %v2965, 2147483648
    %v2978 = vor.u32 1.1754944e-38, %v2977
    %v2979 = vsel %vm2976, %v2978, %v2974
    %v2980 = vmul.f32 %v2962, %v2979
    %2981 = vrot.lane.b32.xlu0 %v2709, 64
    %v2982 = vpop.permute.xlu0 %2981
    %v2985 = vsel %vm231, %v2980, 0
    %2987 = vmatpush.msra.mxu0 0.0
    %2988 = vmatpush.msra.mxu0 0.0
    %2989 = vmatpush.msra.mxu0 0.0
    %2990 = vmatpush.msra.mxu0 0.0
    %2991 = vmatpush.msra.mxu0 0.0
    %2992 = vmatpush.msra.mxu0 0.0
    %2993 = vmatpush.msra.mxu0 0.0
    %2994 = vmatpush.msra.mxu0 0.0
    %2995 = vmatpush.msra.mxu0 0.0
    %2996 = vmatpush.msra.mxu0 0.0
    %2997 = vmatpush.msra.mxu0 0.0
    %2998 = vmatpush.msra.mxu0 0.0
    %2999 = vmatpush.msra.mxu0 0.0
    %3000 = vmatpush.msra.mxu0 0.0
    %3001 = vmatpush.msra.mxu0 0.0
    %3002 = vmatpush.msra.mxu0 %v2982
    %3003 = vmatmul.f32.gmra.mxu0 %v2985
    %v3004 = vpop.f32.mrf.mxu0
    %v3005 = vadd.f32 0.0, %v3004
    %3006 = vdwg.mxu0
    %3007 = vrot.lane.b32.xlu0 %v2709, 112
    %v3008 = vpop.permute.xlu0 %3007
    %3009 = vrot.lane.b32.xlu0 %v2709, 80
    %v3010 = vpop.permute.xlu0 %3009
    %v3011 = vsel %vm203, %v3008, 0
    %v3013 = vsel %vm203, %v3010, 0
    %3015 = vmatpush.xpose.msra.mxu0 0.0
    %3016 = vmatpush.xpose.msra.mxu0 0.0
    %3017 = vmatpush.xpose.msra.mxu0 0.0
    %3018 = vmatpush.xpose.msra.mxu0 0.0
    %3019 = vmatpush.xpose.msra.mxu0 0.0
    %3020 = vmatpush.xpose.msra.mxu0 0.0
    %3021 = vmatpush.xpose.msra.mxu0 0.0
    %3022 = vmatpush.xpose.msra.mxu0 0.0
    %3023 = vmatpush.xpose.msra.mxu0 0.0
    %3024 = vmatpush.xpose.msra.mxu0 0.0
    %3025 = vmatpush.xpose.msra.mxu0 0.0
    %3026 = vmatpush.xpose.msra.mxu0 0.0
    %3027 = vmatpush.xpose.msra.mxu0 0.0
    %3028 = vmatpush.xpose.msra.mxu0 0.0
    %3029 = vmatpush.xpose.msra.mxu0 0.0
    %3030 = vmatpush.xpose.msra.mxu0 %v3013
    %3031 = vmatmul.f32.gmra.mxu0 %v3011
    %v3032 = vpop.f32.mrf.mxu0
    %v3033 = vadd.f32 0.0, %v3032
    %3034 = vdwg.mxu0
    %v3035 = vmul.f32 %v3033, 0.25
    %v3036 = vadd.f32 %v3035, %v154
    %v3037 = vsel %vm231, %v3036, -inf
    %3038 = vmax.xlane.f32.xlu0 %v3037
    %v3039 = vpop.xlane.xlu0 %3038
    %v3040 = vsub.f32 %v3036, %v3039
    %v3041 = vmul.f32 %v3040, 1.442695
    %v3042 = vpow.pop %v3041
    %v3043 = vsel %vm231, %v3042, 0.0
    %3044 = vadd.xlane.f32.xlu0 %v3043
    %v3045 = vpop.xlane.xlu0 %3044
    %v3046 = vrcp.pop %v3045
    %v3047 = vmul.f32 %v3045, %v3046
    %v3048 = vsub.f32 1.0, %v3047
    %v3049 = vmul.f32 %v3046, %v3048
    %v3050 = vadd.f32 %v3046, %v3049
    %vm3051 = vweird.f32 %v3045
    %vm3052 = vweird.f32 %v3046
    %vm3053 = vmor %vm3051, %vm3052
    %v3054 = vsel %vm3053, %v3046, %v3050
    %v3055 = vand.u32 2147483647, %v3045
    %vm3056 = vcmp.eq.f32.partialorder %v3055, 8.507059e+37
    %v3057 = vand.u32 %v3045, 2147483648
    %v3058 = vor.u32 1.1754944e-38, %v3057
    %v3059 = vsel %vm3056, %v3058, %v3054
    %v3060 = vmul.f32 %v3042, %v3059
    %3061 = vrot.lane.b32.xlu0 %v2709, 48
    %v3062 = vpop.permute.xlu0 %3061
    %v3065 = vsel %vm231, %v3060, 0
    %3067 = vmatpush.msra.mxu0 0.0
    %3068 = vmatpush.msra.mxu0 0.0
    %3069 = vmatpush.msra.mxu0 0.0
    %3070 = vmatpush.msra.mxu0 0.0
    %3071 = vmatpush.msra.mxu0 0.0
    %3072 = vmatpush.msra.mxu0 0.0
    %3073 = vmatpush.msra.mxu0 0.0
    %3074 = vmatpush.msra.mxu0 0.0
    %3075 = vmatpush.msra.mxu0 0.0
    %3076 = vmatpush.msra.mxu0 0.0
    %3077 = vmatpush.msra.mxu0 0.0
    %3078 = vmatpush.msra.mxu0 0.0
    %3079 = vmatpush.msra.mxu0 0.0
    %3080 = vmatpush.msra.mxu0 0.0
    %3081 = vmatpush.msra.mxu0 0.0
    %3082 = vmatpush.msra.mxu0 %v3062
    %3083 = vmatmul.f32.gmra.mxu0 %v3065
    %v3084 = vpop.f32.mrf.mxu0
    %v3085 = vadd.f32 0.0, %v3084
    %3086 = vdwg.mxu0
    %v3088 = vsel %vm203, %v3085, 0
    %3090 = vmatpush.msra.mxu0 0.0
    %3091 = vmatpush.msra.mxu0 0.0
    %3092 = vmatpush.msra.mxu0 0.0
    %3093 = vmatpush.msra.mxu0 0.0
    %3094 = vmatpush.msra.mxu0 0.0
    %3095 = vmatpush.msra.mxu0 0.0
    %3096 = vmatpush.msra.mxu0 0.0
    %3097 = vmatpush.msra.mxu0 0.0
    %3098 = vmatpush.msra.mxu0 0.0
    %3099 = vmatpush.msra.mxu0 0.0
    %3100 = vmatpush.msra.mxu0 0.0
    %3101 = vmatpush.msra.mxu0 0.0
    %3102 = vmatpush.msra.mxu0 0.0
    %3103 = vmatpush.msra.mxu0 0.0
    %3104 = vmatpush.msra.mxu0 %v2715
    %3105 = vmatpush.msra.mxu0 %v2714
    %3106 = vmatmul.f32.gmra.mxu0 %v3088
    %v3107 = vpop.f32.mrf.mxu0
    %v3108 = vadd.f32 0.0, %v3107
    %3109 = vdwg.mxu0
    %v3111 = vsel %vm203, %v3005, 0
    %3113 = vmatpush.msra.mxu0 0.0
    %3114 = vmatpush.msra.mxu0 0.0
    %3115 = vmatpush.msra.mxu0 0.0
    %3116 = vmatpush.msra.mxu0 0.0
    %3117 = vmatpush.msra.mxu0 0.0
    %3118 = vmatpush.msra.mxu0 0.0
    %3119 = vmatpush.msra.mxu0 0.0
    %3120 = vmatpush.msra.mxu0 0.0
    %3121 = vmatpush.msra.mxu0 0.0
    %3122 = vmatpush.msra.mxu0 0.0
    %3123 = vmatpush.msra.mxu0 0.0
    %3124 = vmatpush.msra.mxu0 0.0
    %3125 = vmatpush.msra.mxu0 0.0
    %3126 = vmatpush.msra.mxu0 0.0
    %3127 = vmatpush.msra.mxu0 %v2713
    %3128 = vmatpush.msra.mxu0 %v2712
    %3129 = vmatmul.f32.gmra.mxu0 %v3111
    %v3130 = vpop.f32.mrf.mxu0
    %v3131 = vadd.f32 %v3108, %v3130
    %3132 = vdwg.mxu0
    %v3133 = vadd.f32 %v3131, %v2924
    %3134 = vst.msk [vmem:[#allocation2 + $0x8] sm:$0xff] %vm165, %v3133
    %v3135 = vld [vmem:[#allocation2] sm:$0xff]
    %v3136 = vld [vmem:[#allocation2 + $0x8] sm:$0xff]
    %v3137 = vadd.f32 %v2670, %v3135
    %v3138 = vadd.f32 %v2671, %v3136
    %s3139 = scalar_lea.vmem %s37, 2
    %v3140 = vld [vmem:[%s3139] sm:$0x3]
    %v3141 = vsel %vm165, %v3137, 0.0
    %3142 = vadd.xlane.f32.xlu0 %v3141
    %v3143 = vpop.xlane.xlu0 %3142
    %v3144 = vsel %vm165, %v3138, 0.0
    %3145 = vadd.xlane.f32.xlu0 %v3144
    %v3146 = vpop.xlane.xlu0 %3145
    %v3147 = vmul.f32 %v3143, %v638
    %v3148 = vmul.f32 %v3146, %v638
    %v3149 = vsub.f32 %v3137, %v3147
    %v3150 = vsub.f32 %v3138, %v3148
    %v3151 = vmul.f32 %v3149, %v3149
    %v3152 = vmul.f32 %v3150, %v3150
    %v3153 = vsel %vm165, %v3151, 0.0
    %3154 = vadd.xlane.f32.xlu0 %v3153
    %v3155 = vpop.xlane.xlu0 %3154
    %v3156 = vsel %vm165, %v3152, 0.0
    %3157 = vadd.xlane.f32.xlu0 %v3156
    %v3158 = vpop.xlane.xlu0 %3157
    %v3159 = vmul.f32 %v3155, %v638
    %v3160 = vmul.f32 %v3158, %v638
    %v3161 = vadd.f32 %v3159, 1e-05
    %v3162 = vadd.f32 %v3160, 1e-05
    %v3163 = vrsqrt.pop %v3161
    %v3164 = vmul.f32 %v3163, %v3161
    %v3165 = vmul.f32 %v3164, %v3163
    %v3166 = vmul.f32 0.5, %v3165
    %v3167 = vsub.f32 1.5, %v3166
    %v3168 = vmul.f32 %v3163, %v3167
    %vm3169 = vweird.f32 %v3161
    %vm3170 = vweird.f32 %v3163
    %vm3171 = vmor %vm3169, %vm3170
    %v3172 = vsel %vm3171, %v3163, %v3168
    %v3173 = vrsqrt.pop %v3162
    %v3174 = vmul.f32 %v3173, %v3162
    %v3175 = vmul.f32 %v3174, %v3173
    %v3176 = vmul.f32 0.5, %v3175
    %v3177 = vsub.f32 1.5, %v3176
    %v3178 = vmul.f32 %v3173, %v3177
    %vm3179 = vweird.f32 %v3162
    %vm3180 = vweird.f32 %v3173
    %vm3181 = vmor %vm3179, %vm3180
    %v3182 = vsel %vm3181, %v3173, %v3178
    %v3183 = vmul.f32 %v3149, %v3172
    %v3184 = vmul.f32 %v3150, %v3182
    %v3185 = vperm.slane %v3140, 0
    %v3186 = vmul.f32 %v3183, %v3185
    %v3187 = vmul.f32 %v3184, %v3185
    %v3188 = vperm.slane %v3140, 1
    %v3189 = vadd.f32 %v3186, %v3188
    %v3190 = vadd.f32 %v3187, %v3188
    %s3191 = scalar_lea.vmem %s39, 32
    %v3192 = vld [vmem:[%s3191] sm:$0xff]
    %v3193 = vld [vmem:[%s3191 + $0x8] sm:$0xff]
    %v3194 = vld [vmem:[%s3191 + $0x10] sm:$0xff]
    %v3195 = vld [vmem:[%s3191 + $0x18] sm:$0xff]
    %s3196 = scalar_lea.vmem %s41, 1
    %v3197 = vld [vmem:[%s3196] sm:$0x1]
    %v3199 = vperm.slane %v3197, 0
    %v3202 = vsel %vm165, %v3189, 0
    %v3205 = vsel %vm165, %v3190, 0
    %3207 = vmatpush.msra.mxu0 0.0
    %3208 = vmatpush.msra.mxu0 0.0
    %3209 = vmatpush.msra.mxu0 0.0
    %3210 = vmatpush.msra.mxu0 0.0
    %3211 = vmatpush.msra.mxu0 0.0
    %3212 = vmatpush.msra.mxu0 0.0
    %3213 = vmatpush.msra.mxu0 0.0
    %3214 = vmatpush.msra.mxu0 0.0
    %3215 = vmatpush.msra.mxu0 0.0
    %3216 = vmatpush.msra.mxu0 0.0
    %3217 = vmatpush.msra.mxu0 0.0
    %3218 = vmatpush.msra.mxu0 0.0
    %3219 = vmatpush.msra.mxu0 %v3195
    %3220 = vmatpush.msra.mxu0 %v3194
    %3221 = vmatpush.msra.mxu0 %v3193
    %3222 = vmatpush.msra.mxu0 %v3192
    %3223 = vmatmul.f32.gmra.mxu0 %v3202
    %v3224 = vpop.f32.mrf.mxu0
    %v3225 = vadd.f32 %v3199, %v3224
    %3226 = vmatmul.f32.gmra.mxu0 %v3205
    %v3227 = vpop.f32.mrf.mxu0
    %v3228 = vadd.f32 %v3199, %v3227
    %3229 = vdwg.mxu0
    %s3230 = scalar_lea.vmem %s43, 32
    %v3231 = vld [vmem:[%s3230] sm:$0xff]
    %v3232 = vld [vmem:[%s3230 + $0x8] sm:$0xff]
    %v3233 = vld [vmem:[%s3230 + $0x10] sm:$0xff]
    %v3234 = vld [vmem:[%s3230 + $0x18] sm:$0xff]
    %s3235 = scalar_lea.vmem %s45, 1
    %v3236 = vld [vmem:[%s3235] sm:$0x1]
    %v3238 = vperm.slane %v3236, 0
    %3240 = vmatpush.msra.mxu0 0.0
    %3241 = vmatpush.msra.mxu0 0.0
    %3242 = vmatpush.msra.mxu0 0.0
    %3243 = vmatpush.msra.mxu0 0.0
    %3244 = vmatpush.msra.mxu0 0.0
    %3245 = vmatpush.msra.mxu0 0.0
    %3246 = vmatpush.msra.mxu0 0.0
    %3247 = vmatpush.msra.mxu0 0.0
    %3248 = vmatpush.msra.mxu0 0.0
    %3249 = vmatpush.msra.mxu0 0.0
    %3250 = vmatpush.msra.mxu0 0.0
    %3251 = vmatpush.msra.mxu0 0.0
    %3252 = vmatpush.msra.mxu0 %v3234
    %3253 = vmatpush.msra.mxu0 %v3233
    %3254 = vmatpush.msra.mxu0 %v3232
    %3255 = vmatpush.msra.mxu0 %v3231
    %3256 = vmatmul.f32.gmra.mxu0 %v2036
    %v3257 = vpop.f32.mrf.mxu0
    %v3258 = vadd.f32 %v3238, %v3257
    %3259 = vmatmul.f32.gmra.mxu0 %v2039
    %v3260 = vpop.f32.mrf.mxu0
    %v3261 = vadd.f32 %v3238, %v3260
    %3262 = vdwg.mxu0
    %s3263 = scalar_lea.vmem %s47, 32
    %v3264 = vld [vmem:[%s3263] sm:$0xff]
    %v3265 = vld [vmem:[%s3263 + $0x8] sm:$0xff]
    %v3266 = vld [vmem:[%s3263 + $0x10] sm:$0xff]
    %v3267 = vld [vmem:[%s3263 + $0x18] sm:$0xff]
    %s3268 = scalar_lea.vmem %s49, 1
    %v3269 = vld [vmem:[%s3268] sm:$0x1]
    %v3271 = vsel %vm203, %v3225, 0
    %v3274 = vsel %vm203, %v3258, 0
    %3276 = vmatpush.xpose.msra.mxu0 0.0
    %3277 = vmatpush.xpose.msra.mxu0 0.0
    %3278 = vmatpush.xpose.msra.mxu0 0.0
    %3279 = vmatpush.xpose.msra.mxu0 0.0
    %3280 = vmatpush.xpose.msra.mxu0 0.0
    %3281 = vmatpush.xpose.msra.mxu0 0.0
    %3282 = vmatpush.xpose.msra.mxu0 0.0
    %3283 = vmatpush.xpose.msra.mxu0 0.0
    %3284 = vmatpush.xpose.msra.mxu0 0.0
    %3285 = vmatpush.xpose.msra.mxu0 0.0
    %3286 = vmatpush.xpose.msra.mxu0 0.0
    %3287 = vmatpush.xpose.msra.mxu0 0.0
    %3288 = vmatpush.xpose.msra.mxu0 0.0
    %3289 = vmatpush.xpose.msra.mxu0 0.0
    %3290 = vmatpush.xpose.msra.mxu0 0.0
    %3291 = vmatpush.xpose.msra.mxu0 %v3274
    %3292 = vmatmul.f32.gmra.mxu0 %v3271
    %v3293 = vpop.f32.mrf.mxu0
    %v3294 = vadd.f32 0.0, %v3293
    %3295 = vdwg.mxu0
    %v3296 = vmul.f32 %v3294, 0.25
    %v3297 = vadd.f32 %v3296, %v229
    %v3298 = vsel %vm231, %v3297, -inf
    %3299 = vmax.xlane.f32.xlu0 %v3298
    %v3300 = vpop.xlane.xlu0 %3299
    %v3301 = vsub.f32 %v3297, %v3300
    %v3302 = vmul.f32 %v3301, 1.442695
    %v3303 = vpow.pop %v3302
    %v3304 = vsel %vm231, %v3303, 0.0
    %3305 = vadd.xlane.f32.xlu0 %v3304
    %v3306 = vpop.xlane.xlu0 %3305
    %v3307 = vrcp.pop %v3306
    %v3308 = vmul.f32 %v3306, %v3307
    %v3309 = vsub.f32 1.0, %v3308
    %v3310 = vmul.f32 %v3307, %v3309
    %v3311 = vadd.f32 %v3307, %v3310
    %vm3312 = vweird.f32 %v3306
    %vm3313 = vweird.f32 %v3307
    %vm3314 = vmor %vm3312, %vm3313
    %v3315 = vsel %vm3314, %v3307, %v3311
    %v3316 = vand.u32 2147483647, %v3306
    %vm3317 = vcmp.eq.f32.partialorder %v3316, 8.507059e+37
    %v3318 = vand.u32 %v3306, 2147483648
    %v3319 = vor.u32 1.1754944e-38, %v3318
    %v3320 = vsel %vm3317, %v3319, %v3315
    %v3321 = vmul.f32 %v3303, %v3320
    %3322 = vrot.lane.b32.xlu0 %v3258, 96
    %v3323 = vpop.permute.xlu0 %3322
    %v3326 = vsel %vm231, %v3321, 0
    %3328 = vmatpush.msra.mxu0 0.0
    %3329 = vmatpush.msra.mxu0 0.0
    %3330 = vmatpush.msra.mxu0 0.0
    %3331 = vmatpush.msra.mxu0 0.0
    %3332 = vmatpush.msra.mxu0 0.0
    %3333 = vmatpush.msra.mxu0 0.0
    %3334 = vmatpush.msra.mxu0 0.0
    %3335 = vmatpush.msra.mxu0 0.0
    %3336 = vmatpush.msra.mxu0 0.0
    %3337 = vmatpush.msra.mxu0 0.0
    %3338 = vmatpush.msra.mxu0 0.0
    %3339 = vmatpush.msra.mxu0 0.0
    %3340 = vmatpush.msra.mxu0 0.0
    %3341 = vmatpush.msra.mxu0 0.0
    %3342 = vmatpush.msra.mxu0 0.0
    %3343 = vmatpush.msra.mxu0 %v3323
    %3344 = vmatmul.f32.gmra.mxu0 %v3326
    %v3345 = vpop.f32.mrf.mxu0
    %v3346 = vadd.f32 0.0, %v3345
    %3347 = vdwg.mxu0
    %3348 = vrot.lane.b32.xlu0 %v3225, 112
    %v3349 = vpop.permute.xlu0 %3348
    %3350 = vrot.lane.b32.xlu0 %v3258, 112
    %v3351 = vpop.permute.xlu0 %3350
    %v3352 = vsel %vm203, %v3349, 0
    %v3354 = vsel %vm203, %v3351, 0
    %3356 = vmatpush.xpose.msra.mxu0 0.0
    %3357 = vmatpush.xpose.msra.mxu0 0.0
    %3358 = vmatpush.xpose.msra.mxu0 0.0
    %3359 = vmatpush.xpose.msra.mxu0 0.0
    %3360 = vmatpush.xpose.msra.mxu0 0.0
    %3361 = vmatpush.xpose.msra.mxu0 0.0
    %3362 = vmatpush.xpose.msra.mxu0 0.0
    %3363 = vmatpush.xpose.msra.mxu0 0.0
    %3364 = vmatpush.xpose.msra.mxu0 0.0
    %3365 = vmatpush.xpose.msra.mxu0 0.0
    %3366 = vmatpush.xpose.msra.mxu0 0.0
    %3367 = vmatpush.xpose.msra.mxu0 0.0
    %3368 = vmatpush.xpose.msra.mxu0 0.0
    %3369 = vmatpush.xpose.msra.mxu0 0.0
    %3370 = vmatpush.xpose.msra.mxu0 0.0
    %3371 = vmatpush.xpose.msra.mxu0 %v3354
    %3372 = vmatmul.f32.gmra.mxu0 %v3352
    %v3373 = vpop.f32.mrf.mxu0
    %v3374 = vadd.f32 0.0, %v3373
    %3375 = vdwg.mxu0
    %v3376 = vmul.f32 %v3374, 0.25
    %v3377 = vadd.f32 %v3376, %v229
    %v3378 = vsel %vm231, %v3377, -inf
    %3379 = vmax.xlane.f32.xlu0 %v3378
    %v3380 = vpop.xlane.xlu0 %3379
    %v3381 = vsub.f32 %v3377, %v3380
    %v3382 = vmul.f32 %v3381, 1.442695
    %v3383 = vpow.pop %v3382
    %v3384 = vsel %vm231, %v3383, 0.0
    %3385 = vadd.xlane.f32.xlu0 %v3384
    %v3386 = vpop.xlane.xlu0 %3385
    %v3387 = vrcp.pop %v3386
    %v3388 = vmul.f32 %v3386, %v3387
    %v3389 = vsub.f32 1.0, %v3388
    %v3390 = vmul.f32 %v3387, %v3389
    %v3391 = vadd.f32 %v3387, %v3390
    %vm3392 = vweird.f32 %v3386
    %vm3393 = vweird.f32 %v3387
    %vm3394 = vmor %vm3392, %vm3393
    %v3395 = vsel %vm3394, %v3387, %v3391
    %v3396 = vand.u32 2147483647, %v3386
    %vm3397 = vcmp.eq.f32.partialorder %v3396, 8.507059e+37
    %v3398 = vand.u32 %v3386, 2147483648
    %v3399 = vor.u32 1.1754944e-38, %v3398
    %v3400 = vsel %vm3397, %v3399, %v3395
    %v3401 = vmul.f32 %v3383, %v3400
    %3402 = vrot.lane.b32.xlu0 %v3258, 80
    %v3403 = vpop.permute.xlu0 %3402
    %v3406 = vsel %vm231, %v3401, 0
    %3408 = vmatpush.msra.mxu0 0.0
    %3409 = vmatpush.msra.mxu0 0.0
    %3410 = vmatpush.msra.mxu0 0.0
    %3411 = vmatpush.msra.mxu0 0.0
    %3412 = vmatpush.msra.mxu0 0.0
    %3413 = vmatpush.msra.mxu0 0.0
    %3414 = vmatpush.msra.mxu0 0.0
    %3415 = vmatpush.msra.mxu0 0.0
    %3416 = vmatpush.msra.mxu0 0.0
    %3417 = vmatpush.msra.mxu0 0.0
    %3418 = vmatpush.msra.mxu0 0.0
    %3419 = vmatpush.msra.mxu0 0.0
    %3420 = vmatpush.msra.mxu0 0.0
    %3421 = vmatpush.msra.mxu0 0.0
    %3422 = vmatpush.msra.mxu0 0.0
    %3423 = vmatpush.msra.mxu0 %v3403
    %3424 = vmatmul.f32.gmra.mxu0 %v3406
    %v3425 = vpop.f32.mrf.mxu0
    %v3426 = vadd.f32 0.0, %v3425
    %3427 = vdwg.mxu0
    %v3429 = vsel %vm203, %v3426, 0
    %3431 = vmatpush.msra.mxu0 0.0
    %3432 = vmatpush.msra.mxu0 0.0
    %3433 = vmatpush.msra.mxu0 0.0
    %3434 = vmatpush.msra.mxu0 0.0
    %3435 = vmatpush.msra.mxu0 0.0
    %3436 = vmatpush.msra.mxu0 0.0
    %3437 = vmatpush.msra.mxu0 0.0
    %3438 = vmatpush.msra.mxu0 0.0
    %3439 = vmatpush.msra.mxu0 0.0
    %3440 = vmatpush.msra.mxu0 0.0
    %3441 = vmatpush.msra.mxu0 0.0
    %3442 = vmatpush.msra.mxu0 0.0
    %3443 = vmatpush.msra.mxu0 0.0
    %3444 = vmatpush.msra.mxu0 0.0
    %3445 = vmatpush.msra.mxu0 %v3267
    %3446 = vmatpush.msra.mxu0 %v3266
    %3447 = vmatmul.f32.gmra.mxu0 %v3429
    %v3448 = vpop.f32.mrf.mxu0
    %v3449 = vadd.f32 0.0, %v3448
    %3450 = vdwg.mxu0
    %v3452 = vsel %vm203, %v3346, 0
    %3454 = vmatpush.msra.mxu0 0.0
    %3455 = vmatpush.msra.mxu0 0.0
    %3456 = vmatpush.msra.mxu0 0.0
    %3457 = vmatpush.msra.mxu0 0.0
    %3458 = vmatpush.msra.mxu0 0.0
    %3459 = vmatpush.msra.mxu0 0.0
    %3460 = vmatpush.msra.mxu0 0.0
    %3461 = vmatpush.msra.mxu0 0.0
    %3462 = vmatpush.msra.mxu0 0.0
    %3463 = vmatpush.msra.mxu0 0.0
    %3464 = vmatpush.msra.mxu0 0.0
    %3465 = vmatpush.msra.mxu0 0.0
    %3466 = vmatpush.msra.mxu0 0.0
    %3467 = vmatpush.msra.mxu0 0.0
    %3468 = vmatpush.msra.mxu0 %v3265
    %3469 = vmatpush.msra.mxu0 %v3264
    %3470 = vmatmul.f32.gmra.mxu0 %v3452
    %v3471 = vpop.f32.mrf.mxu0
    %v3472 = vadd.f32 %v3449, %v3471
    %3473 = vdwg.mxu0
    %v3475 = vperm.slane %v3269, 0
    %v3477 = vadd.f32 %v3472, %v3475
    %3478 = vst.msk [vmem:[#allocation2] sm:$0xff] %vm165, %v3477
    %v3480 = vsel %vm203, %v3228, 0
    %v3483 = vsel %vm203, %v3261, 0
    %3485 = vmatpush.xpose.msra.mxu0 0.0
    %3486 = vmatpush.xpose.msra.mxu0 0.0
    %3487 = vmatpush.xpose.msra.mxu0 0.0
    %3488 = vmatpush.xpose.msra.mxu0 0.0
    %3489 = vmatpush.xpose.msra.mxu0 0.0
    %3490 = vmatpush.xpose.msra.mxu0 0.0
    %3491 = vmatpush.xpose.msra.mxu0 0.0
    %3492 = vmatpush.xpose.msra.mxu0 0.0
    %3493 = vmatpush.xpose.msra.mxu0 0.0
    %3494 = vmatpush.xpose.msra.mxu0 0.0
    %3495 = vmatpush.xpose.msra.mxu0 0.0
    %3496 = vmatpush.xpose.msra.mxu0 0.0
    %3497 = vmatpush.xpose.msra.mxu0 0.0
    %3498 = vmatpush.xpose.msra.mxu0 0.0
    %3499 = vmatpush.xpose.msra.mxu0 0.0
    %3500 = vmatpush.xpose.msra.mxu0 %v3483
    %3501 = vmatmul.f32.gmra.mxu0 %v3480
    %v3502 = vpop.f32.mrf.mxu0
    %v3503 = vadd.f32 0.0, %v3502
    %3504 = vdwg.mxu0
    %v3505 = vmul.f32 %v3503, 0.25
    %v3506 = vadd.f32 %v3505, %v441
    %v3507 = vsel %vm231, %v3506, -inf
    %3508 = vmax.xlane.f32.xlu0 %v3507
    %v3509 = vpop.xlane.xlu0 %3508
    %v3510 = vsub.f32 %v3506, %v3509
    %v3511 = vmul.f32 %v3510, 1.442695
    %v3512 = vpow.pop %v3511
    %v3513 = vsel %vm231, %v3512, 0.0
    %3514 = vadd.xlane.f32.xlu0 %v3513
    %v3515 = vpop.xlane.xlu0 %3514
    %v3516 = vrcp.pop %v3515
    %v3517 = vmul.f32 %v3515, %v3516
    %v3518 = vsub.f32 1.0, %v3517
    %v3519 = vmul.f32 %v3516, %v3518
    %v3520 = vadd.f32 %v3516, %v3519
    %vm3521 = vweird.f32 %v3515
    %vm3522 = vweird.f32 %v3516
    %vm3523 = vmor %vm3521, %vm3522
    %v3524 = vsel %vm3523, %v3516, %v3520
    %v3525 = vand.u32 2147483647, %v3515
    %vm3526 = vcmp.eq.f32.partialorder %v3525, 8.507059e+37
    %v3527 = vand.u32 %v3515, 2147483648
    %v3528 = vor.u32 1.1754944e-38, %v3527
    %v3529 = vsel %vm3526, %v3528, %v3524
    %v3530 = vmul.f32 %v3512, %v3529
    %3531 = vrot.lane.b32.xlu0 %v3261, 96
    %v3532 = vpop.permute.xlu0 %3531
    %v3535 = vsel %vm231, %v3530, 0
    %3537 = vmatpush.msra.mxu0 0.0
    %3538 = vmatpush.msra.mxu0 0.0
    %3539 = vmatpush.msra.mxu0 0.0
    %3540 = vmatpush.msra.mxu0 0.0
    %3541 = vmatpush.msra.mxu0 0.0
    %3542 = vmatpush.msra.mxu0 0.0
    %3543 = vmatpush.msra.mxu0 0.0
    %3544 = vmatpush.msra.mxu0 0.0
    %3545 = vmatpush.msra.mxu0 0.0
    %3546 = vmatpush.msra.mxu0 0.0
    %3547 = vmatpush.msra.mxu0 0.0
    %3548 = vmatpush.msra.mxu0 0.0
    %3549 = vmatpush.msra.mxu0 0.0
    %3550 = vmatpush.msra.mxu0 0.0
    %3551 = vmatpush.msra.mxu0 0.0
    %3552 = vmatpush.msra.mxu0 %v3532
    %3553 = vmatmul.f32.gmra.mxu0 %v3535
    %v3554 = vpop.f32.mrf.mxu0
    %v3555 = vadd.f32 0.0, %v3554
    %3556 = vdwg.mxu0
    %3557 = vrot.lane.b32.xlu0 %v3228, 112
    %v3558 = vpop.permute.xlu0 %3557
    %3559 = vrot.lane.b32.xlu0 %v3261, 112
    %v3560 = vpop.permute.xlu0 %3559
    %v3561 = vsel %vm203, %v3558, 0
    %v3563 = vsel %vm203, %v3560, 0
    %3565 = vmatpush.xpose.msra.mxu0 0.0
    %3566 = vmatpush.xpose.msra.mxu0 0.0
    %3567 = vmatpush.xpose.msra.mxu0 0.0
    %3568 = vmatpush.xpose.msra.mxu0 0.0
    %3569 = vmatpush.xpose.msra.mxu0 0.0
    %3570 = vmatpush.xpose.msra.mxu0 0.0
    %3571 = vmatpush.xpose.msra.mxu0 0.0
    %3572 = vmatpush.xpose.msra.mxu0 0.0
    %3573 = vmatpush.xpose.msra.mxu0 0.0
    %3574 = vmatpush.xpose.msra.mxu0 0.0
    %3575 = vmatpush.xpose.msra.mxu0 0.0
    %3576 = vmatpush.xpose.msra.mxu0 0.0
    %3577 = vmatpush.xpose.msra.mxu0 0.0
    %3578 = vmatpush.xpose.msra.mxu0 0.0
    %3579 = vmatpush.xpose.msra.mxu0 0.0
    %3580 = vmatpush.xpose.msra.mxu0 %v3563
    %3581 = vmatmul.f32.gmra.mxu0 %v3561
    %v3582 = vpop.f32.mrf.mxu0
    %v3583 = vadd.f32 0.0, %v3582
    %3584 = vdwg.mxu0
    %v3585 = vmul.f32 %v3583, 0.25
    %v3586 = vadd.f32 %v3585, %v441
    %v3587 = vsel %vm231, %v3586, -inf
    %3588 = vmax.xlane.f32.xlu0 %v3587
    %v3589 = vpop.xlane.xlu0 %3588
    %v3590 = vsub.f32 %v3586, %v3589
    %v3591 = vmul.f32 %v3590, 1.442695
    %v3592 = vpow.pop %v3591
    %v3593 = vsel %vm231, %v3592, 0.0
    %3594 = vadd.xlane.f32.xlu0 %v3593
    %v3595 = vpop.xlane.xlu0 %3594
    %v3596 = vrcp.pop %v3595
    %v3597 = vmul.f32 %v3595, %v3596
    %v3598 = vsub.f32 1.0, %v3597
    %v3599 = vmul.f32 %v3596, %v3598
    %v3600 = vadd.f32 %v3596, %v3599
    %vm3601 = vweird.f32 %v3595
    %vm3602 = vweird.f32 %v3596
    %vm3603 = vmor %vm3601, %vm3602
    %v3604 = vsel %vm3603, %v3596, %v3600
    %v3605 = vand.u32 2147483647, %v3595
    %vm3606 = vcmp.eq.f32.partialorder %v3605, 8.507059e+37
    %v3607 = vand.u32 %v3595, 2147483648
    %v3608 = vor.u32 1.1754944e-38, %v3607
    %v3609 = vsel %vm3606, %v3608, %v3604
    %v3610 = vmul.f32 %v3592, %v3609
    %3611 = vrot.lane.b32.xlu0 %v3261, 80
    %v3612 = vpop.permute.xlu0 %3611
    %v3615 = vsel %vm231, %v3610, 0
    %3617 = vmatpush.msra.mxu0 0.0
    %3618 = vmatpush.msra.mxu0 0.0
    %3619 = vmatpush.msra.mxu0 0.0
    %3620 = vmatpush.msra.mxu0 0.0
    %3621 = vmatpush.msra.mxu0 0.0
    %3622 = vmatpush.msra.mxu0 0.0
    %3623 = vmatpush.msra.mxu0 0.0
    %3624 = vmatpush.msra.mxu0 0.0
    %3625 = vmatpush.msra.mxu0 0.0
    %3626 = vmatpush.msra.mxu0 0.0
    %3627 = vmatpush.msra.mxu0 0.0
    %3628 = vmatpush.msra.mxu0 0.0
    %3629 = vmatpush.msra.mxu0 0.0
    %3630 = vmatpush.msra.mxu0 0.0
    %3631 = vmatpush.msra.mxu0 0.0
    %3632 = vmatpush.msra.mxu0 %v3612
    %3633 = vmatmul.f32.gmra.mxu0 %v3615
    %v3634 = vpop.f32.mrf.mxu0
    %v3635 = vadd.f32 0.0, %v3634
    %3636 = vdwg.mxu0
    %v3638 = vsel %vm203, %v3635, 0
    %3640 = vmatpush.msra.mxu0 0.0
    %3641 = vmatpush.msra.mxu0 0.0
    %3642 = vmatpush.msra.mxu0 0.0
    %3643 = vmatpush.msra.mxu0 0.0
    %3644 = vmatpush.msra.mxu0 0.0
    %3645 = vmatpush.msra.mxu0 0.0
    %3646 = vmatpush.msra.mxu0 0.0
    %3647 = vmatpush.msra.mxu0 0.0
    %3648 = vmatpush.msra.mxu0 0.0
    %3649 = vmatpush.msra.mxu0 0.0
    %3650 = vmatpush.msra.mxu0 0.0
    %3651 = vmatpush.msra.mxu0 0.0
    %3652 = vmatpush.msra.mxu0 0.0
    %3653 = vmatpush.msra.mxu0 0.0
    %3654 = vmatpush.msra.mxu0 %v3267
    %3655 = vmatpush.msra.mxu0 %v3266
    %3656 = vmatmul.f32.gmra.mxu0 %v3638
    %v3657 = vpop.f32.mrf.mxu0
    %v3658 = vadd.f32 0.0, %v3657
    %3659 = vdwg.mxu0
    %v3661 = vsel %vm203, %v3555, 0
    %3663 = vmatpush.msra.mxu0 0.0
    %3664 = vmatpush.msra.mxu0 0.0
    %3665 = vmatpush.msra.mxu0 0.0
    %3666 = vmatpush.msra.mxu0 0.0
    %3667 = vmatpush.msra.mxu0 0.0
    %3668 = vmatpush.msra.mxu0 0.0
    %3669 = vmatpush.msra.mxu0 0.0
    %3670 = vmatpush.msra.mxu0 0.0
    %3671 = vmatpush.msra.mxu0 0.0
    %3672 = vmatpush.msra.mxu0 0.0
    %3673 = vmatpush.msra.mxu0 0.0
    %3674 = vmatpush.msra.mxu0 0.0
    %3675 = vmatpush.msra.mxu0 0.0
    %3676 = vmatpush.msra.mxu0 0.0
    %3677 = vmatpush.msra.mxu0 %v3265
    %3678 = vmatpush.msra.mxu0 %v3264
    %3679 = vmatmul.f32.gmra.mxu0 %v3661
    %v3680 = vpop.f32.mrf.mxu0
    %v3681 = vadd.f32 %v3658, %v3680
    %3682 = vdwg.mxu0
    %v3683 = vadd.f32 %v3681, %v3475
    %3684 = vst.msk [vmem:[#allocation2 + $0x8] sm:$0xff] %vm165, %v3683
    %v3685 = vld [vmem:[#allocation2] sm:$0xff]
    %v3686 = vld [vmem:[#allocation2 + $0x8] sm:$0xff]
    %v3687 = vadd.f32 %v3189, %v3685
    %v3688 = vadd.f32 %v3190, %v3686
    %s3689 = scalar_lea.vmem %s51, 2
    %v3690 = vld [vmem:[%s3689] sm:$0x3]
    %v3691 = vsel %vm165, %v3687, 0.0
    %3692 = vadd.xlane.f32.xlu0 %v3691
    %v3693 = vpop.xlane.xlu0 %3692
    %v3694 = vsel %vm165, %v3688, 0.0
    %3695 = vadd.xlane.f32.xlu0 %v3694
    %v3696 = vpop.xlane.xlu0 %3695
    %v3697 = vmul.f32 %v3693, %v638
    %v3698 = vmul.f32 %v3696, %v638
    %v3699 = vsub.f32 %v3687, %v3697
    %v3700 = vsub.f32 %v3688, %v3698
    %v3701 = vmul.f32 %v3699, %v3699
    %v3702 = vmul.f32 %v3700, %v3700
    %v3703 = vsel %vm165, %v3701, 0.0
    %3704 = vadd.xlane.f32.xlu0 %v3703
    %v3705 = vpop.xlane.xlu0 %3704
    %v3706 = vsel %vm165, %v3702, 0.0
    %3707 = vadd.xlane.f32.xlu0 %v3706
    %v3708 = vpop.xlane.xlu0 %3707
    %v3709 = vmul.f32 %v3705, %v638
    %v3710 = vmul.f32 %v3708, %v638
    %v3711 = vadd.f32 %v3709, 1e-05
    %v3712 = vadd.f32 %v3710, 1e-05
    %v3713 = vrsqrt.pop %v3711
    %v3714 = vmul.f32 %v3713, %v3711
    %v3715 = vmul.f32 %v3714, %v3713
    %v3716 = vmul.f32 0.5, %v3715
    %v3717 = vsub.f32 1.5, %v3716
    %v3718 = vmul.f32 %v3713, %v3717
    %vm3719 = vweird.f32 %v3711
    %vm3720 = vweird.f32 %v3713
    %vm3721 = vmor %vm3719, %vm3720
    %v3722 = vsel %vm3721, %v3713, %v3718
    %v3723 = vrsqrt.pop %v3712
    %v3724 = vmul.f32 %v3723, %v3712
    %v3725 = vmul.f32 %v3724, %v3723
    %v3726 = vmul.f32 0.5, %v3725
    %v3727 = vsub.f32 1.5, %v3726
    %v3728 = vmul.f32 %v3723, %v3727
    %vm3729 = vweird.f32 %v3712
    %vm3730 = vweird.f32 %v3723
    %vm3731 = vmor %vm3729, %vm3730
    %v3732 = vsel %vm3731, %v3723, %v3728
    %v3733 = vmul.f32 %v3699, %v3722
    %v3734 = vmul.f32 %v3700, %v3732
    %v3735 = vperm.slane %v3690, 0
    %v3736 = vmul.f32 %v3733, %v3735
    %v3737 = vmul.f32 %v3734, %v3735
    %v3738 = vperm.slane %v3690, 1
    %v3739 = vadd.f32 %v3736, %v3738
    %v3740 = vadd.f32 %v3737, %v3738
    %s3741 = scalar_lea.vmem %s53, 32
    %v3742 = vld [vmem:[%s3741] sm:$0xff]
    %v3743 = vld [vmem:[%s3741 + $0x8] sm:$0xff]
    %v3744 = vld [vmem:[%s3741 + $0x10] sm:$0xff]
    %v3745 = vld [vmem:[%s3741 + $0x18] sm:$0xff]
    %s3746 = scalar_lea.vmem %s55, 1
    %v3747 = vld [vmem:[%s3746] sm:$0x1]
    %s3748 = scalar_lea.vmem %s57, 64
    %v3749 = vld [vmem:[%s3748] sm:$0xff]
    %v3750 = vld [vmem:[%s3748 + $0x8] sm:$0xff]
    %v3751 = vld [vmem:[%s3748 + $0x10] sm:$0xff]
    %v3752 = vld [vmem:[%s3748 + $0x18] sm:$0xff]
    %v3753 = vld [vmem:[%s3748 + $0x20] sm:$0xff]
    %v3754 = vld [vmem:[%s3748 + $0x28] sm:$0xff]
    %v3755 = vld [vmem:[%s3748 + $0x30] sm:$0xff]
    %v3756 = vld [vmem:[%s3748 + $0x38] sm:$0xff]
    %s3757 = scalar_lea.vmem %s59, 1
    %v3758 = vld [vmem:[%s3757] sm:$0x1]
    %v3760 = vperm.slane %v3747, 0
    %v3763 = vsel %vm165, %v3739, 0
    %v3766 = vsel %vm165, %v3740, 0
    %3768 = vmatpush.msra.mxu0 0.0
    %3769 = vmatpush.msra.mxu0 0.0
    %3770 = vmatpush.msra.mxu0 0.0
    %3771 = vmatpush.msra.mxu0 0.0
    %3772 = vmatpush.msra.mxu0 0.0
    %3773 = vmatpush.msra.mxu0 0.0
    %3774 = vmatpush.msra.mxu0 0.0
    %3775 = vmatpush.msra.mxu0 0.0
    %3776 = vmatpush.msra.mxu0 0.0
    %3777 = vmatpush.msra.mxu0 0.0
    %3778 = vmatpush.msra.mxu0 0.0
    %3779 = vmatpush.msra.mxu0 0.0
    %3780 = vmatpush.msra.mxu0 %v3745
    %3781 = vmatpush.msra.mxu0 %v3744
    %3782 = vmatpush.msra.mxu0 %v3743
    %3783 = vmatpush.msra.mxu0 %v3742
    %3784 = vmatmul.f32.gmra.mxu0 %v3763
    %v3785 = vpop.f32.mrf.mxu0
    %v3786 = vadd.f32 %v3760, %v3785
    %3787 = vmatmul.f32.gmra.mxu0 %v3766
    %v3788 = vpop.f32.mrf.mxu0
    %v3789 = vadd.f32 %v3760, %v3788
    %3790 = vdwg.mxu0
    %v3791 = vmax.f32 %v3786, 0.0
    %v3792 = vmax.f32 %v3789, 0.0
    %v3794 = vperm.slane %v3758, 0
    %v3797 = vsel %vm734, %v3791, 0
    %v3800 = vsel %vm734, %v3792, 0
    %3802 = vmatpush.msra.mxu0 0.0
    %3803 = vmatpush.msra.mxu0 0.0
    %3804 = vmatpush.msra.mxu0 0.0
    %3805 = vmatpush.msra.mxu0 0.0
    %3806 = vmatpush.msra.mxu0 0.0
    %3807 = vmatpush.msra.mxu0 0.0
    %3808 = vmatpush.msra.mxu0 0.0
    %3809 = vmatpush.msra.mxu0 0.0
    %3810 = vmatpush.msra.mxu0 %v3756
    %3811 = vmatpush.msra.mxu0 %v3755
    %3812 = vmatpush.msra.mxu0 %v3754
    %3813 = vmatpush.msra.mxu0 %v3753
    %3814 = vmatpush.msra.mxu0 %v3752
    %3815 = vmatpush.msra.mxu0 %v3751
    %3816 = vmatpush.msra.mxu0 %v3750
    %3817 = vmatpush.msra.mxu0 %v3749
    %3818 = vmatmul.f32.gmra.mxu0 %v3797
    %v3819 = vpop.f32.mrf.mxu0
    %v3820 = vadd.f32 %v3794, %v3819
    %3821 = vmatmul.f32.gmra.mxu0 %v3800
    %v3822 = vpop.f32.mrf.mxu0
    %v3823 = vadd.f32 %v3794, %v3822
    %3824 = vdwg.mxu0
    %v3825 = vadd.f32 %v3739, %v3820
    %v3826 = vadd.f32 %v3740, %v3823
    %s3827 = scalar_lea.vmem %s61, 2
    %v3828 = vld [vmem:[%s3827] sm:$0x3]
    %v3829 = vsel %vm165, %v3825, 0.0
    %3830 = vadd.xlane.f32.xlu0 %v3829
    %v3831 = vpop.xlane.xlu0 %3830
    %v3832 = vsel %vm165, %v3826, 0.0
    %3833 = vadd.xlane.f32.xlu0 %v3832
    %v3834 = vpop.xlane.xlu0 %3833
    %v3835 = vmul.f32 %v3831, %v638
    %v3836 = vmul.f32 %v3834, %v638
    %v3837 = vsub.f32 %v3825, %v3835
    %v3838 = vsub.f32 %v3826, %v3836
    %v3839 = vmul.f32 %v3837, %v3837
    %v3840 = vmul.f32 %v3838, %v3838
    %v3841 = vsel %vm165, %v3839, 0.0
    %3842 = vadd.xlane.f32.xlu0 %v3841
    %v3843 = vpop.xlane.xlu0 %3842
    %v3844 = vsel %vm165, %v3840, 0.0
    %3845 = vadd.xlane.f32.xlu0 %v3844
    %v3846 = vpop.xlane.xlu0 %3845
    %v3847 = vmul.f32 %v3843, %v638
    %v3848 = vmul.f32 %v3846, %v638
    %v3849 = vadd.f32 %v3847, 1e-05
    %v3850 = vadd.f32 %v3848, 1e-05
    %v3851 = vrsqrt.pop %v3849
    %v3852 = vmul.f32 %v3851, %v3849
    %v3853 = vmul.f32 %v3852, %v3851
    %v3854 = vmul.f32 0.5, %v3853
    %v3855 = vsub.f32 1.5, %v3854
    %v3856 = vmul.f32 %v3851, %v3855
    %vm3857 = vweird.f32 %v3849
    %vm3858 = vweird.f32 %v3851
    %vm3859 = vmor %vm3857, %vm3858
    %v3860 = vsel %vm3859, %v3851, %v3856
    %v3861 = vrsqrt.pop %v3850
    %v3862 = vmul.f32 %v3861, %v3850
    %v3863 = vmul.f32 %v3862, %v3861
    %v3864 = vmul.f32 0.5, %v3863
    %v3865 = vsub.f32 1.5, %v3864
    %v3866 = vmul.f32 %v3861, %v3865
    %vm3867 = vweird.f32 %v3850
    %vm3868 = vweird.f32 %v3861
    %vm3869 = vmor %vm3867, %vm3868
    %v3870 = vsel %vm3869, %v3861, %v3866
    %v3871 = vmul.f32 %v3837, %v3860
    %v3872 = vmul.f32 %v3838, %v3870
    %v3873 = vperm.slane %v3828, 0
    %v3874 = vmul.f32 %v3871, %v3873
    %v3875 = vmul.f32 %v3872, %v3873
    %v3876 = vperm.slane %v3828, 1
    %v3877 = vadd.f32 %v3874, %v3876
    %v3878 = vadd.f32 %v3875, %v3876
    %v3879 = vld [vmem:[%s63] sm:$0xff]
    %v3880 = vld [vmem:[%s63 + $0x8] sm:$0xff]
    %v3881 = vld [vmem:[%s63 + $0x10] sm:$0xff]
    %v3882 = vld [vmem:[%s63 + $0x18] sm:$0xff]
    %v3883 = vld [vmem:[%s65] sm:$0x1]
    %v3885 = vperm.slane %v3883, 0
    %v3888 = vsel %vm165, %v3877, 0
    %v3891 = vsel %vm165, %v3878, 0
    %3893 = vmatpush.msra.mxu0 0.0
    %3894 = vmatpush.msra.mxu0 0.0
    %3895 = vmatpush.msra.mxu0 0.0
    %3896 = vmatpush.msra.mxu0 0.0
    %3897 = vmatpush.msra.mxu0 0.0
    %3898 = vmatpush.msra.mxu0 0.0
    %3899 = vmatpush.msra.mxu0 0.0
    %3900 = vmatpush.msra.mxu0 0.0
    %3901 = vmatpush.msra.mxu0 0.0
    %3902 = vmatpush.msra.mxu0 0.0
    %3903 = vmatpush.msra.mxu0 0.0
    %3904 = vmatpush.msra.mxu0 0.0
    %3905 = vmatpush.msra.mxu0 %v3882
    %3906 = vmatpush.msra.mxu0 %v3881
    %3907 = vmatpush.msra.mxu0 %v3880
    %3908 = vmatpush.msra.mxu0 %v3879
    %3909 = vmatmul.f32.gmra.mxu0 %v3888
    %v3910 = vpop.f32.mrf.mxu0
    %v3911 = vadd.f32 %v3885, %v3910
    %3912 = vmatmul.f32.gmra.mxu0 %v3891
    %v3913 = vpop.f32.mrf.mxu0
    %v3914 = vadd.f32 %v3885, %v3913
    %3915 = vdwg.mxu0
    %3916 = vst [vmem:[#allocation3] sm:$0xff] %v3911
    %3917 = vst [vmem:[#allocation3 + $0x8] sm:$0xff] %v3914
    // Predicated region
    $region134: #{transformer_forward.1} parent=1 // pred_check
      _
    $region135: #{transformer_forward.1} parent=1 // pred_check_branch
      %3919 = sbr.rel (0) target = $region137
    $region136: #{transformer_forward.1} parent=1 // pred_region
      %3921 = vsyncadd [#allocation4], 0
      %s3922 = sshll.u32 [#allocation3], 4
      %s3923 = int_to_ptr.vmem [resolvable:$true] %s3922
      %s3924 = sshll.u32 %s67, 4
      %s3925 = int_to_ptr.hbm [resolvable:$true] %s3924
      %3930 = dma.vmem_to_hbm [thread:$0]  %s3923, 256, %s3925, [#allocation4], 128, 128, 8
    $region137: #{transformer_forward.1} parent=1 // pred_fallthru
      _
    // Predicated region
    $region138: #{transformer_forward.1} parent=1 // pred_check
      _
    $region139: #{transformer_forward.1} parent=1 // pred_check_branch
      %3932 = sbr.rel (0) target = $region141
    $region140: #{transformer_forward.1} parent=1 // pred_region
      %3934 = dma.done [#allocation4], 256
    $region141: #{transformer_forward.1} parent=1 // pred_fallthru
      _
    %3935 = vsyncpa [#allocation4], 1

</llo_original>
